<compile_context>
chip_gen: v7x
topology: tpu7x:2x2x1
jax: 0.10.0
libtpu: 0.0.40
codegen_flags: <defaults>
</compile_context>

<pallas_src>
import jax
import jax.numpy as jnp
from jax.experimental import pallas as pl
from jax.experimental.pallas import tpu as pltpu

FMAX = 128                    # every feature dim zero-padded to one lane width
NUM_LAYERS = 3
NUM_RELS = 4                  # (el,e,el), (el,e_p,pr), (pr,p,pr), (pr,rev_e_p,el)
N_EL, N_PR = 8, 8             # node counts of the (single, small) example graph
B_DEC_ROW = 3 * NUM_LAYERS * NUM_RELS            # 36: decoder-bias row in VEC
VEC_ROWS = ((B_DEC_ROW + 1 + 7) // 8) * 8        # 37 -> 40 (sublane-tile pad)


# ---------------------------------------------------------------------------
# Shared math: called with jnp *values* both inside the Pallas kernel and by
# the pure-JAX reference, so kernel and reference agree by construction.
# ---------------------------------------------------------------------------
def _rel_attention(x_dst, x_src, adj, v_src, v_dst, reciprocal):
    """Normalized GAT attention weights p[dst, src] for one relation
    (heads=1, negative_slope=0 -> ReLU, add_self_loops=False, dense 0/1 adj)."""
    a_src = jnp.sum(x_src * v_src, axis=-1, keepdims=True)        # [Ns, 1]
    a_dst = jnp.sum(x_dst * v_dst, axis=-1, keepdims=True)        # [Nd, 1]
    # LeakyReLU(slope=0) == ReLU; masked entries become exactly 0, and since
    # e >= 0 the row max over the masked scores equals the max over valid ones.
    e = jnp.maximum((a_dst + a_src.T) * adj, 0.0)                  # [Nd, Ns]
    m = jnp.max(e, axis=-1, keepdims=True)
    p = jnp.exp(e - m) * adj                                       # masked exp, in [0, 1]
    denom = jnp.sum(p, axis=-1, keepdims=True)
    # Rows with >= 1 edge have denom >= 1 (exp(0)=1 at the row max), so the clamp
    # is exact for them; empty rows have p == 0 and stay exactly 0 (bias only).
    return p * reciprocal(jnp.maximum(denom, 1.0))


def _hetero_forward(x_all, adj, vec, get_w, reciprocal):
    """3 to_hetero(aggr='sum') GAT layers + G_aggr decode, fully unrolled.

    x_all : [N_EL+N_PR, FMAX] f32, rows 0:N_EL = elements, N_EL: = process
    adj   : [4, 8, 8] f32, (ee, ep, pp, pe), adj[r][dst, src] in {0, 1}
    vec   : [VEC_ROWS, FMAX] f32, rows 3r/3r+1/3r+2 = v_src/v_dst/bias of
            relation r; row B_DEC_ROW = decoder bias
    get_w : r -> [FMAX, 2*FMAX] bf16 merged weight (2L: el-source, 2L+1: pr-source,
            2*NUM_LAYERS: decoder weight in lanes :FMAX)
    """
    x_el = x_all[:N_EL]
    x_pr = x_all[N_EL:N_EL + N_PR]
    adj_ee, adj_ep, adj_pp, adj_pe = adj[0], adj[1], adj[2], adj[3]

    def vrow(i):
        return vec[i:i + 1, :]                                     # [1, FMAX]

    def vsrc(r): return vrow(3 * r + 0)
    def vdst(r): return vrow(3 * r + 1)
    def bias(r): return vrow(3 * r + 2)

    for layer in range(NUM_LAYERS):
        r0, r1, r2, r3 = (NUM_RELS * layer + i for i in range(NUM_RELS))
        # Hoisted bf16 casts: each x is cast exactly once per layer.
        x_el_b = x_el.astype(jnp.bfloat16)
        x_pr_b = x_pr.astype(jnp.bfloat16)
        # One MXU matmul per *source* type (halves the h matmul count 4 -> 2);
        # N = 256 covers both relations sharing that source.
        h_el = jnp.dot(x_el_b, get_w(2 * layer),
                       preferred_element_type=jnp.float32)          # [8, 256]
        h_pr = jnp.dot(x_pr_b, get_w(2 * layer + 1),
                       preferred_element_type=jnp.float32)          # [8, 256]
        h_ee, h_ep = h_el[:, :FMAX], h_el[:, FMAX:]                 # vreg-aligned slices
        h_pp, h_pe = h_pr[:, :FMAX], h_pr[:, FMAX:]
        # Per-relation normalized attention (tiny [8, 8] matrices, VPU/XLU work).
        p_ee = _rel_attention(x_el, x_el, adj_ee, vsrc(r0), vdst(r0), reciprocal)
        p_ep = _rel_attention(x_pr, x_el, adj_ep, vsrc(r1), vdst(r1), reciprocal)
        p_pp = _rel_attention(x_pr, x_pr, adj_pp, vsrc(r2), vdst(r2), reciprocal)
        p_pe = _rel_attention(x_el, x_pr, adj_pe, vsrc(r3), vdst(r3), reciprocal)
        # Aggregate + to_hetero 'sum' over incoming relations (+ both biases).
        new_el = (jnp.dot(p_ee.astype(jnp.bfloat16), h_ee.astype(jnp.bfloat16),
                          preferred_element_type=jnp.float32)
                  + jnp.dot(p_pe.astype(jnp.bfloat16), h_pe.astype(jnp.bfloat16),
                            preferred_element_type=jnp.float32)
                  + bias(r0) + bias(r3))
        new_pr = (jnp.dot(p_pp.astype(jnp.bfloat16), h_pp.astype(jnp.bfloat16),
                          preferred_element_type=jnp.float32)
                  + jnp.dot(p_ep.astype(jnp.bfloat16), h_ep.astype(jnp.bfloat16),
                            preferred_element_type=jnp.float32)
                  + bias(r1) + bias(r2))
        x_el, x_pr = new_el, new_pr

    # G_aggr: cat -> Linear(H3, 2) -> mean(dim=0). Linear is affine, so it
    # commutes with the mean: out = mean(x_cat) @ W + b.
    mean_feat = (jnp.sum(x_el, axis=0, keepdims=True)
                 + jnp.sum(x_pr, axis=0, keepdims=True)) * (1.0 / (N_EL + N_PR))
    w_dec = get_w(2 * NUM_LAYERS)[:, :FMAX]                         # [FMAX, FMAX]
    b_dec = vrow(B_DEC_ROW)
    return jnp.dot(mean_feat.astype(jnp.bfloat16), w_dec,
                   preferred_element_type=jnp.float32) + b_dec      # [1, FMAX]


# ---------------------------------------------------------------------------
# Pallas kernel: the whole G_process forward in one call (everything VMEM
# resident, intermediates never leave VMEM).
# ---------------------------------------------------------------------------
def g_process_kernel(x_ref, adj_ref, w_ref, vec_ref, out_ref):
    y = _hetero_forward(
        x_ref[...], adj_ref[...], vec_ref[...],
        lambda r: w_ref[r],                       # one [128, 256] bf16 slice at a time
        lambda d: pl.reciprocal(d, approx=True))
    # Lane-dense (8, 128) output slab -> one unmasked store; the real 2-vector
    # lives at row 0, cols 0:2.
    out_ref[...] = jnp.broadcast_to(y, out_ref.shape)


def g_process_pallas(x_all, adj, w_all, vec):
    out = pl.pallas_call(
        g_process_kernel,
        out_shape=jax.ShapeDtypeStruct((8, FMAX), jnp.float32),
        in_specs=[pl.BlockSpec(memory_space=pltpu.MemorySpace.VMEM)] * 4,
        out_specs=pl.BlockSpec(memory_space=pltpu.MemorySpace.VMEM),
    )(x_all, adj, w_all, vec)
    return out[0, :2]


def g_process_reference(x_all, adj, w_all, vec):
    """Pure-JAX reference (same math, exact reciprocal)."""
    y = _hetero_forward(x_all, adj, vec, lambda r: w_all[r], lambda d: 1.0 / d)
    return y[0, :2]


# ---------------------------------------------------------------------------
# Parameter construction / packing (host side).
# ---------------------------------------------------------------------------
def init_relation_params(key, f_src, f_dst, f_out):
    k1, k2, k3, k4, k5 = jax.random.split(key, 5)
    return {
        "w_src": jax.random.normal(k1, (f_src, f_out), jnp.float32) / jnp.sqrt(jnp.float32(f_src)),
        "w_dst": jax.random.normal(k2, (f_dst, f_out), jnp.float32) / jnp.sqrt(jnp.float32(f_dst)),
        "att_src": jax.random.normal(k3, (1, f_out), jnp.float32) * 0.1,
        "att_dst": jax.random.normal(k4, (1, f_out), jnp.float32) * 0.1,
        "bias": jax.random.normal(k5, (f_out,), jnp.float32) * 0.1,
    }


def pack_params(rel_params, w_lin, b_lin):
    """Fold attention vectors, merge same-source relation weights along N and
    consolidate all small vectors into one lane-dense VEC array."""
    w_all = jnp.zeros((2 * NUM_LAYERS + 1, FMAX, 2 * FMAX), jnp.float32)
    vec = jnp.zeros((VEC_ROWS, FMAX), jnp.float32)
    for layer in range(NUM_LAYERS):
        for j in range(NUM_RELS):                       # j: 0=ee, 1=ep, 2=pp, 3=pe
            r = layer * NUM_RELS + j
            p = rel_params[r]
            f_src, f_out = p["w_src"].shape
            f_dst = p["w_dst"].shape[0]
            w_idx = 2 * layer + (0 if j in (0, 1) else 1)   # el-source vs pr-source
            half = 0 if j in (0, 2) else 1                  # lane half within 256
            w_all = w_all.at[w_idx, :f_src,
                             half * FMAX:half * FMAX + f_out].set(p["w_src"])
            # Folded attention: a_src = x_src @ (W_src @ att_src^T), same for dst.
            vs = (p["w_src"] @ p["att_src"].T)[:, 0]
            vd = (p["w_dst"] @ p["att_dst"].T)[:, 0]
            vec = vec.at[3 * r + 0, :f_src].set(vs)
            vec = vec.at[3 * r + 1, :f_dst].set(vd)
            vec = vec.at[3 * r + 2, :f_out].set(p["bias"])
    h3, n_out = w_lin.shape
    w_all = w_all.at[2 * NUM_LAYERS, :h3, :n_out].set(w_lin)   # decoder weight
    vec = vec.at[B_DEC_ROW, :n_out].set(b_lin)                 # decoder bias
    return w_all.astype(jnp.bfloat16), vec


def pack_nodes(x_el, x_pr):
    x = jnp.zeros((N_EL + N_PR, FMAX), jnp.float32)
    x = x.at[:N_EL, :x_el.shape[1]].set(x_el)
    x = x.at[N_EL:, :x_pr.shape[1]].set(x_pr)
    return x


def dense_adj(edge_index, n_dst, n_src):
    """edge_index: [2, E] (row 0 = source, row 1 = destination)."""
    src, dst = edge_index[0], edge_index[1]
    adj = jnp.zeros((n_dst, n_src), jnp.float32)
    return adj.at[dst, src].set(1.0)


if __name__ == "__main__":
    key = jax.random.PRNGKey(0)

    # Small deterministic hetero graph: 8 'elements' + 8 'process' nodes.
    F_EL, F_PR = 16, 8            # raw feature dims per node type (lazy (-1,-1))
    H1, H2, H3 = 32, 16, 8
    E = 12                        # edges per relation

    keys = jax.random.split(key, 20)
    x_el = jax.random.normal(keys[0], (N_EL, F_EL), jnp.float32)
    x_pr = jax.random.normal(keys[1], (N_PR, F_PR), jnp.float32)

    # Relations in order: e (el->el), e_p (el->pr), p (pr->pr), rev_e_p (pr->el).
    rel_src_dst_sizes = [(N_EL, N_EL), (N_EL, N_PR), (N_PR, N_PR), (N_PR, N_EL)]
    adjs = []
    for i, (n_src, n_dst) in enumerate(rel_src_dst_sizes):
        ei = jnp.stack([
            jax.random.randint(keys[2 + i], (E,), 0, n_src, dtype=jnp.int32),
            jax.random.randint(keys[6 + i], (E,), 0, n_dst, dtype=jnp.int32)])
        adjs.append(dense_adj(ei, n_dst, n_src))
    adj_all = jnp.stack(adjs)     # [4, 8, 8], each [dst, src]

    # Per-(layer, relation) GATConv params (to_hetero clones the conv per relation).
    in_dims = [{"el": F_EL, "pr": F_PR}, {"el": H1, "pr": H1}, {"el": H2, "pr": H2}]
    out_dims = [H1, H2, H3]
    rel_src_dst = [("el", "el"), ("el", "pr"), ("pr", "pr"), ("pr", "el")]
    pkeys = jax.random.split(keys[10], NUM_LAYERS * NUM_RELS)
    rel_params = []
    for layer in range(NUM_LAYERS):
        for r, (s, d) in enumerate(rel_src_dst):
            rel_params.append(init_relation_params(
                pkeys[layer * NUM_RELS + r],
                in_dims[layer][s], in_dims[layer][d], out_dims[layer]))

    # G_aggr decode: Linear(H3, 2).
    w_lin = jax.random.normal(keys[11], (H3, 2), jnp.float32) / jnp.sqrt(jnp.float32(H3))
    b_lin = jax.random.normal(keys[12], (2,), jnp.float32) * 0.1

    W_ALL, VEC = pack_params(rel_params, w_lin, b_lin)
    X_ALL = pack_nodes(x_el, x_pr)

    out = g_process_pallas(X_ALL, adj_all, W_ALL, VEC)
    out = jax.block_until_ready(out)

    ref = g_process_reference(X_ALL, adj_all, W_ALL, VEC)
    ref = jax.block_until_ready(ref)

    assert out.shape == (2,)
    assert bool(jnp.all(jnp.isfinite(out))), "non-finite output"
    max_err = float(jnp.max(jnp.abs(out - ref)))
    assert max_err < 5e-2, f"kernel vs reference mismatch: {max_err}"
    print("KERNEL_OK")
</pallas_src>

<mosaic_0001>
module attributes {stable_mosaic.version = 11 : i64} {
  func.func @g_process_kernel(%arg0: memref<16x128xf32, #tpu.memory_space<vmem>>, %arg1: memref<4x8x8xf32, #tpu.memory_space<vmem>>, %arg2: memref<7x128x256xbf16, #tpu.memory_space<vmem>>, %arg3: memref<40x128xf32, #tpu.memory_space<vmem>>, %arg4: memref<8x128xf32, #tpu.memory_space<vmem>>) attributes {dimension_semantics = [], scalar_prefetch = 0 : i64, scratch_operands = 0 : i64, tpu.core_type = #tpu.core_type<tc>} {
    %c0 = arith.constant 0 : index
    %c0_0 = arith.constant 0 : index
    %0 = vector.load %arg0[%c0, %c0_0] : memref<16x128xf32, #tpu.memory_space<vmem>>, vector<16x128xf32>
    %c0_1 = arith.constant 0 : index
    %c0_2 = arith.constant 0 : index
    %c0_3 = arith.constant 0 : index
    %1 = vector.load %arg1[%c0_1, %c0_2, %c0_3] : memref<4x8x8xf32, #tpu.memory_space<vmem>>, vector<4x8x8xf32>
    %c0_4 = arith.constant 0 : index
    %c0_5 = arith.constant 0 : index
    %2 = vector.load %arg3[%c0_4, %c0_5] : memref<40x128xf32, #tpu.memory_space<vmem>>, vector<40x128xf32>
    %3 = vector.extract_strided_slice %0 {offsets = [0, 0], sizes = [8, 128], strides = [1, 1]} : vector<16x128xf32> to vector<8x128xf32>
    %4 = vector.extract_strided_slice %0 {offsets = [8, 0], sizes = [8, 128], strides = [1, 1]} : vector<16x128xf32> to vector<8x128xf32>
    %5 = vector.extract_strided_slice %1 {offsets = [0, 0, 0], sizes = [1, 8, 8], strides = [1, 1, 1]} : vector<4x8x8xf32> to vector<1x8x8xf32>
    %6 = vector.shape_cast %5 : vector<1x8x8xf32> to vector<8x8xf32>
    %7 = vector.extract_strided_slice %1 {offsets = [1, 0, 0], sizes = [1, 8, 8], strides = [1, 1, 1]} : vector<4x8x8xf32> to vector<1x8x8xf32>
    %8 = vector.shape_cast %7 : vector<1x8x8xf32> to vector<8x8xf32>
    %9 = vector.extract_strided_slice %1 {offsets = [2, 0, 0], sizes = [1, 8, 8], strides = [1, 1, 1]} : vector<4x8x8xf32> to vector<1x8x8xf32>
    %10 = vector.shape_cast %9 : vector<1x8x8xf32> to vector<8x8xf32>
    %11 = vector.extract_strided_slice %1 {offsets = [3, 0, 0], sizes = [1, 8, 8], strides = [1, 1, 1]} : vector<4x8x8xf32> to vector<1x8x8xf32>
    %12 = vector.shape_cast %11 : vector<1x8x8xf32> to vector<8x8xf32>
    %13 = arith.truncf %3 : vector<8x128xf32> to vector<8x128xbf16>
    %14 = arith.truncf %4 : vector<8x128xf32> to vector<8x128xbf16>
    %c0_6 = arith.constant 0 : index
    %c0_7 = arith.constant 0 : index
    %c0_8 = arith.constant 0 : index
    %15 = vector.load %arg2[%c0_6, %c0_7, %c0_8] : memref<7x128x256xbf16, #tpu.memory_space<vmem>>, vector<1x128x256xbf16>
    %16 = vector.shape_cast %15 : vector<1x128x256xbf16> to vector<128x256xbf16>
    %cst = arith.constant dense<0.000000e+00> : vector<8x256xf32>
    %17 = tpu.matmul %13, %16, %cst {dimension_numbers = #tpu.dot_dimension_numbers<[1], [0], [0], [1], [0, 0, 1, 1], [], []>} : vector<8x128xbf16>, vector<128x256xbf16>, vector<8x256xf32> -> vector<8x256xf32>
    %c1 = arith.constant 1 : index
    %c0_9 = arith.constant 0 : index
    %c0_10 = arith.constant 0 : index
    %18 = vector.load %arg2[%c1, %c0_9, %c0_10] : memref<7x128x256xbf16, #tpu.memory_space<vmem>>, vector<1x128x256xbf16>
    %19 = vector.shape_cast %18 : vector<1x128x256xbf16> to vector<128x256xbf16>
    %cst_11 = arith.constant dense<0.000000e+00> : vector<8x256xf32>
    %20 = tpu.matmul %14, %19, %cst_11 {dimension_numbers = #tpu.dot_dimension_numbers<[1], [0], [0], [1], [0, 0, 1, 1], [], []>} : vector<8x128xbf16>, vector<128x256xbf16>, vector<8x256xf32> -> vector<8x256xf32>
    %21 = vector.extract_strided_slice %17 {offsets = [0, 0], sizes = [8, 128], strides = [1, 1]} : vector<8x256xf32> to vector<8x128xf32>
    %22 = vector.extract_strided_slice %17 {offsets = [0, 128], sizes = [8, 128], strides = [1, 1]} : vector<8x256xf32> to vector<8x128xf32>
    %23 = vector.extract_strided_slice %20 {offsets = [0, 0], sizes = [8, 128], strides = [1, 1]} : vector<8x256xf32> to vector<8x128xf32>
    %24 = vector.extract_strided_slice %20 {offsets = [0, 128], sizes = [8, 128], strides = [1, 1]} : vector<8x256xf32> to vector<8x128xf32>
    %25 = vector.extract_strided_slice %2 {offsets = [0, 0], sizes = [1, 128], strides = [1, 1]} : vector<40x128xf32> to vector<1x128xf32>
    %26 = vector.extract_strided_slice %2 {offsets = [1, 0], sizes = [1, 128], strides = [1, 1]} : vector<40x128xf32> to vector<1x128xf32>
    %27 = vector.broadcast %25 : vector<1x128xf32> to vector<8x128xf32>
    %28 = arith.mulf %3, %27 : vector<8x128xf32>
    %cst_12 = arith.constant dense<0.000000e+00> : vector<8xf32>
    %29 = vector.multi_reduction <add>, %28, %cst_12 [1] : vector<8x128xf32> to vector<8xf32>
    %30 = vector.shape_cast %29 : vector<8xf32> to vector<8x1xf32>
    %31 = vector.broadcast %26 : vector<1x128xf32> to vector<8x128xf32>
    %32 = arith.mulf %3, %31 : vector<8x128xf32>
    %cst_13 = arith.constant dense<0.000000e+00> : vector<8xf32>
    %33 = vector.multi_reduction <add>, %32, %cst_13 [1] : vector<8x128xf32> to vector<8xf32>
    %34 = vector.shape_cast %33 : vector<8xf32> to vector<8x1xf32>
    %35 = tpu.transpose %30, [1, 0] : vector<8x1xf32> -> vector<1x8xf32>
    %36 = vector.broadcast %34 : vector<8x1xf32> to vector<8x8xf32>
    %37 = vector.broadcast %35 : vector<1x8xf32> to vector<8x8xf32>
    %38 = arith.addf %36, %37 : vector<8x8xf32>
    %39 = arith.mulf %38, %6 : vector<8x8xf32>
    %cst_14 = arith.constant 0.000000e+00 : f32
    %40 = vector.broadcast %cst_14 : f32 to vector<8x8xf32>
    %41 = arith.maximumf %39, %40 : vector<8x8xf32>
    %cst_15 = arith.constant dense<0xFF800000> : vector<8xf32>
    %42 = vector.multi_reduction <maximumf>, %41, %cst_15 [1] : vector<8x8xf32> to vector<8xf32>
    %43 = vector.shape_cast %42 : vector<8xf32> to vector<8x1xf32>
    %44 = vector.broadcast %43 : vector<8x1xf32> to vector<8x8xf32>
    %45 = arith.subf %41, %44 : vector<8x8xf32>
    %46 = math.exp %45 : vector<8x8xf32>
    %47 = arith.mulf %46, %6 : vector<8x8xf32>
    %cst_16 = arith.constant dense<0.000000e+00> : vector<8xf32>
    %48 = vector.multi_reduction <add>, %47, %cst_16 [1] : vector<8x8xf32> to vector<8xf32>
    %49 = vector.shape_cast %48 : vector<8xf32> to vector<8x1xf32>
    %cst_17 = arith.constant 1.000000e+00 : f32
    %50 = vector.broadcast %cst_17 : f32 to vector<8x1xf32>
    %51 = arith.maximumf %49, %50 : vector<8x1xf32>
    %52 = tpu.reciprocal %51 {approx = true} : vector<8x1xf32> -> vector<8x1xf32>
    %53 = vector.broadcast %52 : vector<8x1xf32> to vector<8x8xf32>
    %54 = arith.mulf %47, %53 : vector<8x8xf32>
    %55 = vector.extract_strided_slice %2 {offsets = [3, 0], sizes = [1, 128], strides = [1, 1]} : vector<40x128xf32> to vector<1x128xf32>
    %56 = vector.extract_strided_slice %2 {offsets = [4, 0], sizes = [1, 128], strides = [1, 1]} : vector<40x128xf32> to vector<1x128xf32>
    %57 = vector.broadcast %55 : vector<1x128xf32> to vector<8x128xf32>
    %58 = arith.mulf %3, %57 : vector<8x128xf32>
    %cst_18 = arith.constant dense<0.000000e+00> : vector<8xf32>
    %59 = vector.multi_reduction <add>, %58, %cst_18 [1] : vector<8x128xf32> to vector<8xf32>
    %60 = vector.shape_cast %59 : vector<8xf32> to vector<8x1xf32>
    %61 = vector.broadcast %56 : vector<1x128xf32> to vector<8x128xf32>
    %62 = arith.mulf %4, %61 : vector<8x128xf32>
    %cst_19 = arith.constant dense<0.000000e+00> : vector<8xf32>
    %63 = vector.multi_reduction <add>, %62, %cst_19 [1] : vector<8x128xf32> to vector<8xf32>
    %64 = vector.shape_cast %63 : vector<8xf32> to vector<8x1xf32>
    %65 = tpu.transpose %60, [1, 0] : vector<8x1xf32> -> vector<1x8xf32>
    %66 = vector.broadcast %64 : vector<8x1xf32> to vector<8x8xf32>
    %67 = vector.broadcast %65 : vector<1x8xf32> to vector<8x8xf32>
    %68 = arith.addf %66, %67 : vector<8x8xf32>
    %69 = arith.mulf %68, %8 : vector<8x8xf32>
    %cst_20 = arith.constant 0.000000e+00 : f32
    %70 = vector.broadcast %cst_20 : f32 to vector<8x8xf32>
    %71 = arith.maximumf %69, %70 : vector<8x8xf32>
    %cst_21 = arith.constant dense<0xFF800000> : vector<8xf32>
    %72 = vector.multi_reduction <maximumf>, %71, %cst_21 [1] : vector<8x8xf32> to vector<8xf32>
    %73 = vector.shape_cast %72 : vector<8xf32> to vector<8x1xf32>
    %74 = vector.broadcast %73 : vector<8x1xf32> to vector<8x8xf32>
    %75 = arith.subf %71, %74 : vector<8x8xf32>
    %76 = math.exp %75 : vector<8x8xf32>
    %77 = arith.mulf %76, %8 : vector<8x8xf32>
    %cst_22 = arith.constant dense<0.000000e+00> : vector<8xf32>
    %78 = vector.multi_reduction <add>, %77, %cst_22 [1] : vector<8x8xf32> to vector<8xf32>
    %79 = vector.shape_cast %78 : vector<8xf32> to vector<8x1xf32>
    %cst_23 = arith.constant 1.000000e+00 : f32
    %80 = vector.broadcast %cst_23 : f32 to vector<8x1xf32>
    %81 = arith.maximumf %79, %80 : vector<8x1xf32>
    %82 = tpu.reciprocal %81 {approx = true} : vector<8x1xf32> -> vector<8x1xf32>
    %83 = vector.broadcast %82 : vector<8x1xf32> to vector<8x8xf32>
    %84 = arith.mulf %77, %83 : vector<8x8xf32>
    %85 = vector.extract_strided_slice %2 {offsets = [6, 0], sizes = [1, 128], strides = [1, 1]} : vector<40x128xf32> to vector<1x128xf32>
    %86 = vector.extract_strided_slice %2 {offsets = [7, 0], sizes = [1, 128], strides = [1, 1]} : vector<40x128xf32> to vector<1x128xf32>
    %87 = vector.broadcast %85 : vector<1x128xf32> to vector<8x128xf32>
    %88 = arith.mulf %4, %87 : vector<8x128xf32>
    %cst_24 = arith.constant dense<0.000000e+00> : vector<8xf32>
    %89 = vector.multi_reduction <add>, %88, %cst_24 [1] : vector<8x128xf32> to vector<8xf32>
    %90 = vector.shape_cast %89 : vector<8xf32> to vector<8x1xf32>
    %91 = vector.broadcast %86 : vector<1x128xf32> to vector<8x128xf32>
    %92 = arith.mulf %4, %91 : vector<8x128xf32>
    %cst_25 = arith.constant dense<0.000000e+00> : vector<8xf32>
    %93 = vector.multi_reduction <add>, %92, %cst_25 [1] : vector<8x128xf32> to vector<8xf32>
    %94 = vector.shape_cast %93 : vector<8xf32> to vector<8x1xf32>
    %95 = tpu.transpose %90, [1, 0] : vector<8x1xf32> -> vector<1x8xf32>
    %96 = vector.broadcast %94 : vector<8x1xf32> to vector<8x8xf32>
    %97 = vector.broadcast %95 : vector<1x8xf32> to vector<8x8xf32>
    %98 = arith.addf %96, %97 : vector<8x8xf32>
    %99 = arith.mulf %98, %10 : vector<8x8xf32>
    %cst_26 = arith.constant 0.000000e+00 : f32
    %100 = vector.broadcast %cst_26 : f32 to vector<8x8xf32>
    %101 = arith.maximumf %99, %100 : vector<8x8xf32>
    %cst_27 = arith.constant dense<0xFF800000> : vector<8xf32>
    %102 = vector.multi_reduction <maximumf>, %101, %cst_27 [1] : vector<8x8xf32> to vector<8xf32>
    %103 = vector.shape_cast %102 : vector<8xf32> to vector<8x1xf32>
    %104 = vector.broadcast %103 : vector<8x1xf32> to vector<8x8xf32>
    %105 = arith.subf %101, %104 : vector<8x8xf32>
    %106 = math.exp %105 : vector<8x8xf32>
    %107 = arith.mulf %106, %10 : vector<8x8xf32>
    %cst_28 = arith.constant dense<0.000000e+00> : vector<8xf32>
    %108 = vector.multi_reduction <add>, %107, %cst_28 [1] : vector<8x8xf32> to vector<8xf32>
    %109 = vector.shape_cast %108 : vector<8xf32> to vector<8x1xf32>
    %cst_29 = arith.constant 1.000000e+00 : f32
    %110 = vector.broadcast %cst_29 : f32 to vector<8x1xf32>
    %111 = arith.maximumf %109, %110 : vector<8x1xf32>
    %112 = tpu.reciprocal %111 {approx = true} : vector<8x1xf32> -> vector<8x1xf32>
    %113 = vector.broadcast %112 : vector<8x1xf32> to vector<8x8xf32>
    %114 = arith.mulf %107, %113 : vector<8x8xf32>
    %115 = vector.extract_strided_slice %2 {offsets = [9, 0], sizes = [1, 128], strides = [1, 1]} : vector<40x128xf32> to vector<1x128xf32>
    %116 = vector.extract_strided_slice %2 {offsets = [10, 0], sizes = [1, 128], strides = [1, 1]} : vector<40x128xf32> to vector<1x128xf32>
    %117 = vector.broadcast %115 : vector<1x128xf32> to vector<8x128xf32>
    %118 = arith.mulf %4, %117 : vector<8x128xf32>
    %cst_30 = arith.constant dense<0.000000e+00> : vector<8xf32>
    %119 = vector.multi_reduction <add>, %118, %cst_30 [1] : vector<8x128xf32> to vector<8xf32>
    %120 = vector.shape_cast %119 : vector<8xf32> to vector<8x1xf32>
    %121 = vector.broadcast %116 : vector<1x128xf32> to vector<8x128xf32>
    %122 = arith.mulf %3, %121 : vector<8x128xf32>
    %cst_31 = arith.constant dense<0.000000e+00> : vector<8xf32>
    %123 = vector.multi_reduction <add>, %122, %cst_31 [1] : vector<8x128xf32> to vector<8xf32>
    %124 = vector.shape_cast %123 : vector<8xf32> to vector<8x1xf32>
    %125 = tpu.transpose %120, [1, 0] : vector<8x1xf32> -> vector<1x8xf32>
    %126 = vector.broadcast %124 : vector<8x1xf32> to vector<8x8xf32>
    %127 = vector.broadcast %125 : vector<1x8xf32> to vector<8x8xf32>
    %128 = arith.addf %126, %127 : vector<8x8xf32>
    %129 = arith.mulf %128, %12 : vector<8x8xf32>
    %cst_32 = arith.constant 0.000000e+00 : f32
    %130 = vector.broadcast %cst_32 : f32 to vector<8x8xf32>
    %131 = arith.maximumf %129, %130 : vector<8x8xf32>
    %cst_33 = arith.constant dense<0xFF800000> : vector<8xf32>
    %132 = vector.multi_reduction <maximumf>, %131, %cst_33 [1] : vector<8x8xf32> to vector<8xf32>
    %133 = vector.shape_cast %132 : vector<8xf32> to vector<8x1xf32>
    %134 = vector.broadcast %133 : vector<8x1xf32> to vector<8x8xf32>
    %135 = arith.subf %131, %134 : vector<8x8xf32>
    %136 = math.exp %135 : vector<8x8xf32>
    %137 = arith.mulf %136, %12 : vector<8x8xf32>
    %cst_34 = arith.constant dense<0.000000e+00> : vector<8xf32>
    %138 = vector.multi_reduction <add>, %137, %cst_34 [1] : vector<8x8xf32> to vector<8xf32>
    %139 = vector.shape_cast %138 : vector<8xf32> to vector<8x1xf32>
    %cst_35 = arith.constant 1.000000e+00 : f32
    %140 = vector.broadcast %cst_35 : f32 to vector<8x1xf32>
    %141 = arith.maximumf %139, %140 : vector<8x1xf32>
    %142 = tpu.reciprocal %141 {approx = true} : vector<8x1xf32> -> vector<8x1xf32>
    %143 = vector.broadcast %142 : vector<8x1xf32> to vector<8x8xf32>
    %144 = arith.mulf %137, %143 : vector<8x8xf32>
    %145 = arith.truncf %54 : vector<8x8xf32> to vector<8x8xbf16>
    %146 = arith.truncf %21 : vector<8x128xf32> to vector<8x128xbf16>
    %cst_36 = arith.constant dense<0.000000e+00> : vector<8x128xf32>
    %147 = tpu.matmul %145, %146, %cst_36 {dimension_numbers = #tpu.dot_dimension_numbers<[1], [0], [0], [1], [0, 0, 1, 1], [], []>} : vector<8x8xbf16>, vector<8x128xbf16>, vector<8x128xf32> -> vector<8x128xf32>
    %148 = arith.truncf %144 : vector<8x8xf32> to vector<8x8xbf16>
    %149 = arith.truncf %24 : vector<8x128xf32> to vector<8x128xbf16>
    %cst_37 = arith.constant dense<0.000000e+00> : vector<8x128xf32>
    %150 = tpu.matmul %148, %149, %cst_37 {dimension_numbers = #tpu.dot_dimension_numbers<[1], [0], [0], [1], [0, 0, 1, 1], [], []>} : vector<8x8xbf16>, vector<8x128xbf16>, vector<8x128xf32> -> vector<8x128xf32>
    %151 = arith.addf %147, %150 : vector<8x128xf32>
    %152 = vector.extract_strided_slice %2 {offsets = [2, 0], sizes = [1, 128], strides = [1, 1]} : vector<40x128xf32> to vector<1x128xf32>
    %153 = vector.broadcast %152 : vector<1x128xf32> to vector<8x128xf32>
    %154 = arith.addf %151, %153 : vector<8x128xf32>
    %155 = vector.extract_strided_slice %2 {offsets = [11, 0], sizes = [1, 128], strides = [1, 1]} : vector<40x128xf32> to vector<1x128xf32>
    %156 = vector.broadcast %155 : vector<1x128xf32> to vector<8x128xf32>
    %157 = arith.addf %154, %156 : vector<8x128xf32>
    %158 = arith.truncf %114 : vector<8x8xf32> to vector<8x8xbf16>
    %159 = arith.truncf %23 : vector<8x128xf32> to vector<8x128xbf16>
    %cst_38 = arith.constant dense<0.000000e+00> : vector<8x128xf32>
    %160 = tpu.matmul %158, %159, %cst_38 {dimension_numbers = #tpu.dot_dimension_numbers<[1], [0], [0], [1], [0, 0, 1, 1], [], []>} : vector<8x8xbf16>, vector<8x128xbf16>, vector<8x128xf32> -> vector<8x128xf32>
    %161 = arith.truncf %84 : vector<8x8xf32> to vector<8x8xbf16>
    %162 = arith.truncf %22 : vector<8x128xf32> to vector<8x128xbf16>
    %cst_39 = arith.constant dense<0.000000e+00> : vector<8x128xf32>
    %163 = tpu.matmul %161, %162, %cst_39 {dimension_numbers = #tpu.dot_dimension_numbers<[1], [0], [0], [1], [0, 0, 1, 1], [], []>} : vector<8x8xbf16>, vector<8x128xbf16>, vector<8x128xf32> -> vector<8x128xf32>
    %164 = arith.addf %160, %163 : vector<8x128xf32>
    %165 = vector.extract_strided_slice %2 {offsets = [5, 0], sizes = [1, 128], strides = [1, 1]} : vector<40x128xf32> to vector<1x128xf32>
    %166 = vector.broadcast %165 : vector<1x128xf32> to vector<8x128xf32>
    %167 = arith.addf %164, %166 : vector<8x128xf32>
    %168 = vector.extract_strided_slice %2 {offsets = [8, 0], sizes = [1, 128], strides = [1, 1]} : vector<40x128xf32> to vector<1x128xf32>
    %169 = vector.broadcast %168 : vector<1x128xf32> to vector<8x128xf32>
    %170 = arith.addf %167, %169 : vector<8x128xf32>
    %171 = arith.truncf %157 : vector<8x128xf32> to vector<8x128xbf16>
    %172 = arith.truncf %170 : vector<8x128xf32> to vector<8x128xbf16>
    %c2 = arith.constant 2 : index
    %c0_40 = arith.constant 0 : index
    %c0_41 = arith.constant 0 : index
    %173 = vector.load %arg2[%c2, %c0_40, %c0_41] : memref<7x128x256xbf16, #tpu.memory_space<vmem>>, vector<1x128x256xbf16>
    %174 = vector.shape_cast %173 : vector<1x128x256xbf16> to vector<128x256xbf16>
    %cst_42 = arith.constant dense<0.000000e+00> : vector<8x256xf32>
    %175 = tpu.matmul %171, %174, %cst_42 {dimension_numbers = #tpu.dot_dimension_numbers<[1], [0], [0], [1], [0, 0, 1, 1], [], []>} : vector<8x128xbf16>, vector<128x256xbf16>, vector<8x256xf32> -> vector<8x256xf32>
    %c3 = arith.constant 3 : index
    %c0_43 = arith.constant 0 : index
    %c0_44 = arith.constant 0 : index
    %176 = vector.load %arg2[%c3, %c0_43, %c0_44] : memref<7x128x256xbf16, #tpu.memory_space<vmem>>, vector<1x128x256xbf16>
    %177 = vector.shape_cast %176 : vector<1x128x256xbf16> to vector<128x256xbf16>
    %cst_45 = arith.constant dense<0.000000e+00> : vector<8x256xf32>
    %178 = tpu.matmul %172, %177, %cst_45 {dimension_numbers = #tpu.dot_dimension_numbers<[1], [0], [0], [1], [0, 0, 1, 1], [], []>} : vector<8x128xbf16>, vector<128x256xbf16>, vector<8x256xf32> -> vector<8x256xf32>
    %179 = vector.extract_strided_slice %175 {offsets = [0, 0], sizes = [8, 128], strides = [1, 1]} : vector<8x256xf32> to vector<8x128xf32>
    %180 = vector.extract_strided_slice %175 {offsets = [0, 128], sizes = [8, 128], strides = [1, 1]} : vector<8x256xf32> to vector<8x128xf32>
    %181 = vector.extract_strided_slice %178 {offsets = [0, 0], sizes = [8, 128], strides = [1, 1]} : vector<8x256xf32> to vector<8x128xf32>
    %182 = vector.extract_strided_slice %178 {offsets = [0, 128], sizes = [8, 128], strides = [1, 1]} : vector<8x256xf32> to vector<8x128xf32>
    %183 = vector.extract_strided_slice %2 {offsets = [12, 0], sizes = [1, 128], strides = [1, 1]} : vector<40x128xf32> to vector<1x128xf32>
    %184 = vector.extract_strided_slice %2 {offsets = [13, 0], sizes = [1, 128], strides = [1, 1]} : vector<40x128xf32> to vector<1x128xf32>
    %185 = vector.broadcast %183 : vector<1x128xf32> to vector<8x128xf32>
    %186 = arith.mulf %157, %185 : vector<8x128xf32>
    %cst_46 = arith.constant dense<0.000000e+00> : vector<8xf32>
    %187 = vector.multi_reduction <add>, %186, %cst_46 [1] : vector<8x128xf32> to vector<8xf32>
    %188 = vector.shape_cast %187 : vector<8xf32> to vector<8x1xf32>
    %189 = vector.broadcast %184 : vector<1x128xf32> to vector<8x128xf32>
    %190 = arith.mulf %157, %189 : vector<8x128xf32>
    %cst_47 = arith.constant dense<0.000000e+00> : vector<8xf32>
    %191 = vector.multi_reduction <add>, %190, %cst_47 [1] : vector<8x128xf32> to vector<8xf32>
    %192 = vector.shape_cast %191 : vector<8xf32> to vector<8x1xf32>
    %193 = tpu.transpose %188, [1, 0] : vector<8x1xf32> -> vector<1x8xf32>
    %194 = vector.broadcast %192 : vector<8x1xf32> to vector<8x8xf32>
    %195 = vector.broadcast %193 : vector<1x8xf32> to vector<8x8xf32>
    %196 = arith.addf %194, %195 : vector<8x8xf32>
    %197 = arith.mulf %196, %6 : vector<8x8xf32>
    %cst_48 = arith.constant 0.000000e+00 : f32
    %198 = vector.broadcast %cst_48 : f32 to vector<8x8xf32>
    %199 = arith.maximumf %197, %198 : vector<8x8xf32>
    %cst_49 = arith.constant dense<0xFF800000> : vector<8xf32>
    %200 = vector.multi_reduction <maximumf>, %199, %cst_49 [1] : vector<8x8xf32> to vector<8xf32>
    %201 = vector.shape_cast %200 : vector<8xf32> to vector<8x1xf32>
    %202 = vector.broadcast %201 : vector<8x1xf32> to vector<8x8xf32>
    %203 = arith.subf %199, %202 : vector<8x8xf32>
    %204 = math.exp %203 : vector<8x8xf32>
    %205 = arith.mulf %204, %6 : vector<8x8xf32>
    %cst_50 = arith.constant dense<0.000000e+00> : vector<8xf32>
    %206 = vector.multi_reduction <add>, %205, %cst_50 [1] : vector<8x8xf32> to vector<8xf32>
    %207 = vector.shape_cast %206 : vector<8xf32> to vector<8x1xf32>
    %cst_51 = arith.constant 1.000000e+00 : f32
    %208 = vector.broadcast %cst_51 : f32 to vector<8x1xf32>
    %209 = arith.maximumf %207, %208 : vector<8x1xf32>
    %210 = tpu.reciprocal %209 {approx = true} : vector<8x1xf32> -> vector<8x1xf32>
    %211 = vector.broadcast %210 : vector<8x1xf32> to vector<8x8xf32>
    %212 = arith.mulf %205, %211 : vector<8x8xf32>
    %213 = vector.extract_strided_slice %2 {offsets = [15, 0], sizes = [1, 128], strides = [1, 1]} : vector<40x128xf32> to vector<1x128xf32>
    %214 = vector.extract_strided_slice %2 {offsets = [16, 0], sizes = [1, 128], strides = [1, 1]} : vector<40x128xf32> to vector<1x128xf32>
    %215 = vector.broadcast %213 : vector<1x128xf32> to vector<8x128xf32>
    %216 = arith.mulf %157, %215 : vector<8x128xf32>
    %cst_52 = arith.constant dense<0.000000e+00> : vector<8xf32>
    %217 = vector.multi_reduction <add>, %216, %cst_52 [1] : vector<8x128xf32> to vector<8xf32>
    %218 = vector.shape_cast %217 : vector<8xf32> to vector<8x1xf32>
    %219 = vector.broadcast %214 : vector<1x128xf32> to vector<8x128xf32>
    %220 = arith.mulf %170, %219 : vector<8x128xf32>
    %cst_53 = arith.constant dense<0.000000e+00> : vector<8xf32>
    %221 = vector.multi_reduction <add>, %220, %cst_53 [1] : vector<8x128xf32> to vector<8xf32>
    %222 = vector.shape_cast %221 : vector<8xf32> to vector<8x1xf32>
    %223 = tpu.transpose %218, [1, 0] : vector<8x1xf32> -> vector<1x8xf32>
    %224 = vector.broadcast %222 : vector<8x1xf32> to vector<8x8xf32>
    %225 = vector.broadcast %223 : vector<1x8xf32> to vector<8x8xf32>
    %226 = arith.addf %224, %225 : vector<8x8xf32>
    %227 = arith.mulf %226, %8 : vector<8x8xf32>
    %cst_54 = arith.constant 0.000000e+00 : f32
    %228 = vector.broadcast %cst_54 : f32 to vector<8x8xf32>
    %229 = arith.maximumf %227, %228 : vector<8x8xf32>
    %cst_55 = arith.constant dense<0xFF800000> : vector<8xf32>
    %230 = vector.multi_reduction <maximumf>, %229, %cst_55 [1] : vector<8x8xf32> to vector<8xf32>
    %231 = vector.shape_cast %230 : vector<8xf32> to vector<8x1xf32>
    %232 = vector.broadcast %231 : vector<8x1xf32> to vector<8x8xf32>
    %233 = arith.subf %229, %232 : vector<8x8xf32>
    %234 = math.exp %233 : vector<8x8xf32>
    %235 = arith.mulf %234, %8 : vector<8x8xf32>
    %cst_56 = arith.constant dense<0.000000e+00> : vector<8xf32>
    %236 = vector.multi_reduction <add>, %235, %cst_56 [1] : vector<8x8xf32> to vector<8xf32>
    %237 = vector.shape_cast %236 : vector<8xf32> to vector<8x1xf32>
    %cst_57 = arith.constant 1.000000e+00 : f32
    %238 = vector.broadcast %cst_57 : f32 to vector<8x1xf32>
    %239 = arith.maximumf %237, %238 : vector<8x1xf32>
    %240 = tpu.reciprocal %239 {approx = true} : vector<8x1xf32> -> vector<8x1xf32>
    %241 = vector.broadcast %240 : vector<8x1xf32> to vector<8x8xf32>
    %242 = arith.mulf %235, %241 : vector<8x8xf32>
    %243 = vector.extract_strided_slice %2 {offsets = [18, 0], sizes = [1, 128], strides = [1, 1]} : vector<40x128xf32> to vector<1x128xf32>
    %244 = vector.extract_strided_slice %2 {offsets = [19, 0], sizes = [1, 128], strides = [1, 1]} : vector<40x128xf32> to vector<1x128xf32>
    %245 = vector.broadcast %243 : vector<1x128xf32> to vector<8x128xf32>
    %246 = arith.mulf %170, %245 : vector<8x128xf32>
    %cst_58 = arith.constant dense<0.000000e+00> : vector<8xf32>
    %247 = vector.multi_reduction <add>, %246, %cst_58 [1] : vector<8x128xf32> to vector<8xf32>
    %248 = vector.shape_cast %247 : vector<8xf32> to vector<8x1xf32>
    %249 = vector.broadcast %244 : vector<1x128xf32> to vector<8x128xf32>
    %250 = arith.mulf %170, %249 : vector<8x128xf32>
    %cst_59 = arith.constant dense<0.000000e+00> : vector<8xf32>
    %251 = vector.multi_reduction <add>, %250, %cst_59 [1] : vector<8x128xf32> to vector<8xf32>
    %252 = vector.shape_cast %251 : vector<8xf32> to vector<8x1xf32>
    %253 = tpu.transpose %248, [1, 0] : vector<8x1xf32> -> vector<1x8xf32>
    %254 = vector.broadcast %252 : vector<8x1xf32> to vector<8x8xf32>
    %255 = vector.broadcast %253 : vector<1x8xf32> to vector<8x8xf32>
    %256 = arith.addf %254, %255 : vector<8x8xf32>
    %257 = arith.mulf %256, %10 : vector<8x8xf32>
    %cst_60 = arith.constant 0.000000e+00 : f32
    %258 = vector.broadcast %cst_60 : f32 to vector<8x8xf32>
    %259 = arith.maximumf %257, %258 : vector<8x8xf32>
    %cst_61 = arith.constant dense<0xFF800000> : vector<8xf32>
    %260 = vector.multi_reduction <maximumf>, %259, %cst_61 [1] : vector<8x8xf32> to vector<8xf32>
    %261 = vector.shape_cast %260 : vector<8xf32> to vector<8x1xf32>
    %262 = vector.broadcast %261 : vector<8x1xf32> to vector<8x8xf32>
    %263 = arith.subf %259, %262 : vector<8x8xf32>
    %264 = math.exp %263 : vector<8x8xf32>
    %265 = arith.mulf %264, %10 : vector<8x8xf32>
    %cst_62 = arith.constant dense<0.000000e+00> : vector<8xf32>
    %266 = vector.multi_reduction <add>, %265, %cst_62 [1] : vector<8x8xf32> to vector<8xf32>
    %267 = vector.shape_cast %266 : vector<8xf32> to vector<8x1xf32>
    %cst_63 = arith.constant 1.000000e+00 : f32
    %268 = vector.broadcast %cst_63 : f32 to vector<8x1xf32>
    %269 = arith.maximumf %267, %268 : vector<8x1xf32>
    %270 = tpu.reciprocal %269 {approx = true} : vector<8x1xf32> -> vector<8x1xf32>
    %271 = vector.broadcast %270 : vector<8x1xf32> to vector<8x8xf32>
    %272 = arith.mulf %265, %271 : vector<8x8xf32>
    %273 = vector.extract_strided_slice %2 {offsets = [21, 0], sizes = [1, 128], strides = [1, 1]} : vector<40x128xf32> to vector<1x128xf32>
    %274 = vector.extract_strided_slice %2 {offsets = [22, 0], sizes = [1, 128], strides = [1, 1]} : vector<40x128xf32> to vector<1x128xf32>
    %275 = vector.broadcast %273 : vector<1x128xf32> to vector<8x128xf32>
    %276 = arith.mulf %170, %275 : vector<8x128xf32>
    %cst_64 = arith.constant dense<0.000000e+00> : vector<8xf32>
    %277 = vector.multi_reduction <add>, %276, %cst_64 [1] : vector<8x128xf32> to vector<8xf32>
    %278 = vector.shape_cast %277 : vector<8xf32> to vector<8x1xf32>
    %279 = vector.broadcast %274 : vector<1x128xf32> to vector<8x128xf32>
    %280 = arith.mulf %157, %279 : vector<8x128xf32>
    %cst_65 = arith.constant dense<0.000000e+00> : vector<8xf32>
    %281 = vector.multi_reduction <add>, %280, %cst_65 [1] : vector<8x128xf32> to vector<8xf32>
    %282 = vector.shape_cast %281 : vector<8xf32> to vector<8x1xf32>
    %283 = tpu.transpose %278, [1, 0] : vector<8x1xf32> -> vector<1x8xf32>
    %284 = vector.broadcast %282 : vector<8x1xf32> to vector<8x8xf32>
    %285 = vector.broadcast %283 : vector<1x8xf32> to vector<8x8xf32>
    %286 = arith.addf %284, %285 : vector<8x8xf32>
    %287 = arith.mulf %286, %12 : vector<8x8xf32>
    %cst_66 = arith.constant 0.000000e+00 : f32
    %288 = vector.broadcast %cst_66 : f32 to vector<8x8xf32>
    %289 = arith.maximumf %287, %288 : vector<8x8xf32>
    %cst_67 = arith.constant dense<0xFF800000> : vector<8xf32>
    %290 = vector.multi_reduction <maximumf>, %289, %cst_67 [1] : vector<8x8xf32> to vector<8xf32>
    %291 = vector.shape_cast %290 : vector<8xf32> to vector<8x1xf32>
    %292 = vector.broadcast %291 : vector<8x1xf32> to vector<8x8xf32>
    %293 = arith.subf %289, %292 : vector<8x8xf32>
    %294 = math.exp %293 : vector<8x8xf32>
    %295 = arith.mulf %294, %12 : vector<8x8xf32>
    %cst_68 = arith.constant dense<0.000000e+00> : vector<8xf32>
    %296 = vector.multi_reduction <add>, %295, %cst_68 [1] : vector<8x8xf32> to vector<8xf32>
    %297 = vector.shape_cast %296 : vector<8xf32> to vector<8x1xf32>
    %cst_69 = arith.constant 1.000000e+00 : f32
    %298 = vector.broadcast %cst_69 : f32 to vector<8x1xf32>
    %299 = arith.maximumf %297, %298 : vector<8x1xf32>
    %300 = tpu.reciprocal %299 {approx = true} : vector<8x1xf32> -> vector<8x1xf32>
    %301 = vector.broadcast %300 : vector<8x1xf32> to vector<8x8xf32>
    %302 = arith.mulf %295, %301 : vector<8x8xf32>
    %303 = arith.truncf %212 : vector<8x8xf32> to vector<8x8xbf16>
    %304 = arith.truncf %179 : vector<8x128xf32> to vector<8x128xbf16>
    %cst_70 = arith.constant dense<0.000000e+00> : vector<8x128xf32>
    %305 = tpu.matmul %303, %304, %cst_70 {dimension_numbers = #tpu.dot_dimension_numbers<[1], [0], [0], [1], [0, 0, 1, 1], [], []>} : vector<8x8xbf16>, vector<8x128xbf16>, vector<8x128xf32> -> vector<8x128xf32>
    %306 = arith.truncf %302 : vector<8x8xf32> to vector<8x8xbf16>
    %307 = arith.truncf %182 : vector<8x128xf32> to vector<8x128xbf16>
    %cst_71 = arith.constant dense<0.000000e+00> : vector<8x128xf32>
    %308 = tpu.matmul %306, %307, %cst_71 {dimension_numbers = #tpu.dot_dimension_numbers<[1], [0], [0], [1], [0, 0, 1, 1], [], []>} : vector<8x8xbf16>, vector<8x128xbf16>, vector<8x128xf32> -> vector<8x128xf32>
    %309 = arith.addf %305, %308 : vector<8x128xf32>
    %310 = vector.extract_strided_slice %2 {offsets = [14, 0], sizes = [1, 128], strides = [1, 1]} : vector<40x128xf32> to vector<1x128xf32>
    %311 = vector.broadcast %310 : vector<1x128xf32> to vector<8x128xf32>
    %312 = arith.addf %309, %311 : vector<8x128xf32>
    %313 = vector.extract_strided_slice %2 {offsets = [23, 0], sizes = [1, 128], strides = [1, 1]} : vector<40x128xf32> to vector<1x128xf32>
    %314 = vector.broadcast %313 : vector<1x128xf32> to vector<8x128xf32>
    %315 = arith.addf %312, %314 : vector<8x128xf32>
    %316 = arith.truncf %272 : vector<8x8xf32> to vector<8x8xbf16>
    %317 = arith.truncf %181 : vector<8x128xf32> to vector<8x128xbf16>
    %cst_72 = arith.constant dense<0.000000e+00> : vector<8x128xf32>
    %318 = tpu.matmul %316, %317, %cst_72 {dimension_numbers = #tpu.dot_dimension_numbers<[1], [0], [0], [1], [0, 0, 1, 1], [], []>} : vector<8x8xbf16>, vector<8x128xbf16>, vector<8x128xf32> -> vector<8x128xf32>
    %319 = arith.truncf %242 : vector<8x8xf32> to vector<8x8xbf16>
    %320 = arith.truncf %180 : vector<8x128xf32> to vector<8x128xbf16>
    %cst_73 = arith.constant dense<0.000000e+00> : vector<8x128xf32>
    %321 = tpu.matmul %319, %320, %cst_73 {dimension_numbers = #tpu.dot_dimension_numbers<[1], [0], [0], [1], [0, 0, 1, 1], [], []>} : vector<8x8xbf16>, vector<8x128xbf16>, vector<8x128xf32> -> vector<8x128xf32>
    %322 = arith.addf %318, %321 : vector<8x128xf32>
    %323 = vector.extract_strided_slice %2 {offsets = [17, 0], sizes = [1, 128], strides = [1, 1]} : vector<40x128xf32> to vector<1x128xf32>
    %324 = vector.broadcast %323 : vector<1x128xf32> to vector<8x128xf32>
    %325 = arith.addf %322, %324 : vector<8x128xf32>
    %326 = vector.extract_strided_slice %2 {offsets = [20, 0], sizes = [1, 128], strides = [1, 1]} : vector<40x128xf32> to vector<1x128xf32>
    %327 = vector.broadcast %326 : vector<1x128xf32> to vector<8x128xf32>
    %328 = arith.addf %325, %327 : vector<8x128xf32>
    %329 = arith.truncf %315 : vector<8x128xf32> to vector<8x128xbf16>
    %330 = arith.truncf %328 : vector<8x128xf32> to vector<8x128xbf16>
    %c4 = arith.constant 4 : index
    %c0_74 = arith.constant 0 : index
    %c0_75 = arith.constant 0 : index
    %331 = vector.load %arg2[%c4, %c0_74, %c0_75] : memref<7x128x256xbf16, #tpu.memory_space<vmem>>, vector<1x128x256xbf16>
    %332 = vector.shape_cast %331 : vector<1x128x256xbf16> to vector<128x256xbf16>
    %cst_76 = arith.constant dense<0.000000e+00> : vector<8x256xf32>
    %333 = tpu.matmul %329, %332, %cst_76 {dimension_numbers = #tpu.dot_dimension_numbers<[1], [0], [0], [1], [0, 0, 1, 1], [], []>} : vector<8x128xbf16>, vector<128x256xbf16>, vector<8x256xf32> -> vector<8x256xf32>
    %c5 = arith.constant 5 : index
    %c0_77 = arith.constant 0 : index
    %c0_78 = arith.constant 0 : index
    %334 = vector.load %arg2[%c5, %c0_77, %c0_78] : memref<7x128x256xbf16, #tpu.memory_space<vmem>>, vector<1x128x256xbf16>
    %335 = vector.shape_cast %334 : vector<1x128x256xbf16> to vector<128x256xbf16>
    %cst_79 = arith.constant dense<0.000000e+00> : vector<8x256xf32>
    %336 = tpu.matmul %330, %335, %cst_79 {dimension_numbers = #tpu.dot_dimension_numbers<[1], [0], [0], [1], [0, 0, 1, 1], [], []>} : vector<8x128xbf16>, vector<128x256xbf16>, vector<8x256xf32> -> vector<8x256xf32>
    %337 = vector.extract_strided_slice %333 {offsets = [0, 0], sizes = [8, 128], strides = [1, 1]} : vector<8x256xf32> to vector<8x128xf32>
    %338 = vector.extract_strided_slice %333 {offsets = [0, 128], sizes = [8, 128], strides = [1, 1]} : vector<8x256xf32> to vector<8x128xf32>
    %339 = vector.extract_strided_slice %336 {offsets = [0, 0], sizes = [8, 128], strides = [1, 1]} : vector<8x256xf32> to vector<8x128xf32>
    %340 = vector.extract_strided_slice %336 {offsets = [0, 128], sizes = [8, 128], strides = [1, 1]} : vector<8x256xf32> to vector<8x128xf32>
    %341 = vector.extract_strided_slice %2 {offsets = [24, 0], sizes = [1, 128], strides = [1, 1]} : vector<40x128xf32> to vector<1x128xf32>
    %342 = vector.extract_strided_slice %2 {offsets = [25, 0], sizes = [1, 128], strides = [1, 1]} : vector<40x128xf32> to vector<1x128xf32>
    %343 = vector.broadcast %341 : vector<1x128xf32> to vector<8x128xf32>
    %344 = arith.mulf %315, %343 : vector<8x128xf32>
    %cst_80 = arith.constant dense<0.000000e+00> : vector<8xf32>
    %345 = vector.multi_reduction <add>, %344, %cst_80 [1] : vector<8x128xf32> to vector<8xf32>
    %346 = vector.shape_cast %345 : vector<8xf32> to vector<8x1xf32>
    %347 = vector.broadcast %342 : vector<1x128xf32> to vector<8x128xf32>
    %348 = arith.mulf %315, %347 : vector<8x128xf32>
    %cst_81 = arith.constant dense<0.000000e+00> : vector<8xf32>
    %349 = vector.multi_reduction <add>, %348, %cst_81 [1] : vector<8x128xf32> to vector<8xf32>
    %350 = vector.shape_cast %349 : vector<8xf32> to vector<8x1xf32>
    %351 = tpu.transpose %346, [1, 0] : vector<8x1xf32> -> vector<1x8xf32>
    %352 = vector.broadcast %350 : vector<8x1xf32> to vector<8x8xf32>
    %353 = vector.broadcast %351 : vector<1x8xf32> to vector<8x8xf32>
    %354 = arith.addf %352, %353 : vector<8x8xf32>
    %355 = arith.mulf %354, %6 : vector<8x8xf32>
    %cst_82 = arith.constant 0.000000e+00 : f32
    %356 = vector.broadcast %cst_82 : f32 to vector<8x8xf32>
    %357 = arith.maximumf %355, %356 : vector<8x8xf32>
    %cst_83 = arith.constant dense<0xFF800000> : vector<8xf32>
    %358 = vector.multi_reduction <maximumf>, %357, %cst_83 [1] : vector<8x8xf32> to vector<8xf32>
    %359 = vector.shape_cast %358 : vector<8xf32> to vector<8x1xf32>
    %360 = vector.broadcast %359 : vector<8x1xf32> to vector<8x8xf32>
    %361 = arith.subf %357, %360 : vector<8x8xf32>
    %362 = math.exp %361 : vector<8x8xf32>
    %363 = arith.mulf %362, %6 : vector<8x8xf32>
    %cst_84 = arith.constant dense<0.000000e+00> : vector<8xf32>
    %364 = vector.multi_reduction <add>, %363, %cst_84 [1] : vector<8x8xf32> to vector<8xf32>
    %365 = vector.shape_cast %364 : vector<8xf32> to vector<8x1xf32>
    %cst_85 = arith.constant 1.000000e+00 : f32
    %366 = vector.broadcast %cst_85 : f32 to vector<8x1xf32>
    %367 = arith.maximumf %365, %366 : vector<8x1xf32>
    %368 = tpu.reciprocal %367 {approx = true} : vector<8x1xf32> -> vector<8x1xf32>
    %369 = vector.broadcast %368 : vector<8x1xf32> to vector<8x8xf32>
    %370 = arith.mulf %363, %369 : vector<8x8xf32>
    %371 = vector.extract_strided_slice %2 {offsets = [27, 0], sizes = [1, 128], strides = [1, 1]} : vector<40x128xf32> to vector<1x128xf32>
    %372 = vector.extract_strided_slice %2 {offsets = [28, 0], sizes = [1, 128], strides = [1, 1]} : vector<40x128xf32> to vector<1x128xf32>
    %373 = vector.broadcast %371 : vector<1x128xf32> to vector<8x128xf32>
    %374 = arith.mulf %315, %373 : vector<8x128xf32>
    %cst_86 = arith.constant dense<0.000000e+00> : vector<8xf32>
    %375 = vector.multi_reduction <add>, %374, %cst_86 [1] : vector<8x128xf32> to vector<8xf32>
    %376 = vector.shape_cast %375 : vector<8xf32> to vector<8x1xf32>
    %377 = vector.broadcast %372 : vector<1x128xf32> to vector<8x128xf32>
    %378 = arith.mulf %328, %377 : vector<8x128xf32>
    %cst_87 = arith.constant dense<0.000000e+00> : vector<8xf32>
    %379 = vector.multi_reduction <add>, %378, %cst_87 [1] : vector<8x128xf32> to vector<8xf32>
    %380 = vector.shape_cast %379 : vector<8xf32> to vector<8x1xf32>
    %381 = tpu.transpose %376, [1, 0] : vector<8x1xf32> -> vector<1x8xf32>
    %382 = vector.broadcast %380 : vector<8x1xf32> to vector<8x8xf32>
    %383 = vector.broadcast %381 : vector<1x8xf32> to vector<8x8xf32>
    %384 = arith.addf %382, %383 : vector<8x8xf32>
    %385 = arith.mulf %384, %8 : vector<8x8xf32>
    %cst_88 = arith.constant 0.000000e+00 : f32
    %386 = vector.broadcast %cst_88 : f32 to vector<8x8xf32>
    %387 = arith.maximumf %385, %386 : vector<8x8xf32>
    %cst_89 = arith.constant dense<0xFF800000> : vector<8xf32>
    %388 = vector.multi_reduction <maximumf>, %387, %cst_89 [1] : vector<8x8xf32> to vector<8xf32>
    %389 = vector.shape_cast %388 : vector<8xf32> to vector<8x1xf32>
    %390 = vector.broadcast %389 : vector<8x1xf32> to vector<8x8xf32>
    %391 = arith.subf %387, %390 : vector<8x8xf32>
    %392 = math.exp %391 : vector<8x8xf32>
    %393 = arith.mulf %392, %8 : vector<8x8xf32>
    %cst_90 = arith.constant dense<0.000000e+00> : vector<8xf32>
    %394 = vector.multi_reduction <add>, %393, %cst_90 [1] : vector<8x8xf32> to vector<8xf32>
    %395 = vector.shape_cast %394 : vector<8xf32> to vector<8x1xf32>
    %cst_91 = arith.constant 1.000000e+00 : f32
    %396 = vector.broadcast %cst_91 : f32 to vector<8x1xf32>
    %397 = arith.maximumf %395, %396 : vector<8x1xf32>
    %398 = tpu.reciprocal %397 {approx = true} : vector<8x1xf32> -> vector<8x1xf32>
    %399 = vector.broadcast %398 : vector<8x1xf32> to vector<8x8xf32>
    %400 = arith.mulf %393, %399 : vector<8x8xf32>
    %401 = vector.extract_strided_slice %2 {offsets = [30, 0], sizes = [1, 128], strides = [1, 1]} : vector<40x128xf32> to vector<1x128xf32>
    %402 = vector.extract_strided_slice %2 {offsets = [31, 0], sizes = [1, 128], strides = [1, 1]} : vector<40x128xf32> to vector<1x128xf32>
    %403 = vector.broadcast %401 : vector<1x128xf32> to vector<8x128xf32>
    %404 = arith.mulf %328, %403 : vector<8x128xf32>
    %cst_92 = arith.constant dense<0.000000e+00> : vector<8xf32>
    %405 = vector.multi_reduction <add>, %404, %cst_92 [1] : vector<8x128xf32> to vector<8xf32>
    %406 = vector.shape_cast %405 : vector<8xf32> to vector<8x1xf32>
    %407 = vector.broadcast %402 : vector<1x128xf32> to vector<8x128xf32>
    %408 = arith.mulf %328, %407 : vector<8x128xf32>
    %cst_93 = arith.constant dense<0.000000e+00> : vector<8xf32>
    %409 = vector.multi_reduction <add>, %408, %cst_93 [1] : vector<8x128xf32> to vector<8xf32>
    %410 = vector.shape_cast %409 : vector<8xf32> to vector<8x1xf32>
    %411 = tpu.transpose %406, [1, 0] : vector<8x1xf32> -> vector<1x8xf32>
    %412 = vector.broadcast %410 : vector<8x1xf32> to vector<8x8xf32>
    %413 = vector.broadcast %411 : vector<1x8xf32> to vector<8x8xf32>
    %414 = arith.addf %412, %413 : vector<8x8xf32>
    %415 = arith.mulf %414, %10 : vector<8x8xf32>
    %cst_94 = arith.constant 0.000000e+00 : f32
    %416 = vector.broadcast %cst_94 : f32 to vector<8x8xf32>
    %417 = arith.maximumf %415, %416 : vector<8x8xf32>
    %cst_95 = arith.constant dense<0xFF800000> : vector<8xf32>
    %418 = vector.multi_reduction <maximumf>, %417, %cst_95 [1] : vector<8x8xf32> to vector<8xf32>
    %419 = vector.shape_cast %418 : vector<8xf32> to vector<8x1xf32>
    %420 = vector.broadcast %419 : vector<8x1xf32> to vector<8x8xf32>
    %421 = arith.subf %417, %420 : vector<8x8xf32>
    %422 = math.exp %421 : vector<8x8xf32>
    %423 = arith.mulf %422, %10 : vector<8x8xf32>
    %cst_96 = arith.constant dense<0.000000e+00> : vector<8xf32>
    %424 = vector.multi_reduction <add>, %423, %cst_96 [1] : vector<8x8xf32> to vector<8xf32>
    %425 = vector.shape_cast %424 : vector<8xf32> to vector<8x1xf32>
    %cst_97 = arith.constant 1.000000e+00 : f32
    %426 = vector.broadcast %cst_97 : f32 to vector<8x1xf32>
    %427 = arith.maximumf %425, %426 : vector<8x1xf32>
    %428 = tpu.reciprocal %427 {approx = true} : vector<8x1xf32> -> vector<8x1xf32>
    %429 = vector.broadcast %428 : vector<8x1xf32> to vector<8x8xf32>
    %430 = arith.mulf %423, %429 : vector<8x8xf32>
    %431 = vector.extract_strided_slice %2 {offsets = [33, 0], sizes = [1, 128], strides = [1, 1]} : vector<40x128xf32> to vector<1x128xf32>
    %432 = vector.extract_strided_slice %2 {offsets = [34, 0], sizes = [1, 128], strides = [1, 1]} : vector<40x128xf32> to vector<1x128xf32>
    %433 = vector.broadcast %431 : vector<1x128xf32> to vector<8x128xf32>
    %434 = arith.mulf %328, %433 : vector<8x128xf32>
    %cst_98 = arith.constant dense<0.000000e+00> : vector<8xf32>
    %435 = vector.multi_reduction <add>, %434, %cst_98 [1] : vector<8x128xf32> to vector<8xf32>
    %436 = vector.shape_cast %435 : vector<8xf32> to vector<8x1xf32>
    %437 = vector.broadcast %432 : vector<1x128xf32> to vector<8x128xf32>
    %438 = arith.mulf %315, %437 : vector<8x128xf32>
    %cst_99 = arith.constant dense<0.000000e+00> : vector<8xf32>
    %439 = vector.multi_reduction <add>, %438, %cst_99 [1] : vector<8x128xf32> to vector<8xf32>
    %440 = vector.shape_cast %439 : vector<8xf32> to vector<8x1xf32>
    %441 = tpu.transpose %436, [1, 0] : vector<8x1xf32> -> vector<1x8xf32>
    %442 = vector.broadcast %440 : vector<8x1xf32> to vector<8x8xf32>
    %443 = vector.broadcast %441 : vector<1x8xf32> to vector<8x8xf32>
    %444 = arith.addf %442, %443 : vector<8x8xf32>
    %445 = arith.mulf %444, %12 : vector<8x8xf32>
    %cst_100 = arith.constant 0.000000e+00 : f32
    %446 = vector.broadcast %cst_100 : f32 to vector<8x8xf32>
    %447 = arith.maximumf %445, %446 : vector<8x8xf32>
    %cst_101 = arith.constant dense<0xFF800000> : vector<8xf32>
    %448 = vector.multi_reduction <maximumf>, %447, %cst_101 [1] : vector<8x8xf32> to vector<8xf32>
    %449 = vector.shape_cast %448 : vector<8xf32> to vector<8x1xf32>
    %450 = vector.broadcast %449 : vector<8x1xf32> to vector<8x8xf32>
    %451 = arith.subf %447, %450 : vector<8x8xf32>
    %452 = math.exp %451 : vector<8x8xf32>
    %453 = arith.mulf %452, %12 : vector<8x8xf32>
    %cst_102 = arith.constant dense<0.000000e+00> : vector<8xf32>
    %454 = vector.multi_reduction <add>, %453, %cst_102 [1] : vector<8x8xf32> to vector<8xf32>
    %455 = vector.shape_cast %454 : vector<8xf32> to vector<8x1xf32>
    %cst_103 = arith.constant 1.000000e+00 : f32
    %456 = vector.broadcast %cst_103 : f32 to vector<8x1xf32>
    %457 = arith.maximumf %455, %456 : vector<8x1xf32>
    %458 = tpu.reciprocal %457 {approx = true} : vector<8x1xf32> -> vector<8x1xf32>
    %459 = vector.broadcast %458 : vector<8x1xf32> to vector<8x8xf32>
    %460 = arith.mulf %453, %459 : vector<8x8xf32>
    %461 = arith.truncf %370 : vector<8x8xf32> to vector<8x8xbf16>
    %462 = arith.truncf %337 : vector<8x128xf32> to vector<8x128xbf16>
    %cst_104 = arith.constant dense<0.000000e+00> : vector<8x128xf32>
    %463 = tpu.matmul %461, %462, %cst_104 {dimension_numbers = #tpu.dot_dimension_numbers<[1], [0], [0], [1], [0, 0, 1, 1], [], []>} : vector<8x8xbf16>, vector<8x128xbf16>, vector<8x128xf32> -> vector<8x128xf32>
    %464 = arith.truncf %460 : vector<8x8xf32> to vector<8x8xbf16>
    %465 = arith.truncf %340 : vector<8x128xf32> to vector<8x128xbf16>
    %cst_105 = arith.constant dense<0.000000e+00> : vector<8x128xf32>
    %466 = tpu.matmul %464, %465, %cst_105 {dimension_numbers = #tpu.dot_dimension_numbers<[1], [0], [0], [1], [0, 0, 1, 1], [], []>} : vector<8x8xbf16>, vector<8x128xbf16>, vector<8x128xf32> -> vector<8x128xf32>
    %467 = arith.addf %463, %466 : vector<8x128xf32>
    %468 = vector.extract_strided_slice %2 {offsets = [26, 0], sizes = [1, 128], strides = [1, 1]} : vector<40x128xf32> to vector<1x128xf32>
    %469 = vector.broadcast %468 : vector<1x128xf32> to vector<8x128xf32>
    %470 = arith.addf %467, %469 : vector<8x128xf32>
    %471 = vector.extract_strided_slice %2 {offsets = [35, 0], sizes = [1, 128], strides = [1, 1]} : vector<40x128xf32> to vector<1x128xf32>
    %472 = vector.broadcast %471 : vector<1x128xf32> to vector<8x128xf32>
    %473 = arith.addf %470, %472 : vector<8x128xf32>
    %474 = arith.truncf %430 : vector<8x8xf32> to vector<8x8xbf16>
    %475 = arith.truncf %339 : vector<8x128xf32> to vector<8x128xbf16>
    %cst_106 = arith.constant dense<0.000000e+00> : vector<8x128xf32>
    %476 = tpu.matmul %474, %475, %cst_106 {dimension_numbers = #tpu.dot_dimension_numbers<[1], [0], [0], [1], [0, 0, 1, 1], [], []>} : vector<8x8xbf16>, vector<8x128xbf16>, vector<8x128xf32> -> vector<8x128xf32>
    %477 = arith.truncf %400 : vector<8x8xf32> to vector<8x8xbf16>
    %478 = arith.truncf %338 : vector<8x128xf32> to vector<8x128xbf16>
    %cst_107 = arith.constant dense<0.000000e+00> : vector<8x128xf32>
    %479 = tpu.matmul %477, %478, %cst_107 {dimension_numbers = #tpu.dot_dimension_numbers<[1], [0], [0], [1], [0, 0, 1, 1], [], []>} : vector<8x8xbf16>, vector<8x128xbf16>, vector<8x128xf32> -> vector<8x128xf32>
    %480 = arith.addf %476, %479 : vector<8x128xf32>
    %481 = vector.extract_strided_slice %2 {offsets = [29, 0], sizes = [1, 128], strides = [1, 1]} : vector<40x128xf32> to vector<1x128xf32>
    %482 = vector.broadcast %481 : vector<1x128xf32> to vector<8x128xf32>
    %483 = arith.addf %480, %482 : vector<8x128xf32>
    %484 = vector.extract_strided_slice %2 {offsets = [32, 0], sizes = [1, 128], strides = [1, 1]} : vector<40x128xf32> to vector<1x128xf32>
    %485 = vector.broadcast %484 : vector<1x128xf32> to vector<8x128xf32>
    %486 = arith.addf %483, %485 : vector<8x128xf32>
    %cst_108 = arith.constant dense<0.000000e+00> : vector<128xf32>
    %487 = vector.multi_reduction <add>, %473, %cst_108 [0] : vector<8x128xf32> to vector<128xf32>
    %488 = vector.shape_cast %487 : vector<128xf32> to vector<1x128xf32>
    %cst_109 = arith.constant dense<0.000000e+00> : vector<128xf32>
    %489 = vector.multi_reduction <add>, %486, %cst_109 [0] : vector<8x128xf32> to vector<128xf32>
    %490 = vector.shape_cast %489 : vector<128xf32> to vector<1x128xf32>
    %491 = arith.addf %488, %490 : vector<1x128xf32>
    %cst_110 = arith.constant 6.250000e-02 : f32
    %492 = vector.broadcast %cst_110 : f32 to vector<1x128xf32>
    %493 = arith.mulf %491, %492 : vector<1x128xf32>
    %c6 = arith.constant 6 : index
    %c0_111 = arith.constant 0 : index
    %c0_112 = arith.constant 0 : index
    %494 = vector.load %arg2[%c6, %c0_111, %c0_112] : memref<7x128x256xbf16, #tpu.memory_space<vmem>>, vector<1x128x256xbf16>
    %495 = vector.shape_cast %494 : vector<1x128x256xbf16> to vector<128x256xbf16>
    %496 = vector.extract_strided_slice %495 {offsets = [0, 0], sizes = [128, 128], strides = [1, 1]} : vector<128x256xbf16> to vector<128x128xbf16>
    %497 = vector.extract_strided_slice %2 {offsets = [36, 0], sizes = [1, 128], strides = [1, 1]} : vector<40x128xf32> to vector<1x128xf32>
    %498 = arith.truncf %493 : vector<1x128xf32> to vector<1x128xbf16>
    %cst_113 = arith.constant dense<0.000000e+00> : vector<1x128xf32>
    %499 = tpu.matmul %498, %496, %cst_113 {dimension_numbers = #tpu.dot_dimension_numbers<[1], [0], [0], [1], [0, 0, 1, 1], [], []>} : vector<1x128xbf16>, vector<128x128xbf16>, vector<1x128xf32> -> vector<1x128xf32>
    %500 = arith.addf %499, %497 : vector<1x128xf32>
    %501 = vector.shape_cast %500 : vector<1x128xf32> to vector<1x128xf32>
    %502 = vector.broadcast %501 : vector<1x128xf32> to vector<8x128xf32>
    %c0_114 = arith.constant 0 : index
    %c0_115 = arith.constant 0 : index
    %503 = vector.load %arg4[%c0_114, %c0_115] : memref<8x128xf32, #tpu.memory_space<vmem>>, vector<8x128xf32>
    tpu.vector_store %arg4[%c0_114, %c0_115], %502 {strides = array<i32>} : memref<8x128xf32, #tpu.memory_space<vmem>>, vector<8x128xf32>,
    return
  }
}

</mosaic_0001>

<llo_original>
// kernel: tpu_custom_call.1
$region0: #{tpu_custom_call.1}
  #allocation0 [shape = 'u32[]', space=smem, size = 0x4, offset = 0x4, fixed_abs, tag = 'smem constant byte address 0x4 - core index']
  #allocation1 [shape = 'u32[144,128]{1,0:T(1,128)}', space=vmem, size = 0x12000, scoped, tag = 'internal scratch']
  %s0 = inlined_call_operand.hbm [shape: f32[16,128], index: 0, kind: input, shape index: {}]
  %s1 = inlined_call_operand.hbm [shape: f32[4,8,8], index: 1, kind: input, shape index: {}]
  %s2 = inlined_call_operand.hbm [shape: bf16[7,128,256], index: 2, kind: input, shape index: {}]
  %s3 = inlined_call_operand.hbm [shape: f32[40,128], index: 3, kind: input, shape index: {}]
  %s4 = inlined_call_operand.hbm [shape: f32[8,128], index: 4, kind: output, shape index: {}]
  %s5 = sld [smem:[#allocation0]]
  $region42: #{tpu_custom_call.1} parent=0
    _
  %s7 = ssub.s32 1, %s5
  %s8 = scalar_select 0, %s7, %s5
  $region1: #{tpu_custom_call.1} parent=0
    #allocation2 [shape = 'u8[8192]{0}', space=vmem, size = 0x2000, scoped, tag = 'input window, operand 0, single buffered']
    #allocation3 [shape = 's32[1]{0}', space=sflag, size = 0x4, scoped, tag = 'scoped memory for tpu_custom_call.1']
    #allocation4 [shape = 's32[1]{0}', space=sflag, size = 0x4, scoped, tag = 'scoped memory for tpu_custom_call.1']
    #allocation5 [shape = 'u8[16384]{0}', space=vmem, size = 0x4000, scoped, tag = 'input window, operand 1, single buffered']
    #allocation6 [shape = 's32[1]{0}', space=sflag, size = 0x4, scoped, tag = 'scoped memory for tpu_custom_call.1']
    #allocation7 [shape = 'u8[458752]{0}', space=vmem, size = 0x70000, scoped, tag = 'input window, operand 2, single buffered']
    #allocation8 [shape = 'u8[20480]{0}', space=vmem, size = 0x5000, scoped, tag = 'input window, operand 3, single buffered']
    #allocation9 [shape = 's32[1]{0}', space=sflag, size = 0x4, scoped, tag = 'scoped memory for tpu_custom_call.1']
    #allocation10 [shape = 'u8[4096]{0}', space=vmem, size = 0x1000, scoped, tag = 'output window, operand 0, single buffered']
    %9 = vsyncpa [#allocation3], 0
    %10 = vsyncpa [#allocation6], 0
    %11 = vsyncpa [#allocation9], 0
    %12 = vsyncpa [#allocation4], 0
    // Predicated region
    $region2: #{tpu_custom_call.1} parent=1 // pred_check
      _
    $region3: #{tpu_custom_call.1} parent=1 // pred_check_branch
      %14 = sbr.rel (0) target = $region5
    $region4: #{tpu_custom_call.1} parent=1 // pred_region
      %s16 = ssub.s32 256, 256
      %17 = vsyncadd [#allocation3], %s16
      %s18 = sshll.u32 [#allocation2], 4
      %s19 = int_to_ptr.vmem [resolvable:$true] %s18
      %24 = dma.hbm_to_vmem [thread:$0]  %s0, 256, %s19, [#allocation3], 128, 128, 8
    $region5: #{tpu_custom_call.1} parent=1 // pred_fallthru
      _
    // Predicated region
    $region6: #{tpu_custom_call.1} parent=1 // pred_check
      _
    $region7: #{tpu_custom_call.1} parent=1 // pred_check_branch
      %26 = sbr.rel (0) target = $region9
    $region8: #{tpu_custom_call.1} parent=1 // pred_region
      %s28 = ssub.s32 512, 512
      %29 = vsyncadd [#allocation6], %s28
      %s30 = sshll.u32 [#allocation5], 4
      %s31 = int_to_ptr.vmem [resolvable:$true] %s30
      %36 = dma.hbm_to_vmem [thread:$0]  %s1, 512, %s31, [#allocation6], 128, 128, 8
    $region9: #{tpu_custom_call.1} parent=1 // pred_fallthru
      _
    // Predicated region
    $region10: #{tpu_custom_call.1} parent=1 // pred_check
      _
    $region11: #{tpu_custom_call.1} parent=1 // pred_check_branch
      %38 = sbr.rel (0) target = $region13
    $region12: #{tpu_custom_call.1} parent=1 // pred_region
      %s40 = ssub.s32 14336, 14336
      %41 = vsyncadd [#allocation6], %s40
      %s42 = sshll.u32 [#allocation7], 4
      %s43 = int_to_ptr.vmem [resolvable:$true] %s42
      %48 = dma.hbm_to_vmem [thread:$0]  %s2, 14336, %s43, [#allocation6], 128, 128, 8
    $region13: #{tpu_custom_call.1} parent=1 // pred_fallthru
      _
    // Predicated region
    $region14: #{tpu_custom_call.1} parent=1 // pred_check
      _
    $region15: #{tpu_custom_call.1} parent=1 // pred_check_branch
      %50 = sbr.rel (0) target = $region17
    $region16: #{tpu_custom_call.1} parent=1 // pred_region
      %s52 = ssub.s32 640, 640
      %53 = vsyncadd [#allocation9], %s52
      %s54 = sshll.u32 [#allocation8], 4
      %s55 = int_to_ptr.vmem [resolvable:$true] %s54
      %60 = dma.hbm_to_vmem [thread:$0]  %s3, 640, %s55, [#allocation9], 128, 128, 8
    $region17: #{tpu_custom_call.1} parent=1 // pred_fallthru
      _
    // Predicated region
    $region18: #{tpu_custom_call.1} parent=1 // pred_check
      _
    $region19: #{tpu_custom_call.1} parent=1 // pred_check_branch
      %62 = sbr.rel (0) target = $region21
    $region20: #{tpu_custom_call.1} parent=1 // pred_region
      %63 = dma.done [#allocation3], 256
    $region21: #{tpu_custom_call.1} parent=1 // pred_fallthru
      _
    // Predicated region
    $region22: #{tpu_custom_call.1} parent=1 // pred_check
      _
    $region23: #{tpu_custom_call.1} parent=1 // pred_check_branch
      %65 = sbr.rel (0) target = $region25
    $region24: #{tpu_custom_call.1} parent=1 // pred_region
      %66 = dma.done [#allocation6], 512
    $region25: #{tpu_custom_call.1} parent=1 // pred_fallthru
      _
    // Predicated region
    $region26: #{tpu_custom_call.1} parent=1 // pred_check
      _
    $region27: #{tpu_custom_call.1} parent=1 // pred_check_branch
      %68 = sbr.rel (0) target = $region29
    $region28: #{tpu_custom_call.1} parent=1 // pred_region
      %69 = dma.done [#allocation6], 14336
    $region29: #{tpu_custom_call.1} parent=1 // pred_fallthru
      _
    // Predicated region
    $region30: #{tpu_custom_call.1} parent=1 // pred_check
      _
    $region31: #{tpu_custom_call.1} parent=1 // pred_check_branch
      %71 = sbr.rel (0) target = $region33
    $region32: #{tpu_custom_call.1} parent=1 // pred_region
      %72 = dma.done [#allocation9], 640
    $region33: #{tpu_custom_call.1} parent=1 // pred_fallthru
      _
    %v74 = vld [vmem:[#allocation2] sm:$0xff]
    %v75 = vld [vmem:[#allocation2 + $0x8] sm:$0xff]
    %v76 = vld [vmem:[#allocation5] sm:$0xff]
    %v77 = vld [vmem:[#allocation5 + $0x8] sm:$0xff]
    %v78 = vld [vmem:[#allocation5 + $0x10] sm:$0xff]
    %v79 = vld [vmem:[#allocation5 + $0x18] sm:$0xff]
    %v80 = vld [vmem:[#allocation8] sm:$0xff]
    %v81 = vld [vmem:[#allocation8 + $0x8] sm:$0xff]
    %v82 = vld [vmem:[#allocation8 + $0x10] sm:$0xff]
    %v83 = vld [vmem:[#allocation8 + $0x18] sm:$0xff]
    %v84 = vld [vmem:[#allocation8 + $0x20] sm:$0xff]
    %v85 = vpack.c.bf16 %v74, %v74
    %v86 = vpack.c.bf16 %v75, %v75
    %v87 = vld [vmem:[#allocation7] sm:$0xff]
    %v88 = vld [vmem:[#allocation7 + $0x8] sm:$0xff]
    %v89 = vld [vmem:[#allocation7 + $0x10] sm:$0xff]
    %v90 = vld [vmem:[#allocation7 + $0x18] sm:$0xff]
    %v91 = vld [vmem:[#allocation7 + $0x20] sm:$0xff]
    %v92 = vld [vmem:[#allocation7 + $0x28] sm:$0xff]
    %v93 = vld [vmem:[#allocation7 + $0x30] sm:$0xff]
    %v94 = vld [vmem:[#allocation7 + $0x38] sm:$0xff]
    %v95 = vld [vmem:[#allocation7 + $0x40] sm:$0xff]
    %v96 = vld [vmem:[#allocation7 + $0x48] sm:$0xff]
    %v97 = vld [vmem:[#allocation7 + $0x50] sm:$0xff]
    %v98 = vld [vmem:[#allocation7 + $0x58] sm:$0xff]
    %v99 = vld [vmem:[#allocation7 + $0x60] sm:$0xff]
    %v100 = vld [vmem:[#allocation7 + $0x68] sm:$0xff]
    %v101 = vld [vmem:[#allocation7 + $0x70] sm:$0xff]
    %v102 = vld [vmem:[#allocation7 + $0x78] sm:$0xff]
    %v119 = vunpack.c.l.b16 %v87
    %v120 = vunpack.c.h.b16 %v87
    %v121 = vunpack.c.l.b16 %v88
    %v122 = vunpack.c.h.b16 %v88
    %v123 = vunpack.c.l.b16 %v89
    %v124 = vunpack.c.h.b16 %v89
    %v125 = vunpack.c.l.b16 %v90
    %v126 = vunpack.c.h.b16 %v90
    %v127 = vunpack.c.l.b16 %v91
    %v128 = vunpack.c.h.b16 %v91
    %v129 = vunpack.c.l.b16 %v92
    %v130 = vunpack.c.h.b16 %v92
    %v131 = vunpack.c.l.b16 %v93
    %v132 = vunpack.c.h.b16 %v93
    %v133 = vunpack.c.l.b16 %v94
    %v134 = vunpack.c.h.b16 %v94
    %v135 = vunpack.c.l.b16 %v95
    %v136 = vunpack.c.h.b16 %v95
    %v137 = vunpack.c.l.b16 %v96
    %v138 = vunpack.c.h.b16 %v96
    %v139 = vunpack.c.l.b16 %v97
    %v140 = vunpack.c.h.b16 %v97
    %v141 = vunpack.c.l.b16 %v98
    %v142 = vunpack.c.h.b16 %v98
    %v143 = vunpack.c.l.b16 %v99
    %v144 = vunpack.c.h.b16 %v99
    %v145 = vunpack.c.l.b16 %v100
    %v146 = vunpack.c.h.b16 %v100
    %v147 = vunpack.c.l.b16 %v101
    %v148 = vunpack.c.h.b16 %v101
    %v149 = vunpack.c.l.b16 %v102
    %v150 = vunpack.c.h.b16 %v102
    %v151 = vpack.c.b16 %v121, %v119
    %v152 = vpack.c.b16 %v122, %v120
    %v153 = vpack.c.b16 %v125, %v123
    %v154 = vpack.c.b16 %v126, %v124
    %v155 = vpack.c.b16 %v129, %v127
    %v156 = vpack.c.b16 %v130, %v128
    %v157 = vpack.c.b16 %v133, %v131
    %v158 = vpack.c.b16 %v134, %v132
    %v159 = vpack.c.b16 %v137, %v135
    %v160 = vpack.c.b16 %v138, %v136
    %v161 = vpack.c.b16 %v141, %v139
    %v162 = vpack.c.b16 %v142, %v140
    %v163 = vpack.c.b16 %v145, %v143
    %v164 = vpack.c.b16 %v146, %v144
    %v165 = vpack.c.b16 %v149, %v147
    %v166 = vpack.c.b16 %v150, %v148
    %183 = vmatprep.subr.bf16.mxu0 %v152
    %184 = vmatpush1.bf16.msra.mxu0 %v151
    %185 = vmatprep.subr.bf16.mxu0 %v154
    %186 = vmatpush1.bf16.msra.mxu0 %v153
    %187 = vmatprep.subr.bf16.mxu0 %v156
    %188 = vmatpush1.bf16.msra.mxu0 %v155
    %189 = vmatprep.subr.bf16.mxu0 %v158
    %190 = vmatpush1.bf16.msra.mxu0 %v157
    %191 = vmatprep.subr.bf16.mxu0 %v160
    %192 = vmatpush1.bf16.msra.mxu0 %v159
    %193 = vmatprep.subr.bf16.mxu0 %v162
    %194 = vmatpush1.bf16.msra.mxu0 %v161
    %195 = vmatprep.subr.bf16.mxu0 %v164
    %196 = vmatpush1.bf16.msra.mxu0 %v163
    %197 = vmatprep.subr.bf16.mxu0 %v166
    %198 = vmatpush1.bf16.msra.mxu0 %v165
    %199 = vmatprep.subr.bf16.mxu0 0
    %200 = vmatpush1.bf16.msra.mxu0 0
    %201 = vmatprep.subr.bf16.mxu0 0
    %202 = vmatpush1.bf16.msra.mxu0 0
    %203 = vmatprep.subr.bf16.mxu0 0
    %204 = vmatpush1.bf16.msra.mxu0 0
    %205 = vmatprep.subr.bf16.mxu0 0
    %206 = vmatpush1.bf16.msra.mxu0 0
    %207 = vmatprep.subr.bf16.mxu0 0
    %208 = vmatpush1.bf16.msra.mxu0 0
    %209 = vmatprep.subr.bf16.mxu0 0
    %210 = vmatpush1.bf16.msra.mxu0 0
    %211 = vmatprep.subr.bf16.mxu0 0
    %212 = vmatpush1.bf16.msra.mxu0 0
    %213 = vmatprep.subr.bf16.mxu0 0
    %214 = vmatpush1.bf16.msra.mxu0 0
    %215 = vmatprep.mubr.bf16.mxu0 0
    %216 = vmatmul.mubr.bf16.gmra.mrb[0].mxu0 %v85
    %v217 = vpop.f32.mrb[0].mxu0
    %v218 = vadd.f32 0.0, %v217
    %v219 = vpop.f32.mrb[0].mxu0
    %v220 = vadd.f32 0.0, %v219
    %v221 = vpop.f32.mrb[0].mxu0
    %v222 = vpop.f32.mrb[0].mxu0
    %223 = vdwg.mxu0
    %s224 = scalar_lea.vmem [#allocation7], 128
    %v225 = vld [vmem:[%s224] sm:$0xff]
    %v226 = vld [vmem:[%s224 + $0x8] sm:$0xff]
    %v227 = vld [vmem:[%s224 + $0x10] sm:$0xff]
    %v228 = vld [vmem:[%s224 + $0x18] sm:$0xff]
    %v229 = vld [vmem:[%s224 + $0x20] sm:$0xff]
    %v230 = vld [vmem:[%s224 + $0x28] sm:$0xff]
    %v231 = vld [vmem:[%s224 + $0x30] sm:$0xff]
    %v232 = vld [vmem:[%s224 + $0x38] sm:$0xff]
    %v233 = vld [vmem:[%s224 + $0x40] sm:$0xff]
    %v234 = vld [vmem:[%s224 + $0x48] sm:$0xff]
    %v235 = vld [vmem:[%s224 + $0x50] sm:$0xff]
    %v236 = vld [vmem:[%s224 + $0x58] sm:$0xff]
    %v237 = vld [vmem:[%s224 + $0x60] sm:$0xff]
    %v238 = vld [vmem:[%s224 + $0x68] sm:$0xff]
    %v239 = vld [vmem:[%s224 + $0x70] sm:$0xff]
    %v240 = vld [vmem:[%s224 + $0x78] sm:$0xff]
    %v257 = vunpack.c.l.b16 %v225
    %v258 = vunpack.c.h.b16 %v225
    %v259 = vunpack.c.l.b16 %v226
    %v260 = vunpack.c.h.b16 %v226
    %v261 = vunpack.c.l.b16 %v227
    %v262 = vunpack.c.h.b16 %v227
    %v263 = vunpack.c.l.b16 %v228
    %v264 = vunpack.c.h.b16 %v228
    %v265 = vunpack.c.l.b16 %v229
    %v266 = vunpack.c.h.b16 %v229
    %v267 = vunpack.c.l.b16 %v230
    %v268 = vunpack.c.h.b16 %v230
    %v269 = vunpack.c.l.b16 %v231
    %v270 = vunpack.c.h.b16 %v231
    %v271 = vunpack.c.l.b16 %v232
    %v272 = vunpack.c.h.b16 %v232
    %v273 = vunpack.c.l.b16 %v233
    %v274 = vunpack.c.h.b16 %v233
    %v275 = vunpack.c.l.b16 %v234
    %v276 = vunpack.c.h.b16 %v234
    %v277 = vunpack.c.l.b16 %v235
    %v278 = vunpack.c.h.b16 %v235
    %v279 = vunpack.c.l.b16 %v236
    %v280 = vunpack.c.h.b16 %v236
    %v281 = vunpack.c.l.b16 %v237
    %v282 = vunpack.c.h.b16 %v237
    %v283 = vunpack.c.l.b16 %v238
    %v284 = vunpack.c.h.b16 %v238
    %v285 = vunpack.c.l.b16 %v239
    %v286 = vunpack.c.h.b16 %v239
    %v287 = vunpack.c.l.b16 %v240
    %v288 = vunpack.c.h.b16 %v240
    %v289 = vpack.c.b16 %v259, %v257
    %v290 = vpack.c.b16 %v260, %v258
    %v291 = vpack.c.b16 %v263, %v261
    %v292 = vpack.c.b16 %v264, %v262
    %v293 = vpack.c.b16 %v267, %v265
    %v294 = vpack.c.b16 %v268, %v266
    %v295 = vpack.c.b16 %v271, %v269
    %v296 = vpack.c.b16 %v272, %v270
    %v297 = vpack.c.b16 %v275, %v273
    %v298 = vpack.c.b16 %v276, %v274
    %v299 = vpack.c.b16 %v279, %v277
    %v300 = vpack.c.b16 %v280, %v278
    %v301 = vpack.c.b16 %v283, %v281
    %v302 = vpack.c.b16 %v284, %v282
    %v303 = vpack.c.b16 %v287, %v285
    %v304 = vpack.c.b16 %v288, %v286
    %321 = vmatprep.subr.bf16.mxu0 %v290
    %322 = vmatpush1.bf16.msra.mxu0 %v289
    %323 = vmatprep.subr.bf16.mxu0 %v292
    %324 = vmatpush1.bf16.msra.mxu0 %v291
    %325 = vmatprep.subr.bf16.mxu0 %v294
    %326 = vmatpush1.bf16.msra.mxu0 %v293
    %327 = vmatprep.subr.bf16.mxu0 %v296
    %328 = vmatpush1.bf16.msra.mxu0 %v295
    %329 = vmatprep.subr.bf16.mxu0 %v298
    %330 = vmatpush1.bf16.msra.mxu0 %v297
    %331 = vmatprep.subr.bf16.mxu0 %v300
    %332 = vmatpush1.bf16.msra.mxu0 %v299
    %333 = vmatprep.subr.bf16.mxu0 %v302
    %334 = vmatpush1.bf16.msra.mxu0 %v301
    %335 = vmatprep.subr.bf16.mxu0 %v304
    %336 = vmatpush1.bf16.msra.mxu0 %v303
    %337 = vmatprep.subr.bf16.mxu0 0
    %338 = vmatpush1.bf16.msra.mxu0 0
    %339 = vmatprep.subr.bf16.mxu0 0
    %340 = vmatpush1.bf16.msra.mxu0 0
    %341 = vmatprep.subr.bf16.mxu0 0
    %342 = vmatpush1.bf16.msra.mxu0 0
    %343 = vmatprep.subr.bf16.mxu0 0
    %344 = vmatpush1.bf16.msra.mxu0 0
    %345 = vmatprep.subr.bf16.mxu0 0
    %346 = vmatpush1.bf16.msra.mxu0 0
    %347 = vmatprep.subr.bf16.mxu0 0
    %348 = vmatpush1.bf16.msra.mxu0 0
    %349 = vmatprep.subr.bf16.mxu0 0
    %350 = vmatpush1.bf16.msra.mxu0 0
    %351 = vmatprep.subr.bf16.mxu0 0
    %352 = vmatpush1.bf16.msra.mxu0 0
    %353 = vmatprep.mubr.bf16.mxu0 0
    %354 = vmatmul.mubr.bf16.gmra.mrb[0].mxu0 %v86
    %v355 = vpop.f32.mrb[0].mxu0
    %v356 = vadd.f32 0.0, %v355
    %v357 = vpop.f32.mrb[0].mxu0
    %v358 = vadd.f32 0.0, %v357
    %v359 = vpop.f32.mrb[0].mxu0
    %v360 = vpop.f32.mrb[0].mxu0
    %361 = vdwg.mxu0
    %v362 = vlaneseq
    %v363 = vshrl.u32 %v362, 7
    %v364 = vsub.s32 0, %v363
    %v365 = vrot.slane %v80, %v364
    %v366 = vmul.f32 %v74, %v365
    %367 = vadd.xlane.f32.xlu0 %v366
    %v368 = vpop.xlane.xlu0 %367
    %v369 = vlaneseq
    %v370 = vshrl.u32 %v369, 7
    %v371 = vsub.s32 1, %v370
    %v372 = vrot.slane %v80, %v371
    %v373 = vmul.f32 %v74, %v372
    %374 = vadd.xlane.f32.xlu0 %v373
    %v375 = vpop.xlane.xlu0 %374
    %376 = vxpose.xlu0.b32.start [1/16] %v368, 128
    %377 = vxpose.xlu0.b32.cont [2/16] 0.0, 128
    %378 = vxpose.xlu0.b32.cont [3/16] 0.0, 128
    %379 = vxpose.xlu0.b32.cont [4/16] 0.0, 128
    %380 = vxpose.xlu0.b32.cont [5/16] 0.0, 128
    %381 = vxpose.xlu0.b32.cont [6/16] 0.0, 128
    %382 = vxpose.xlu0.b32.cont [7/16] 0.0, 128
    %383 = vxpose.xlu0.b32.cont [8/16] 0.0, 128
    %384 = vxpose.xlu0.b32.cont [9/16] 0.0, 128
    %385 = vxpose.xlu0.b32.cont [10/16] 0.0, 128
    %386 = vxpose.xlu0.b32.cont [11/16] 0.0, 128
    %387 = vxpose.xlu0.b32.cont [12/16] 0.0, 128
    %388 = vxpose.xlu0.b32.cont [13/16] 0.0, 128
    %389 = vxpose.xlu0.b32.cont [14/16] 0.0, 128
    %390 = vxpose.xlu0.b32.cont [15/16] 0.0, 128
    %391 = vxpose.xlu0.b32.end [16/16] 0.0, 128
    %v392 = vpop.trf.xlu0
    %v393 = vpop.trf.xlu0
    %v394 = vpop.trf.xlu0
    %v395 = vpop.trf.xlu0
    %v396 = vpop.trf.xlu0
    %v397 = vpop.trf.xlu0
    %v398 = vpop.trf.xlu0
    %v399 = vpop.trf.xlu0
    %v400 = vpop.trf.xlu0
    %v401 = vpop.trf.xlu0
    %v402 = vpop.trf.xlu0
    %v403 = vpop.trf.xlu0
    %v404 = vpop.trf.xlu0
    %v405 = vpop.trf.xlu0
    %v406 = vpop.trf.xlu0
    %v407 = vpop.trf.xlu0
    %v408 = vlaneseq
    %v409 = vshrl.u32 %v408, 7
    %v410 = vsub.s32 0, %v409
    %v411 = vrot.slane %v392, %v410
    %v412 = vadd.f32 %v375, %v411
    %v413 = vmul.f32 %v412, %v76
    %v414 = vmax.f32 %v413, 0.0
    %vm415 = vcmask 64512
    %v416 = vsel %vm415, %v414, -inf
    %417 = vmax.xlane.f32.xlu0 %v416
    %v418 = vpop.xlane.xlu0 %417
    %v419 = vsub.f32 %v414, %v418
    %v420 = vmul.f32 %v419, 1.442695
    %v421 = vpow.pop %v420
    %v422 = vmul.f32 %v421, %v76
    %v423 = vsel %vm415, %v422, 0.0
    %424 = vadd.xlane.f32.xlu0 %v423
    %v425 = vpop.xlane.xlu0 %424
    %v426 = vmax.f32 %v425, 1.0
    %v427 = vrcp.pop %v426
    %v428 = vmul.f32 %v422, %v427
    %v429 = vlaneseq
    %v430 = vshrl.u32 %v429, 7
    %v431 = vsub.s32 3, %v430
    %v432 = vrot.slane %v80, %v431
    %v433 = vmul.f32 %v74, %v432
    %434 = vadd.xlane.f32.xlu0 %v433
    %v435 = vpop.xlane.xlu0 %434
    %v436 = vlaneseq
    %v437 = vshrl.u32 %v436, 7
    %v438 = vsub.s32 4, %v437
    %v439 = vrot.slane %v80, %v438
    %v440 = vmul.f32 %v75, %v439
    %441 = vadd.xlane.f32.xlu0 %v440
    %v442 = vpop.xlane.xlu0 %441
    %443 = vxpose.xlu0.b32.start [1/16] %v435, 128
    %444 = vxpose.xlu0.b32.cont [2/16] 0.0, 128
    %445 = vxpose.xlu0.b32.cont [3/16] 0.0, 128
    %446 = vxpose.xlu0.b32.cont [4/16] 0.0, 128
    %447 = vxpose.xlu0.b32.cont [5/16] 0.0, 128
    %448 = vxpose.xlu0.b32.cont [6/16] 0.0, 128
    %449 = vxpose.xlu0.b32.cont [7/16] 0.0, 128
    %450 = vxpose.xlu0.b32.cont [8/16] 0.0, 128
    %451 = vxpose.xlu0.b32.cont [9/16] 0.0, 128
    %452 = vxpose.xlu0.b32.cont [10/16] 0.0, 128
    %453 = vxpose.xlu0.b32.cont [11/16] 0.0, 128
    %454 = vxpose.xlu0.b32.cont [12/16] 0.0, 128
    %455 = vxpose.xlu0.b32.cont [13/16] 0.0, 128
    %456 = vxpose.xlu0.b32.cont [14/16] 0.0, 128
    %457 = vxpose.xlu0.b32.cont [15/16] 0.0, 128
    %458 = vxpose.xlu0.b32.end [16/16] 0.0, 128
    %v459 = vpop.trf.xlu0
    %v460 = vpop.trf.xlu0
    %v461 = vpop.trf.xlu0
    %v462 = vpop.trf.xlu0
    %v463 = vpop.trf.xlu0
    %v464 = vpop.trf.xlu0
    %v465 = vpop.trf.xlu0
    %v466 = vpop.trf.xlu0
    %v467 = vpop.trf.xlu0
    %v468 = vpop.trf.xlu0
    %v469 = vpop.trf.xlu0
    %v470 = vpop.trf.xlu0
    %v471 = vpop.trf.xlu0
    %v472 = vpop.trf.xlu0
    %v473 = vpop.trf.xlu0
    %v474 = vpop.trf.xlu0
    %v475 = vlaneseq
    %v476 = vshrl.u32 %v475, 7
    %v477 = vsub.s32 0, %v476
    %v478 = vrot.slane %v459, %v477
    %v479 = vadd.f32 %v442, %v478
    %v480 = vmul.f32 %v479, %v77
    %v481 = vmax.f32 %v480, 0.0
    %v482 = vsel %vm415, %v481, -inf
    %483 = vmax.xlane.f32.xlu0 %v482
    %v484 = vpop.xlane.xlu0 %483
    %v485 = vsub.f32 %v481, %v484
    %v486 = vmul.f32 %v485, 1.442695
    %v487 = vpow.pop %v486
    %v488 = vmul.f32 %v487, %v77
    %v489 = vsel %vm415, %v488, 0.0
    %490 = vadd.xlane.f32.xlu0 %v489
    %v491 = vpop.xlane.xlu0 %490
    %v492 = vmax.f32 %v491, 1.0
    %v493 = vrcp.pop %v492
    %v494 = vmul.f32 %v488, %v493
    %v495 = vlaneseq
    %v496 = vshrl.u32 %v495, 7
    %v497 = vsub.s32 6, %v496
    %v498 = vrot.slane %v80, %v497
    %v499 = vmul.f32 %v75, %v498
    %500 = vadd.xlane.f32.xlu0 %v499
    %v501 = vpop.xlane.xlu0 %500
    %v502 = vlaneseq
    %v503 = vshrl.u32 %v502, 7
    %v504 = vsub.s32 7, %v503
    %v505 = vrot.slane %v80, %v504
    %v506 = vmul.f32 %v75, %v505
    %507 = vadd.xlane.f32.xlu0 %v506
    %v508 = vpop.xlane.xlu0 %507
    %509 = vxpose.xlu0.b32.start [1/16] %v501, 128
    %510 = vxpose.xlu0.b32.cont [2/16] 0.0, 128
    %511 = vxpose.xlu0.b32.cont [3/16] 0.0, 128
    %512 = vxpose.xlu0.b32.cont [4/16] 0.0, 128
    %513 = vxpose.xlu0.b32.cont [5/16] 0.0, 128
    %514 = vxpose.xlu0.b32.cont [6/16] 0.0, 128
    %515 = vxpose.xlu0.b32.cont [7/16] 0.0, 128
    %516 = vxpose.xlu0.b32.cont [8/16] 0.0, 128
    %517 = vxpose.xlu0.b32.cont [9/16] 0.0, 128
    %518 = vxpose.xlu0.b32.cont [10/16] 0.0, 128
    %519 = vxpose.xlu0.b32.cont [11/16] 0.0, 128
    %520 = vxpose.xlu0.b32.cont [12/16] 0.0, 128
    %521 = vxpose.xlu0.b32.cont [13/16] 0.0, 128
    %522 = vxpose.xlu0.b32.cont [14/16] 0.0, 128
    %523 = vxpose.xlu0.b32.cont [15/16] 0.0, 128
    %524 = vxpose.xlu0.b32.end [16/16] 0.0, 128
    %v525 = vpop.trf.xlu0
    %v526 = vpop.trf.xlu0
    %v527 = vpop.trf.xlu0
    %v528 = vpop.trf.xlu0
    %v529 = vpop.trf.xlu0
    %v530 = vpop.trf.xlu0
    %v531 = vpop.trf.xlu0
    %v532 = vpop.trf.xlu0
    %v533 = vpop.trf.xlu0
    %v534 = vpop.trf.xlu0
    %v535 = vpop.trf.xlu0
    %v536 = vpop.trf.xlu0
    %v537 = vpop.trf.xlu0
    %v538 = vpop.trf.xlu0
    %v539 = vpop.trf.xlu0
    %v540 = vpop.trf.xlu0
    %v541 = vlaneseq
    %v542 = vshrl.u32 %v541, 7
    %v543 = vsub.s32 0, %v542
    %v544 = vrot.slane %v525, %v543
    %v545 = vadd.f32 %v508, %v544
    %v546 = vmul.f32 %v545, %v78
    %v547 = vmax.f32 %v546, 0.0
    %v548 = vsel %vm415, %v547, -inf
    %549 = vmax.xlane.f32.xlu0 %v548
    %v550 = vpop.xlane.xlu0 %549
    %v551 = vsub.f32 %v547, %v550
    %v552 = vmul.f32 %v551, 1.442695
    %v553 = vpow.pop %v552
    %v554 = vmul.f32 %v553, %v78
    %v555 = vsel %vm415, %v554, 0.0
    %556 = vadd.xlane.f32.xlu0 %v555
    %v557 = vpop.xlane.xlu0 %556
    %v558 = vmax.f32 %v557, 1.0
    %v559 = vrcp.pop %v558
    %v560 = vmul.f32 %v554, %v559
    %v561 = vlaneseq
    %v562 = vshrl.u32 %v561, 7
    %v563 = vsub.s32 1, %v562
    %v564 = vrot.slane %v81, %v563
    %v565 = vmul.f32 %v75, %v564
    %566 = vadd.xlane.f32.xlu0 %v565
    %v567 = vpop.xlane.xlu0 %566
    %v568 = vlaneseq
    %v569 = vshrl.u32 %v568, 7
    %v570 = vsub.s32 2, %v569
    %v571 = vrot.slane %v81, %v570
    %v572 = vmul.f32 %v74, %v571
    %573 = vadd.xlane.f32.xlu0 %v572
    %v574 = vpop.xlane.xlu0 %573
    %575 = vxpose.xlu0.b32.start [1/16] %v567, 128
    %576 = vxpose.xlu0.b32.cont [2/16] 0.0, 128
    %577 = vxpose.xlu0.b32.cont [3/16] 0.0, 128
    %578 = vxpose.xlu0.b32.cont [4/16] 0.0, 128
    %579 = vxpose.xlu0.b32.cont [5/16] 0.0, 128
    %580 = vxpose.xlu0.b32.cont [6/16] 0.0, 128
    %581 = vxpose.xlu0.b32.cont [7/16] 0.0, 128
    %582 = vxpose.xlu0.b32.cont [8/16] 0.0, 128
    %583 = vxpose.xlu0.b32.cont [9/16] 0.0, 128
    %584 = vxpose.xlu0.b32.cont [10/16] 0.0, 128
    %585 = vxpose.xlu0.b32.cont [11/16] 0.0, 128
    %586 = vxpose.xlu0.b32.cont [12/16] 0.0, 128
    %587 = vxpose.xlu0.b32.cont [13/16] 0.0, 128
    %588 = vxpose.xlu0.b32.cont [14/16] 0.0, 128
    %589 = vxpose.xlu0.b32.cont [15/16] 0.0, 128
    %590 = vxpose.xlu0.b32.end [16/16] 0.0, 128
    %v591 = vpop.trf.xlu0
    %v592 = vpop.trf.xlu0
    %v593 = vpop.trf.xlu0
    %v594 = vpop.trf.xlu0
    %v595 = vpop.trf.xlu0
    %v596 = vpop.trf.xlu0
    %v597 = vpop.trf.xlu0
    %v598 = vpop.trf.xlu0
    %v599 = vpop.trf.xlu0
    %v600 = vpop.trf.xlu0
    %v601 = vpop.trf.xlu0
    %v602 = vpop.trf.xlu0
    %v603 = vpop.trf.xlu0
    %v604 = vpop.trf.xlu0
    %v605 = vpop.trf.xlu0
    %v606 = vpop.trf.xlu0
    %v607 = vlaneseq
    %v608 = vshrl.u32 %v607, 7
    %v609 = vsub.s32 0, %v608
    %v610 = vrot.slane %v591, %v609
    %v611 = vadd.f32 %v574, %v610
    %v612 = vmul.f32 %v611, %v79
    %v613 = vmax.f32 %v612, 0.0
    %v614 = vsel %vm415, %v613, -inf
    %615 = vmax.xlane.f32.xlu0 %v614
    %v616 = vpop.xlane.xlu0 %615
    %v617 = vsub.f32 %v613, %v616
    %v618 = vmul.f32 %v617, 1.442695
    %v619 = vpow.pop %v618
    %v620 = vmul.f32 %v619, %v79
    %v621 = vsel %vm415, %v620, 0.0
    %622 = vadd.xlane.f32.xlu0 %v621
    %v623 = vpop.xlane.xlu0 %622
    %v624 = vmax.f32 %v623, 1.0
    %v625 = vrcp.pop %v624
    %v626 = vmul.f32 %v620, %v625
    %v627 = vpack.c.bf16 %v428, %v428
    %v628 = vpack.c.bf16 %v218, %v218
    %v629 = vpack.c.bf16 %v626, %v626
    %v630 = vpack.c.bf16 %v358, %v358
    %v632 = vsel %vm415, %v629, 0
    %vm634 = vcmask 1043456
    %v636 = vsel %vm634, %v630, 0
    %638 = vmatprep.subr.bf16.mxu0 0
    %639 = vmatpush1.bf16.msra.mxu0 %v636
    %640 = vmatprep.subr.bf16.mxu0 0
    %641 = vmatpush1.bf16.msra.mxu0 0
    %642 = vmatprep.subr.bf16.mxu0 0
    %643 = vmatpush1.bf16.msra.mxu0 0
    %644 = vmatprep.subr.bf16.mxu0 0
    %645 = vmatpush1.bf16.msra.mxu0 0
    %646 = vmatprep.subr.bf16.mxu0 0
    %647 = vmatpush1.bf16.msra.mxu0 0
    %648 = vmatprep.subr.bf16.mxu0 0
    %649 = vmatpush1.bf16.msra.mxu0 0
    %650 = vmatprep.subr.bf16.mxu0 0
    %651 = vmatpush1.bf16.msra.mxu0 0
    %652 = vmatprep.subr.bf16.mxu0 0
    %653 = vmatpush1.bf16.msra.mxu0 0
    %654 = vmatprep.subr.bf16.mxu0 0
    %655 = vmatpush1.bf16.msra.mxu0 0
    %656 = vmatprep.subr.bf16.mxu0 0
    %657 = vmatpush1.bf16.msra.mxu0 0
    %658 = vmatprep.subr.bf16.mxu0 0
    %659 = vmatpush1.bf16.msra.mxu0 0
    %660 = vmatprep.subr.bf16.mxu0 0
    %661 = vmatpush1.bf16.msra.mxu0 0
    %662 = vmatprep.subr.bf16.mxu0 0
    %663 = vmatpush1.bf16.msra.mxu0 0
    %664 = vmatprep.subr.bf16.mxu0 0
    %665 = vmatpush1.bf16.msra.mxu0 0
    %666 = vmatprep.subr.bf16.mxu0 0
    %667 = vmatpush1.bf16.msra.mxu0 0
    %668 = vmatprep.subr.bf16.mxu0 0
    %669 = vmatpush1.bf16.msra.mxu0 0
    %670 = vmatprep.mubr.bf16.mxu0 0
    %671 = vmatmul.mubr.bf16.gmra.mrb[0].mxu0 %v632
    %v672 = vpop.f32.mrb[0].mxu0
    %v673 = vadd.f32 0.0, %v672
    %v674 = vpop.f32.mrb[0].mxu0
    %v675 = vpop.f32.mrb[0].mxu0
    %v676 = vpop.f32.mrb[0].mxu0
    %677 = vdwg.mxu0
    %v679 = vsel %vm415, %v627, 0
    %v682 = vsel %vm634, %v628, 0
    %684 = vmatprep.subr.bf16.mxu0 0
    %685 = vmatpush1.bf16.msra.mxu0 %v682
    %686 = vmatprep.subr.bf16.mxu0 0
    %687 = vmatpush1.bf16.msra.mxu0 0
    %688 = vmatprep.subr.bf16.mxu0 0
    %689 = vmatpush1.bf16.msra.mxu0 0
    %690 = vmatprep.subr.bf16.mxu0 0
    %691 = vmatpush1.bf16.msra.mxu0 0
    %692 = vmatprep.subr.bf16.mxu0 0
    %693 = vmatpush1.bf16.msra.mxu0 0
    %694 = vmatprep.subr.bf16.mxu0 0
    %695 = vmatpush1.bf16.msra.mxu0 0
    %696 = vmatprep.subr.bf16.mxu0 0
    %697 = vmatpush1.bf16.msra.mxu0 0
    %698 = vmatprep.subr.bf16.mxu0 0
    %699 = vmatpush1.bf16.msra.mxu0 0
    %700 = vmatprep.subr.bf16.mxu0 0
    %701 = vmatpush1.bf16.msra.mxu0 0
    %702 = vmatprep.subr.bf16.mxu0 0
    %703 = vmatpush1.bf16.msra.mxu0 0
    %704 = vmatprep.subr.bf16.mxu0 0
    %705 = vmatpush1.bf16.msra.mxu0 0
    %706 = vmatprep.subr.bf16.mxu0 0
    %707 = vmatpush1.bf16.msra.mxu0 0
    %708 = vmatprep.subr.bf16.mxu0 0
    %709 = vmatpush1.bf16.msra.mxu0 0
    %710 = vmatprep.subr.bf16.mxu0 0
    %711 = vmatpush1.bf16.msra.mxu0 0
    %712 = vmatprep.subr.bf16.mxu0 0
    %713 = vmatpush1.bf16.msra.mxu0 0
    %714 = vmatprep.subr.bf16.mxu0 0
    %715 = vmatpush1.bf16.msra.mxu0 0
    %716 = vmatprep.mubr.bf16.mxu0 0
    %717 = vmatmul.mubr.bf16.gmra.mrb[0].mxu0 %v679
    %v718 = vpop.f32.mrb[0].mxu0
    %v719 = vadd.f32 %v673, %v718
    %v720 = vpop.f32.mrb[0].mxu0
    %v721 = vpop.f32.mrb[0].mxu0
    %v722 = vpop.f32.mrb[0].mxu0
    %723 = vdwg.mxu0
    %v724 = vlaneseq
    %v725 = vshrl.u32 %v724, 7
    %v726 = vsub.s32 2, %v725
    %v727 = vrot.slane %v80, %v726
    %v728 = vadd.f32 %v719, %v727
    %v729 = vlaneseq
    %v730 = vshrl.u32 %v729, 7
    %v731 = vsub.s32 3, %v730
    %v732 = vrot.slane %v81, %v731
    %v733 = vadd.f32 %v728, %v732
    %v734 = vpack.c.bf16 %v560, %v560
    %v735 = vpack.c.bf16 %v356, %v356
    %v736 = vpack.c.bf16 %v494, %v494
    %v737 = vpack.c.bf16 %v220, %v220
    %v739 = vsel %vm415, %v736, 0
    %v742 = vsel %vm634, %v737, 0
    %744 = vmatprep.subr.bf16.mxu0 0
    %745 = vmatpush1.bf16.msra.mxu0 %v742
    %746 = vmatprep.subr.bf16.mxu0 0
    %747 = vmatpush1.bf16.msra.mxu0 0
    %748 = vmatprep.subr.bf16.mxu0 0
    %749 = vmatpush1.bf16.msra.mxu0 0
    %750 = vmatprep.subr.bf16.mxu0 0
    %751 = vmatpush1.bf16.msra.mxu0 0
    %752 = vmatprep.subr.bf16.mxu0 0
    %753 = vmatpush1.bf16.msra.mxu0 0
    %754 = vmatprep.subr.bf16.mxu0 0
    %755 = vmatpush1.bf16.msra.mxu0 0
    %756 = vmatprep.subr.bf16.mxu0 0
    %757 = vmatpush1.bf16.msra.mxu0 0
    %758 = vmatprep.subr.bf16.mxu0 0
    %759 = vmatpush1.bf16.msra.mxu0 0
    %760 = vmatprep.subr.bf16.mxu0 0
    %761 = vmatpush1.bf16.msra.mxu0 0
    %762 = vmatprep.subr.bf16.mxu0 0
    %763 = vmatpush1.bf16.msra.mxu0 0
    %764 = vmatprep.subr.bf16.mxu0 0
    %765 = vmatpush1.bf16.msra.mxu0 0
    %766 = vmatprep.subr.bf16.mxu0 0
    %767 = vmatpush1.bf16.msra.mxu0 0
    %768 = vmatprep.subr.bf16.mxu0 0
    %769 = vmatpush1.bf16.msra.mxu0 0
    %770 = vmatprep.subr.bf16.mxu0 0
    %771 = vmatpush1.bf16.msra.mxu0 0
    %772 = vmatprep.subr.bf16.mxu0 0
    %773 = vmatpush1.bf16.msra.mxu0 0
    %774 = vmatprep.subr.bf16.mxu0 0
    %775 = vmatpush1.bf16.msra.mxu0 0
    %776 = vmatprep.mubr.bf16.mxu0 0
    %777 = vmatmul.mubr.bf16.gmra.mrb[0].mxu0 %v739
    %v778 = vpop.f32.mrb[0].mxu0
    %v779 = vadd.f32 0.0, %v778
    %v780 = vpop.f32.mrb[0].mxu0
    %v781 = vpop.f32.mrb[0].mxu0
    %v782 = vpop.f32.mrb[0].mxu0
    %783 = vdwg.mxu0
    %v785 = vsel %vm415, %v734, 0
    %v788 = vsel %vm634, %v735, 0
    %790 = vmatprep.subr.bf16.mxu0 0
    %791 = vmatpush1.bf16.msra.mxu0 %v788
    %792 = vmatprep.subr.bf16.mxu0 0
    %793 = vmatpush1.bf16.msra.mxu0 0
    %794 = vmatprep.subr.bf16.mxu0 0
    %795 = vmatpush1.bf16.msra.mxu0 0
    %796 = vmatprep.subr.bf16.mxu0 0
    %797 = vmatpush1.bf16.msra.mxu0 0
    %798 = vmatprep.subr.bf16.mxu0 0
    %799 = vmatpush1.bf16.msra.mxu0 0
    %800 = vmatprep.subr.bf16.mxu0 0
    %801 = vmatpush1.bf16.msra.mxu0 0
    %802 = vmatprep.subr.bf16.mxu0 0
    %803 = vmatpush1.bf16.msra.mxu0 0
    %804 = vmatprep.subr.bf16.mxu0 0
    %805 = vmatpush1.bf16.msra.mxu0 0
    %806 = vmatprep.subr.bf16.mxu0 0
    %807 = vmatpush1.bf16.msra.mxu0 0
    %808 = vmatprep.subr.bf16.mxu0 0
    %809 = vmatpush1.bf16.msra.mxu0 0
    %810 = vmatprep.subr.bf16.mxu0 0
    %811 = vmatpush1.bf16.msra.mxu0 0
    %812 = vmatprep.subr.bf16.mxu0 0
    %813 = vmatpush1.bf16.msra.mxu0 0
    %814 = vmatprep.subr.bf16.mxu0 0
    %815 = vmatpush1.bf16.msra.mxu0 0
    %816 = vmatprep.subr.bf16.mxu0 0
    %817 = vmatpush1.bf16.msra.mxu0 0
    %818 = vmatprep.subr.bf16.mxu0 0
    %819 = vmatpush1.bf16.msra.mxu0 0
    %820 = vmatprep.subr.bf16.mxu0 0
    %821 = vmatpush1.bf16.msra.mxu0 0
    %822 = vmatprep.mubr.bf16.mxu0 0
    %823 = vmatmul.mubr.bf16.gmra.mrb[0].mxu0 %v785
    %v824 = vpop.f32.mrb[0].mxu0
    %v825 = vadd.f32 %v779, %v824
    %v826 = vpop.f32.mrb[0].mxu0
    %v827 = vpop.f32.mrb[0].mxu0
    %v828 = vpop.f32.mrb[0].mxu0
    %829 = vdwg.mxu0
    %v830 = vlaneseq
    %v831 = vshrl.u32 %v830, 7
    %v832 = vsub.s32 5, %v831
    %v833 = vrot.slane %v80, %v832
    %v834 = vadd.f32 %v825, %v833
    %v835 = vlaneseq
    %v836 = vshrl.u32 %v835, 7
    %v837 = vsub.s32 0, %v836
    %v838 = vrot.slane %v81, %v837
    %v839 = vadd.f32 %v834, %v838
    %v840 = vpack.c.bf16 %v733, %v733
    %v841 = vpack.c.bf16 %v839, %v839
    %s842 = scalar_lea.vmem [#allocation7], 256
    %v843 = vld [vmem:[%s842] sm:$0xff]
    %v844 = vld [vmem:[%s842 + $0x8] sm:$0xff]
    %v845 = vld [vmem:[%s842 + $0x10] sm:$0xff]
    %v846 = vld [vmem:[%s842 + $0x18] sm:$0xff]
    %v847 = vld [vmem:[%s842 + $0x20] sm:$0xff]
    %v848 = vld [vmem:[%s842 + $0x28] sm:$0xff]
    %v849 = vld [vmem:[%s842 + $0x30] sm:$0xff]
    %v850 = vld [vmem:[%s842 + $0x38] sm:$0xff]
    %v851 = vld [vmem:[%s842 + $0x40] sm:$0xff]
    %v852 = vld [vmem:[%s842 + $0x48] sm:$0xff]
    %v853 = vld [vmem:[%s842 + $0x50] sm:$0xff]
    %v854 = vld [vmem:[%s842 + $0x58] sm:$0xff]
    %v855 = vld [vmem:[%s842 + $0x60] sm:$0xff]
    %v856 = vld [vmem:[%s842 + $0x68] sm:$0xff]
    %v857 = vld [vmem:[%s842 + $0x70] sm:$0xff]
    %v858 = vld [vmem:[%s842 + $0x78] sm:$0xff]
    %v875 = vunpack.c.l.b16 %v843
    %v876 = vunpack.c.h.b16 %v843
    %v877 = vunpack.c.l.b16 %v844
    %v878 = vunpack.c.h.b16 %v844
    %v879 = vunpack.c.l.b16 %v845
    %v880 = vunpack.c.h.b16 %v845
    %v881 = vunpack.c.l.b16 %v846
    %v882 = vunpack.c.h.b16 %v846
    %v883 = vunpack.c.l.b16 %v847
    %v884 = vunpack.c.h.b16 %v847
    %v885 = vunpack.c.l.b16 %v848
    %v886 = vunpack.c.h.b16 %v848
    %v887 = vunpack.c.l.b16 %v849
    %v888 = vunpack.c.h.b16 %v849
    %v889 = vunpack.c.l.b16 %v850
    %v890 = vunpack.c.h.b16 %v850
    %v891 = vunpack.c.l.b16 %v851
    %v892 = vunpack.c.h.b16 %v851
    %v893 = vunpack.c.l.b16 %v852
    %v894 = vunpack.c.h.b16 %v852
    %v895 = vunpack.c.l.b16 %v853
    %v896 = vunpack.c.h.b16 %v853
    %v897 = vunpack.c.l.b16 %v854
    %v898 = vunpack.c.h.b16 %v854
    %v899 = vunpack.c.l.b16 %v855
    %v900 = vunpack.c.h.b16 %v855
    %v901 = vunpack.c.l.b16 %v856
    %v902 = vunpack.c.h.b16 %v856
    %v903 = vunpack.c.l.b16 %v857
    %v904 = vunpack.c.h.b16 %v857
    %v905 = vunpack.c.l.b16 %v858
    %v906 = vunpack.c.h.b16 %v858
    %v907 = vpack.c.b16 %v877, %v875
    %v908 = vpack.c.b16 %v878, %v876
    %v909 = vpack.c.b16 %v881, %v879
    %v910 = vpack.c.b16 %v882, %v880
    %v911 = vpack.c.b16 %v885, %v883
    %v912 = vpack.c.b16 %v886, %v884
    %v913 = vpack.c.b16 %v889, %v887
    %v914 = vpack.c.b16 %v890, %v888
    %v915 = vpack.c.b16 %v893, %v891
    %v916 = vpack.c.b16 %v894, %v892
    %v917 = vpack.c.b16 %v897, %v895
    %v918 = vpack.c.b16 %v898, %v896
    %v919 = vpack.c.b16 %v901, %v899
    %v920 = vpack.c.b16 %v902, %v900
    %v921 = vpack.c.b16 %v905, %v903
    %v922 = vpack.c.b16 %v906, %v904
    %939 = vmatprep.subr.bf16.mxu0 %v908
    %940 = vmatpush1.bf16.msra.mxu0 %v907
    %941 = vmatprep.subr.bf16.mxu0 %v910
    %942 = vmatpush1.bf16.msra.mxu0 %v909
    %943 = vmatprep.subr.bf16.mxu0 %v912
    %944 = vmatpush1.bf16.msra.mxu0 %v911
    %945 = vmatprep.subr.bf16.mxu0 %v914
    %946 = vmatpush1.bf16.msra.mxu0 %v913
    %947 = vmatprep.subr.bf16.mxu0 %v916
    %948 = vmatpush1.bf16.msra.mxu0 %v915
    %949 = vmatprep.subr.bf16.mxu0 %v918
    %950 = vmatpush1.bf16.msra.mxu0 %v917
    %951 = vmatprep.subr.bf16.mxu0 %v920
    %952 = vmatpush1.bf16.msra.mxu0 %v919
    %953 = vmatprep.subr.bf16.mxu0 %v922
    %954 = vmatpush1.bf16.msra.mxu0 %v921
    %955 = vmatprep.subr.bf16.mxu0 0
    %956 = vmatpush1.bf16.msra.mxu0 0
    %957 = vmatprep.subr.bf16.mxu0 0
    %958 = vmatpush1.bf16.msra.mxu0 0
    %959 = vmatprep.subr.bf16.mxu0 0
    %960 = vmatpush1.bf16.msra.mxu0 0
    %961 = vmatprep.subr.bf16.mxu0 0
    %962 = vmatpush1.bf16.msra.mxu0 0
    %963 = vmatprep.subr.bf16.mxu0 0
    %964 = vmatpush1.bf16.msra.mxu0 0
    %965 = vmatprep.subr.bf16.mxu0 0
    %966 = vmatpush1.bf16.msra.mxu0 0
    %967 = vmatprep.subr.bf16.mxu0 0
    %968 = vmatpush1.bf16.msra.mxu0 0
    %969 = vmatprep.subr.bf16.mxu0 0
    %970 = vmatpush1.bf16.msra.mxu0 0
    %971 = vmatprep.mubr.bf16.mxu0 0
    %972 = vmatmul.mubr.bf16.gmra.mrb[0].mxu0 %v840
    %v973 = vpop.f32.mrb[0].mxu0
    %v974 = vadd.f32 0.0, %v973
    %v975 = vpop.f32.mrb[0].mxu0
    %v976 = vadd.f32 0.0, %v975
    %v977 = vpop.f32.mrb[0].mxu0
    %v978 = vpop.f32.mrb[0].mxu0
    %979 = vdwg.mxu0
    %s980 = scalar_lea.vmem [#allocation7], 384
    %v981 = vld [vmem:[%s980] sm:$0xff]
    %v982 = vld [vmem:[%s980 + $0x8] sm:$0xff]
    %v983 = vld [vmem:[%s980 + $0x10] sm:$0xff]
    %v984 = vld [vmem:[%s980 + $0x18] sm:$0xff]
    %v985 = vld [vmem:[%s980 + $0x20] sm:$0xff]
    %v986 = vld [vmem:[%s980 + $0x28] sm:$0xff]
    %v987 = vld [vmem:[%s980 + $0x30] sm:$0xff]
    %v988 = vld [vmem:[%s980 + $0x38] sm:$0xff]
    %v989 = vld [vmem:[%s980 + $0x40] sm:$0xff]
    %v990 = vld [vmem:[%s980 + $0x48] sm:$0xff]
    %v991 = vld [vmem:[%s980 + $0x50] sm:$0xff]
    %v992 = vld [vmem:[%s980 + $0x58] sm:$0xff]
    %v993 = vld [vmem:[%s980 + $0x60] sm:$0xff]
    %v994 = vld [vmem:[%s980 + $0x68] sm:$0xff]
    %v995 = vld [vmem:[%s980 + $0x70] sm:$0xff]
    %v996 = vld [vmem:[%s980 + $0x78] sm:$0xff]
    %v1013 = vunpack.c.l.b16 %v981
    %v1014 = vunpack.c.h.b16 %v981
    %v1015 = vunpack.c.l.b16 %v982
    %v1016 = vunpack.c.h.b16 %v982
    %v1017 = vunpack.c.l.b16 %v983
    %v1018 = vunpack.c.h.b16 %v983
    %v1019 = vunpack.c.l.b16 %v984
    %v1020 = vunpack.c.h.b16 %v984
    %v1021 = vunpack.c.l.b16 %v985
    %v1022 = vunpack.c.h.b16 %v985
    %v1023 = vunpack.c.l.b16 %v986
    %v1024 = vunpack.c.h.b16 %v986
    %v1025 = vunpack.c.l.b16 %v987
    %v1026 = vunpack.c.h.b16 %v987
    %v1027 = vunpack.c.l.b16 %v988
    %v1028 = vunpack.c.h.b16 %v988
    %v1029 = vunpack.c.l.b16 %v989
    %v1030 = vunpack.c.h.b16 %v989
    %v1031 = vunpack.c.l.b16 %v990
    %v1032 = vunpack.c.h.b16 %v990
    %v1033 = vunpack.c.l.b16 %v991
    %v1034 = vunpack.c.h.b16 %v991
    %v1035 = vunpack.c.l.b16 %v992
    %v1036 = vunpack.c.h.b16 %v992
    %v1037 = vunpack.c.l.b16 %v993
    %v1038 = vunpack.c.h.b16 %v993
    %v1039 = vunpack.c.l.b16 %v994
    %v1040 = vunpack.c.h.b16 %v994
    %v1041 = vunpack.c.l.b16 %v995
    %v1042 = vunpack.c.h.b16 %v995
    %v1043 = vunpack.c.l.b16 %v996
    %v1044 = vunpack.c.h.b16 %v996
    %v1045 = vpack.c.b16 %v1015, %v1013
    %v1046 = vpack.c.b16 %v1016, %v1014
    %v1047 = vpack.c.b16 %v1019, %v1017
    %v1048 = vpack.c.b16 %v1020, %v1018
    %v1049 = vpack.c.b16 %v1023, %v1021
    %v1050 = vpack.c.b16 %v1024, %v1022
    %v1051 = vpack.c.b16 %v1027, %v1025
    %v1052 = vpack.c.b16 %v1028, %v1026
    %v1053 = vpack.c.b16 %v1031, %v1029
    %v1054 = vpack.c.b16 %v1032, %v1030
    %v1055 = vpack.c.b16 %v1035, %v1033
    %v1056 = vpack.c.b16 %v1036, %v1034
    %v1057 = vpack.c.b16 %v1039, %v1037
    %v1058 = vpack.c.b16 %v1040, %v1038
    %v1059 = vpack.c.b16 %v1043, %v1041
    %v1060 = vpack.c.b16 %v1044, %v1042
    %1077 = vmatprep.subr.bf16.mxu0 %v1046
    %1078 = vmatpush1.bf16.msra.mxu0 %v1045
    %1079 = vmatprep.subr.bf16.mxu0 %v1048
    %1080 = vmatpush1.bf16.msra.mxu0 %v1047
    %1081 = vmatprep.subr.bf16.mxu0 %v1050
    %1082 = vmatpush1.bf16.msra.mxu0 %v1049
    %1083 = vmatprep.subr.bf16.mxu0 %v1052
    %1084 = vmatpush1.bf16.msra.mxu0 %v1051
    %1085 = vmatprep.subr.bf16.mxu0 %v1054
    %1086 = vmatpush1.bf16.msra.mxu0 %v1053
    %1087 = vmatprep.subr.bf16.mxu0 %v1056
    %1088 = vmatpush1.bf16.msra.mxu0 %v1055
    %1089 = vmatprep.subr.bf16.mxu0 %v1058
    %1090 = vmatpush1.bf16.msra.mxu0 %v1057
    %1091 = vmatprep.subr.bf16.mxu0 %v1060
    %1092 = vmatpush1.bf16.msra.mxu0 %v1059
    %1093 = vmatprep.subr.bf16.mxu0 0
    %1094 = vmatpush1.bf16.msra.mxu0 0
    %1095 = vmatprep.subr.bf16.mxu0 0
    %1096 = vmatpush1.bf16.msra.mxu0 0
    %1097 = vmatprep.subr.bf16.mxu0 0
    %1098 = vmatpush1.bf16.msra.mxu0 0
    %1099 = vmatprep.subr.bf16.mxu0 0
    %1100 = vmatpush1.bf16.msra.mxu0 0
    %1101 = vmatprep.subr.bf16.mxu0 0
    %1102 = vmatpush1.bf16.msra.mxu0 0
    %1103 = vmatprep.subr.bf16.mxu0 0
    %1104 = vmatpush1.bf16.msra.mxu0 0
    %1105 = vmatprep.subr.bf16.mxu0 0
    %1106 = vmatpush1.bf16.msra.mxu0 0
    %1107 = vmatprep.subr.bf16.mxu0 0
    %1108 = vmatpush1.bf16.msra.mxu0 0
    %1109 = vmatprep.mubr.bf16.mxu0 0
    %1110 = vmatmul.mubr.bf16.gmra.mrb[0].mxu0 %v841
    %v1111 = vpop.f32.mrb[0].mxu0
    %v1112 = vadd.f32 0.0, %v1111
    %v1113 = vpop.f32.mrb[0].mxu0
    %v1114 = vadd.f32 0.0, %v1113
    %v1115 = vpop.f32.mrb[0].mxu0
    %v1116 = vpop.f32.mrb[0].mxu0
    %1117 = vdwg.mxu0
    %v1118 = vlaneseq
    %v1119 = vshrl.u32 %v1118, 7
    %v1120 = vsub.s32 4, %v1119
    %v1121 = vrot.slane %v81, %v1120
    %v1122 = vmul.f32 %v733, %v1121
    %1123 = vadd.xlane.f32.xlu0 %v1122
    %v1124 = vpop.xlane.xlu0 %1123
    %v1125 = vlaneseq
    %v1126 = vshrl.u32 %v1125, 7
    %v1127 = vsub.s32 5, %v1126
    %v1128 = vrot.slane %v81, %v1127
    %v1129 = vmul.f32 %v733, %v1128
    %1130 = vadd.xlane.f32.xlu0 %v1129
    %v1131 = vpop.xlane.xlu0 %1130
    %1132 = vxpose.xlu0.b32.start [1/16] %v1124, 128
    %1133 = vxpose.xlu0.b32.cont [2/16] 0.0, 128
    %1134 = vxpose.xlu0.b32.cont [3/16] 0.0, 128
    %1135 = vxpose.xlu0.b32.cont [4/16] 0.0, 128
    %1136 = vxpose.xlu0.b32.cont [5/16] 0.0, 128
    %1137 = vxpose.xlu0.b32.cont [6/16] 0.0, 128
    %1138 = vxpose.xlu0.b32.cont [7/16] 0.0, 128
    %1139 = vxpose.xlu0.b32.cont [8/16] 0.0, 128
    %1140 = vxpose.xlu0.b32.cont [9/16] 0.0, 128
    %1141 = vxpose.xlu0.b32.cont [10/16] 0.0, 128
    %1142 = vxpose.xlu0.b32.cont [11/16] 0.0, 128
    %1143 = vxpose.xlu0.b32.cont [12/16] 0.0, 128
    %1144 = vxpose.xlu0.b32.cont [13/16] 0.0, 128
    %1145 = vxpose.xlu0.b32.cont [14/16] 0.0, 128
    %1146 = vxpose.xlu0.b32.cont [15/16] 0.0, 128
    %1147 = vxpose.xlu0.b32.end [16/16] 0.0, 128
    %v1148 = vpop.trf.xlu0
    %v1149 = vpop.trf.xlu0
    %v1150 = vpop.trf.xlu0
    %v1151 = vpop.trf.xlu0
    %v1152 = vpop.trf.xlu0
    %v1153 = vpop.trf.xlu0
    %v1154 = vpop.trf.xlu0
    %v1155 = vpop.trf.xlu0
    %v1156 = vpop.trf.xlu0
    %v1157 = vpop.trf.xlu0
    %v1158 = vpop.trf.xlu0
    %v1159 = vpop.trf.xlu0
    %v1160 = vpop.trf.xlu0
    %v1161 = vpop.trf.xlu0
    %v1162 = vpop.trf.xlu0
    %v1163 = vpop.trf.xlu0
    %v1164 = vlaneseq
    %v1165 = vshrl.u32 %v1164, 7
    %v1166 = vsub.s32 0, %v1165
    %v1167 = vrot.slane %v1148, %v1166
    %v1168 = vadd.f32 %v1131, %v1167
    %v1169 = vmul.f32 %v1168, %v76
    %v1170 = vmax.f32 %v1169, 0.0
    %v1171 = vsel %vm415, %v1170, -inf
    %1172 = vmax.xlane.f32.xlu0 %v1171
    %v1173 = vpop.xlane.xlu0 %1172
    %v1174 = vsub.f32 %v1170, %v1173
    %v1175 = vmul.f32 %v1174, 1.442695
    %v1176 = vpow.pop %v1175
    %v1177 = vmul.f32 %v1176, %v76
    %v1178 = vsel %vm415, %v1177, 0.0
    %1179 = vadd.xlane.f32.xlu0 %v1178
    %v1180 = vpop.xlane.xlu0 %1179
    %v1181 = vmax.f32 %v1180, 1.0
    %v1182 = vrcp.pop %v1181
    %v1183 = vmul.f32 %v1177, %v1182
    %v1184 = vlaneseq
    %v1185 = vshrl.u32 %v1184, 7
    %v1186 = vsub.s32 7, %v1185
    %v1187 = vrot.slane %v81, %v1186
    %v1188 = vmul.f32 %v733, %v1187
    %1189 = vadd.xlane.f32.xlu0 %v1188
    %v1190 = vpop.xlane.xlu0 %1189
    %v1191 = vlaneseq
    %v1192 = vshrl.u32 %v1191, 7
    %v1193 = vsub.s32 0, %v1192
    %v1194 = vrot.slane %v82, %v1193
    %v1195 = vmul.f32 %v839, %v1194
    %1196 = vadd.xlane.f32.xlu0 %v1195
    %v1197 = vpop.xlane.xlu0 %1196
    %1198 = vxpose.xlu0.b32.start [1/16] %v1190, 128
    %1199 = vxpose.xlu0.b32.cont [2/16] 0.0, 128
    %1200 = vxpose.xlu0.b32.cont [3/16] 0.0, 128
    %1201 = vxpose.xlu0.b32.cont [4/16] 0.0, 128
    %1202 = vxpose.xlu0.b32.cont [5/16] 0.0, 128
    %1203 = vxpose.xlu0.b32.cont [6/16] 0.0, 128
    %1204 = vxpose.xlu0.b32.cont [7/16] 0.0, 128
    %1205 = vxpose.xlu0.b32.cont [8/16] 0.0, 128
    %1206 = vxpose.xlu0.b32.cont [9/16] 0.0, 128
    %1207 = vxpose.xlu0.b32.cont [10/16] 0.0, 128
    %1208 = vxpose.xlu0.b32.cont [11/16] 0.0, 128
    %1209 = vxpose.xlu0.b32.cont [12/16] 0.0, 128
    %1210 = vxpose.xlu0.b32.cont [13/16] 0.0, 128
    %1211 = vxpose.xlu0.b32.cont [14/16] 0.0, 128
    %1212 = vxpose.xlu0.b32.cont [15/16] 0.0, 128
    %1213 = vxpose.xlu0.b32.end [16/16] 0.0, 128
    %v1214 = vpop.trf.xlu0
    %v1215 = vpop.trf.xlu0
    %v1216 = vpop.trf.xlu0
    %v1217 = vpop.trf.xlu0
    %v1218 = vpop.trf.xlu0
    %v1219 = vpop.trf.xlu0
    %v1220 = vpop.trf.xlu0
    %v1221 = vpop.trf.xlu0
    %v1222 = vpop.trf.xlu0
    %v1223 = vpop.trf.xlu0
    %v1224 = vpop.trf.xlu0
    %v1225 = vpop.trf.xlu0
    %v1226 = vpop.trf.xlu0
    %v1227 = vpop.trf.xlu0
    %v1228 = vpop.trf.xlu0
    %v1229 = vpop.trf.xlu0
    %v1230 = vlaneseq
    %v1231 = vshrl.u32 %v1230, 7
    %v1232 = vsub.s32 0, %v1231
    %v1233 = vrot.slane %v1214, %v1232
    %v1234 = vadd.f32 %v1197, %v1233
    %v1235 = vmul.f32 %v1234, %v77
    %v1236 = vmax.f32 %v1235, 0.0
    %v1237 = vsel %vm415, %v1236, -inf
    %1238 = vmax.xlane.f32.xlu0 %v1237
    %v1239 = vpop.xlane.xlu0 %1238
    %v1240 = vsub.f32 %v1236, %v1239
    %v1241 = vmul.f32 %v1240, 1.442695
    %v1242 = vpow.pop %v1241
    %v1243 = vmul.f32 %v1242, %v77
    %v1244 = vsel %vm415, %v1243, 0.0
    %1245 = vadd.xlane.f32.xlu0 %v1244
    %v1246 = vpop.xlane.xlu0 %1245
    %v1247 = vmax.f32 %v1246, 1.0
    %v1248 = vrcp.pop %v1247
    %v1249 = vmul.f32 %v1243, %v1248
    %v1250 = vlaneseq
    %v1251 = vshrl.u32 %v1250, 7
    %v1252 = vsub.s32 2, %v1251
    %v1253 = vrot.slane %v82, %v1252
    %v1254 = vmul.f32 %v839, %v1253
    %1255 = vadd.xlane.f32.xlu0 %v1254
    %v1256 = vpop.xlane.xlu0 %1255
    %v1257 = vlaneseq
    %v1258 = vshrl.u32 %v1257, 7
    %v1259 = vsub.s32 3, %v1258
    %v1260 = vrot.slane %v82, %v1259
    %v1261 = vmul.f32 %v839, %v1260
    %1262 = vadd.xlane.f32.xlu0 %v1261
    %v1263 = vpop.xlane.xlu0 %1262
    %1264 = vxpose.xlu0.b32.start [1/16] %v1256, 128
    %1265 = vxpose.xlu0.b32.cont [2/16] 0.0, 128
    %1266 = vxpose.xlu0.b32.cont [3/16] 0.0, 128
    %1267 = vxpose.xlu0.b32.cont [4/16] 0.0, 128
    %1268 = vxpose.xlu0.b32.cont [5/16] 0.0, 128
    %1269 = vxpose.xlu0.b32.cont [6/16] 0.0, 128
    %1270 = vxpose.xlu0.b32.cont [7/16] 0.0, 128
    %1271 = vxpose.xlu0.b32.cont [8/16] 0.0, 128
    %1272 = vxpose.xlu0.b32.cont [9/16] 0.0, 128
    %1273 = vxpose.xlu0.b32.cont [10/16] 0.0, 128
    %1274 = vxpose.xlu0.b32.cont [11/16] 0.0, 128
    %1275 = vxpose.xlu0.b32.cont [12/16] 0.0, 128
    %1276 = vxpose.xlu0.b32.cont [13/16] 0.0, 128
    %1277 = vxpose.xlu0.b32.cont [14/16] 0.0, 128
    %1278 = vxpose.xlu0.b32.cont [15/16] 0.0, 128
    %1279 = vxpose.xlu0.b32.end [16/16] 0.0, 128
    %v1280 = vpop.trf.xlu0
    %v1281 = vpop.trf.xlu0
    %v1282 = vpop.trf.xlu0
    %v1283 = vpop.trf.xlu0
    %v1284 = vpop.trf.xlu0
    %v1285 = vpop.trf.xlu0
    %v1286 = vpop.trf.xlu0
    %v1287 = vpop.trf.xlu0
    %v1288 = vpop.trf.xlu0
    %v1289 = vpop.trf.xlu0
    %v1290 = vpop.trf.xlu0
    %v1291 = vpop.trf.xlu0
    %v1292 = vpop.trf.xlu0
    %v1293 = vpop.trf.xlu0
    %v1294 = vpop.trf.xlu0
    %v1295 = vpop.trf.xlu0
    %v1296 = vlaneseq
    %v1297 = vshrl.u32 %v1296, 7
    %v1298 = vsub.s32 0, %v1297
    %v1299 = vrot.slane %v1280, %v1298
    %v1300 = vadd.f32 %v1263, %v1299
    %v1301 = vmul.f32 %v1300, %v78
    %v1302 = vmax.f32 %v1301, 0.0
    %v1303 = vsel %vm415, %v1302, -inf
    %1304 = vmax.xlane.f32.xlu0 %v1303
    %v1305 = vpop.xlane.xlu0 %1304
    %v1306 = vsub.f32 %v1302, %v1305
    %v1307 = vmul.f32 %v1306, 1.442695
    %v1308 = vpow.pop %v1307
    %v1309 = vmul.f32 %v1308, %v78
    %v1310 = vsel %vm415, %v1309, 0.0
    %1311 = vadd.xlane.f32.xlu0 %v1310
    %v1312 = vpop.xlane.xlu0 %1311
    %v1313 = vmax.f32 %v1312, 1.0
    %v1314 = vrcp.pop %v1313
    %v1315 = vmul.f32 %v1309, %v1314
    %v1316 = vlaneseq
    %v1317 = vshrl.u32 %v1316, 7
    %v1318 = vsub.s32 5, %v1317
    %v1319 = vrot.slane %v82, %v1318
    %v1320 = vmul.f32 %v839, %v1319
    %1321 = vadd.xlane.f32.xlu0 %v1320
    %v1322 = vpop.xlane.xlu0 %1321
    %v1323 = vlaneseq
    %v1324 = vshrl.u32 %v1323, 7
    %v1325 = vsub.s32 6, %v1324
    %v1326 = vrot.slane %v82, %v1325
    %v1327 = vmul.f32 %v733, %v1326
    %1328 = vadd.xlane.f32.xlu0 %v1327
    %v1329 = vpop.xlane.xlu0 %1328
    %1330 = vxpose.xlu0.b32.start [1/16] %v1322, 128
    %1331 = vxpose.xlu0.b32.cont [2/16] 0.0, 128
    %1332 = vxpose.xlu0.b32.cont [3/16] 0.0, 128
    %1333 = vxpose.xlu0.b32.cont [4/16] 0.0, 128
    %1334 = vxpose.xlu0.b32.cont [5/16] 0.0, 128
    %1335 = vxpose.xlu0.b32.cont [6/16] 0.0, 128
    %1336 = vxpose.xlu0.b32.cont [7/16] 0.0, 128
    %1337 = vxpose.xlu0.b32.cont [8/16] 0.0, 128
    %1338 = vxpose.xlu0.b32.cont [9/16] 0.0, 128
    %1339 = vxpose.xlu0.b32.cont [10/16] 0.0, 128
    %1340 = vxpose.xlu0.b32.cont [11/16] 0.0, 128
    %1341 = vxpose.xlu0.b32.cont [12/16] 0.0, 128
    %1342 = vxpose.xlu0.b32.cont [13/16] 0.0, 128
    %1343 = vxpose.xlu0.b32.cont [14/16] 0.0, 128
    %1344 = vxpose.xlu0.b32.cont [15/16] 0.0, 128
    %1345 = vxpose.xlu0.b32.end [16/16] 0.0, 128
    %v1346 = vpop.trf.xlu0
    %v1347 = vpop.trf.xlu0
    %v1348 = vpop.trf.xlu0
    %v1349 = vpop.trf.xlu0
    %v1350 = vpop.trf.xlu0
    %v1351 = vpop.trf.xlu0
    %v1352 = vpop.trf.xlu0
    %v1353 = vpop.trf.xlu0
    %v1354 = vpop.trf.xlu0
    %v1355 = vpop.trf.xlu0
    %v1356 = vpop.trf.xlu0
    %v1357 = vpop.trf.xlu0
    %v1358 = vpop.trf.xlu0
    %v1359 = vpop.trf.xlu0
    %v1360 = vpop.trf.xlu0
    %v1361 = vpop.trf.xlu0
    %v1362 = vlaneseq
    %v1363 = vshrl.u32 %v1362, 7
    %v1364 = vsub.s32 0, %v1363
    %v1365 = vrot.slane %v1346, %v1364
    %v1366 = vadd.f32 %v1329, %v1365
    %v1367 = vmul.f32 %v1366, %v79
    %v1368 = vmax.f32 %v1367, 0.0
    %v1369 = vsel %vm415, %v1368, -inf
    %1370 = vmax.xlane.f32.xlu0 %v1369
    %v1371 = vpop.xlane.xlu0 %1370
    %v1372 = vsub.f32 %v1368, %v1371
    %v1373 = vmul.f32 %v1372, 1.442695
    %v1374 = vpow.pop %v1373
    %v1375 = vmul.f32 %v1374, %v79
    %v1376 = vsel %vm415, %v1375, 0.0
    %1377 = vadd.xlane.f32.xlu0 %v1376
    %v1378 = vpop.xlane.xlu0 %1377
    %v1379 = vmax.f32 %v1378, 1.0
    %v1380 = vrcp.pop %v1379
    %v1381 = vmul.f32 %v1375, %v1380
    %v1382 = vpack.c.bf16 %v1183, %v1183
    %v1383 = vpack.c.bf16 %v974, %v974
    %v1384 = vpack.c.bf16 %v1381, %v1381
    %v1385 = vpack.c.bf16 %v1114, %v1114
    %v1387 = vsel %vm415, %v1384, 0
    %v1390 = vsel %vm634, %v1385, 0
    %1392 = vmatprep.subr.bf16.mxu0 0
    %1393 = vmatpush1.bf16.msra.mxu0 %v1390
    %1394 = vmatprep.subr.bf16.mxu0 0
    %1395 = vmatpush1.bf16.msra.mxu0 0
    %1396 = vmatprep.subr.bf16.mxu0 0
    %1397 = vmatpush1.bf16.msra.mxu0 0
    %1398 = vmatprep.subr.bf16.mxu0 0
    %1399 = vmatpush1.bf16.msra.mxu0 0
    %1400 = vmatprep.subr.bf16.mxu0 0
    %1401 = vmatpush1.bf16.msra.mxu0 0
    %1402 = vmatprep.subr.bf16.mxu0 0
    %1403 = vmatpush1.bf16.msra.mxu0 0
    %1404 = vmatprep.subr.bf16.mxu0 0
    %1405 = vmatpush1.bf16.msra.mxu0 0
    %1406 = vmatprep.subr.bf16.mxu0 0
    %1407 = vmatpush1.bf16.msra.mxu0 0
    %1408 = vmatprep.subr.bf16.mxu0 0
    %1409 = vmatpush1.bf16.msra.mxu0 0
    %1410 = vmatprep.subr.bf16.mxu0 0
    %1411 = vmatpush1.bf16.msra.mxu0 0
    %1412 = vmatprep.subr.bf16.mxu0 0
    %1413 = vmatpush1.bf16.msra.mxu0 0
    %1414 = vmatprep.subr.bf16.mxu0 0
    %1415 = vmatpush1.bf16.msra.mxu0 0
    %1416 = vmatprep.subr.bf16.mxu0 0
    %1417 = vmatpush1.bf16.msra.mxu0 0
    %1418 = vmatprep.subr.bf16.mxu0 0
    %1419 = vmatpush1.bf16.msra.mxu0 0
    %1420 = vmatprep.subr.bf16.mxu0 0
    %1421 = vmatpush1.bf16.msra.mxu0 0
    %1422 = vmatprep.subr.bf16.mxu0 0
    %1423 = vmatpush1.bf16.msra.mxu0 0
    %1424 = vmatprep.mubr.bf16.mxu0 0
    %1425 = vmatmul.mubr.bf16.gmra.mrb[0].mxu0 %v1387
    %v1426 = vpop.f32.mrb[0].mxu0
    %v1427 = vadd.f32 0.0, %v1426
    %v1428 = vpop.f32.mrb[0].mxu0
    %v1429 = vpop.f32.mrb[0].mxu0
    %v1430 = vpop.f32.mrb[0].mxu0
    %1431 = vdwg.mxu0
    %v1433 = vsel %vm415, %v1382, 0
    %v1436 = vsel %vm634, %v1383, 0
    %1438 = vmatprep.subr.bf16.mxu0 0
    %1439 = vmatpush1.bf16.msra.mxu0 %v1436
    %1440 = vmatprep.subr.bf16.mxu0 0
    %1441 = vmatpush1.bf16.msra.mxu0 0
    %1442 = vmatprep.subr.bf16.mxu0 0
    %1443 = vmatpush1.bf16.msra.mxu0 0
    %1444 = vmatprep.subr.bf16.mxu0 0
    %1445 = vmatpush1.bf16.msra.mxu0 0
    %1446 = vmatprep.subr.bf16.mxu0 0
    %1447 = vmatpush1.bf16.msra.mxu0 0
    %1448 = vmatprep.subr.bf16.mxu0 0
    %1449 = vmatpush1.bf16.msra.mxu0 0
    %1450 = vmatprep.subr.bf16.mxu0 0
    %1451 = vmatpush1.bf16.msra.mxu0 0
    %1452 = vmatprep.subr.bf16.mxu0 0
    %1453 = vmatpush1.bf16.msra.mxu0 0
    %1454 = vmatprep.subr.bf16.mxu0 0
    %1455 = vmatpush1.bf16.msra.mxu0 0
    %1456 = vmatprep.subr.bf16.mxu0 0
    %1457 = vmatpush1.bf16.msra.mxu0 0
    %1458 = vmatprep.subr.bf16.mxu0 0
    %1459 = vmatpush1.bf16.msra.mxu0 0
    %1460 = vmatprep.subr.bf16.mxu0 0
    %1461 = vmatpush1.bf16.msra.mxu0 0
    %1462 = vmatprep.subr.bf16.mxu0 0
    %1463 = vmatpush1.bf16.msra.mxu0 0
    %1464 = vmatprep.subr.bf16.mxu0 0
    %1465 = vmatpush1.bf16.msra.mxu0 0
    %1466 = vmatprep.subr.bf16.mxu0 0
    %1467 = vmatpush1.bf16.msra.mxu0 0
    %1468 = vmatprep.subr.bf16.mxu0 0
    %1469 = vmatpush1.bf16.msra.mxu0 0
    %1470 = vmatprep.mubr.bf16.mxu0 0
    %1471 = vmatmul.mubr.bf16.gmra.mrb[0].mxu0 %v1433
    %v1472 = vpop.f32.mrb[0].mxu0
    %v1473 = vadd.f32 %v1427, %v1472
    %v1474 = vpop.f32.mrb[0].mxu0
    %v1475 = vpop.f32.mrb[0].mxu0
    %v1476 = vpop.f32.mrb[0].mxu0
    %1477 = vdwg.mxu0
    %v1478 = vlaneseq
    %v1479 = vshrl.u32 %v1478, 7
    %v1480 = vsub.s32 6, %v1479
    %v1481 = vrot.slane %v81, %v1480
    %v1482 = vadd.f32 %v1473, %v1481
    %v1483 = vlaneseq
    %v1484 = vshrl.u32 %v1483, 7
    %v1485 = vsub.s32 7, %v1484
    %v1486 = vrot.slane %v82, %v1485
    %v1487 = vadd.f32 %v1482, %v1486
    %v1488 = vpack.c.bf16 %v1315, %v1315
    %v1489 = vpack.c.bf16 %v1112, %v1112
    %v1490 = vpack.c.bf16 %v1249, %v1249
    %v1491 = vpack.c.bf16 %v976, %v976
    %v1493 = vsel %vm415, %v1490, 0
    %v1496 = vsel %vm634, %v1491, 0
    %1498 = vmatprep.subr.bf16.mxu0 0
    %1499 = vmatpush1.bf16.msra.mxu0 %v1496
    %1500 = vmatprep.subr.bf16.mxu0 0
    %1501 = vmatpush1.bf16.msra.mxu0 0
    %1502 = vmatprep.subr.bf16.mxu0 0
    %1503 = vmatpush1.bf16.msra.mxu0 0
    %1504 = vmatprep.subr.bf16.mxu0 0
    %1505 = vmatpush1.bf16.msra.mxu0 0
    %1506 = vmatprep.subr.bf16.mxu0 0
    %1507 = vmatpush1.bf16.msra.mxu0 0
    %1508 = vmatprep.subr.bf16.mxu0 0
    %1509 = vmatpush1.bf16.msra.mxu0 0
    %1510 = vmatprep.subr.bf16.mxu0 0
    %1511 = vmatpush1.bf16.msra.mxu0 0
    %1512 = vmatprep.subr.bf16.mxu0 0
    %1513 = vmatpush1.bf16.msra.mxu0 0
    %1514 = vmatprep.subr.bf16.mxu0 0
    %1515 = vmatpush1.bf16.msra.mxu0 0
    %1516 = vmatprep.subr.bf16.mxu0 0
    %1517 = vmatpush1.bf16.msra.mxu0 0
    %1518 = vmatprep.subr.bf16.mxu0 0
    %1519 = vmatpush1.bf16.msra.mxu0 0
    %1520 = vmatprep.subr.bf16.mxu0 0
    %1521 = vmatpush1.bf16.msra.mxu0 0
    %1522 = vmatprep.subr.bf16.mxu0 0
    %1523 = vmatpush1.bf16.msra.mxu0 0
    %1524 = vmatprep.subr.bf16.mxu0 0
    %1525 = vmatpush1.bf16.msra.mxu0 0
    %1526 = vmatprep.subr.bf16.mxu0 0
    %1527 = vmatpush1.bf16.msra.mxu0 0
    %1528 = vmatprep.subr.bf16.mxu0 0
    %1529 = vmatpush1.bf16.msra.mxu0 0
    %1530 = vmatprep.mubr.bf16.mxu0 0
    %1531 = vmatmul.mubr.bf16.gmra.mrb[0].mxu0 %v1493
    %v1532 = vpop.f32.mrb[0].mxu0
    %v1533 = vadd.f32 0.0, %v1532
    %v1534 = vpop.f32.mrb[0].mxu0
    %v1535 = vpop.f32.mrb[0].mxu0
    %v1536 = vpop.f32.mrb[0].mxu0
    %1537 = vdwg.mxu0
    %v1539 = vsel %vm415, %v1488, 0
    %v1542 = vsel %vm634, %v1489, 0
    %1544 = vmatprep.subr.bf16.mxu0 0
    %1545 = vmatpush1.bf16.msra.mxu0 %v1542
    %1546 = vmatprep.subr.bf16.mxu0 0
    %1547 = vmatpush1.bf16.msra.mxu0 0
    %1548 = vmatprep.subr.bf16.mxu0 0
    %1549 = vmatpush1.bf16.msra.mxu0 0
    %1550 = vmatprep.subr.bf16.mxu0 0
    %1551 = vmatpush1.bf16.msra.mxu0 0
    %1552 = vmatprep.subr.bf16.mxu0 0
    %1553 = vmatpush1.bf16.msra.mxu0 0
    %1554 = vmatprep.subr.bf16.mxu0 0
    %1555 = vmatpush1.bf16.msra.mxu0 0
    %1556 = vmatprep.subr.bf16.mxu0 0
    %1557 = vmatpush1.bf16.msra.mxu0 0
    %1558 = vmatprep.subr.bf16.mxu0 0
    %1559 = vmatpush1.bf16.msra.mxu0 0
    %1560 = vmatprep.subr.bf16.mxu0 0
    %1561 = vmatpush1.bf16.msra.mxu0 0
    %1562 = vmatprep.subr.bf16.mxu0 0
    %1563 = vmatpush1.bf16.msra.mxu0 0
    %1564 = vmatprep.subr.bf16.mxu0 0
    %1565 = vmatpush1.bf16.msra.mxu0 0
    %1566 = vmatprep.subr.bf16.mxu0 0
    %1567 = vmatpush1.bf16.msra.mxu0 0
    %1568 = vmatprep.subr.bf16.mxu0 0
    %1569 = vmatpush1.bf16.msra.mxu0 0
    %1570 = vmatprep.subr.bf16.mxu0 0
    %1571 = vmatpush1.bf16.msra.mxu0 0
    %1572 = vmatprep.subr.bf16.mxu0 0
    %1573 = vmatpush1.bf16.msra.mxu0 0
    %1574 = vmatprep.subr.bf16.mxu0 0
    %1575 = vmatpush1.bf16.msra.mxu0 0
    %1576 = vmatprep.mubr.bf16.mxu0 0
    %1577 = vmatmul.mubr.bf16.gmra.mrb[0].mxu0 %v1539
    %v1578 = vpop.f32.mrb[0].mxu0
    %v1579 = vadd.f32 %v1533, %v1578
    %v1580 = vpop.f32.mrb[0].mxu0
    %v1581 = vpop.f32.mrb[0].mxu0
    %v1582 = vpop.f32.mrb[0].mxu0
    %1583 = vdwg.mxu0
    %v1584 = vlaneseq
    %v1585 = vshrl.u32 %v1584, 7
    %v1586 = vsub.s32 1, %v1585
    %v1587 = vrot.slane %v82, %v1586
    %v1588 = vadd.f32 %v1579, %v1587
    %v1589 = vlaneseq
    %v1590 = vshrl.u32 %v1589, 7
    %v1591 = vsub.s32 4, %v1590
    %v1592 = vrot.slane %v82, %v1591
    %v1593 = vadd.f32 %v1588, %v1592
    %v1594 = vpack.c.bf16 %v1487, %v1487
    %v1595 = vpack.c.bf16 %v1593, %v1593
    %s1596 = scalar_lea.vmem [#allocation7], 512
    %v1597 = vld [vmem:[%s1596] sm:$0xff]
    %v1598 = vld [vmem:[%s1596 + $0x8] sm:$0xff]
    %v1599 = vld [vmem:[%s1596 + $0x10] sm:$0xff]
    %v1600 = vld [vmem:[%s1596 + $0x18] sm:$0xff]
    %v1601 = vld [vmem:[%s1596 + $0x20] sm:$0xff]
    %v1602 = vld [vmem:[%s1596 + $0x28] sm:$0xff]
    %v1603 = vld [vmem:[%s1596 + $0x30] sm:$0xff]
    %v1604 = vld [vmem:[%s1596 + $0x38] sm:$0xff]
    %v1605 = vld [vmem:[%s1596 + $0x40] sm:$0xff]
    %v1606 = vld [vmem:[%s1596 + $0x48] sm:$0xff]
    %v1607 = vld [vmem:[%s1596 + $0x50] sm:$0xff]
    %v1608 = vld [vmem:[%s1596 + $0x58] sm:$0xff]
    %v1609 = vld [vmem:[%s1596 + $0x60] sm:$0xff]
    %v1610 = vld [vmem:[%s1596 + $0x68] sm:$0xff]
    %v1611 = vld [vmem:[%s1596 + $0x70] sm:$0xff]
    %v1612 = vld [vmem:[%s1596 + $0x78] sm:$0xff]
    %v1629 = vunpack.c.l.b16 %v1597
    %v1630 = vunpack.c.h.b16 %v1597
    %v1631 = vunpack.c.l.b16 %v1598
    %v1632 = vunpack.c.h.b16 %v1598
    %v1633 = vunpack.c.l.b16 %v1599
    %v1634 = vunpack.c.h.b16 %v1599
    %v1635 = vunpack.c.l.b16 %v1600
    %v1636 = vunpack.c.h.b16 %v1600
    %v1637 = vunpack.c.l.b16 %v1601
    %v1638 = vunpack.c.h.b16 %v1601
    %v1639 = vunpack.c.l.b16 %v1602
    %v1640 = vunpack.c.h.b16 %v1602
    %v1641 = vunpack.c.l.b16 %v1603
    %v1642 = vunpack.c.h.b16 %v1603
    %v1643 = vunpack.c.l.b16 %v1604
    %v1644 = vunpack.c.h.b16 %v1604
    %v1645 = vunpack.c.l.b16 %v1605
    %v1646 = vunpack.c.h.b16 %v1605
    %v1647 = vunpack.c.l.b16 %v1606
    %v1648 = vunpack.c.h.b16 %v1606
    %v1649 = vunpack.c.l.b16 %v1607
    %v1650 = vunpack.c.h.b16 %v1607
    %v1651 = vunpack.c.l.b16 %v1608
    %v1652 = vunpack.c.h.b16 %v1608
    %v1653 = vunpack.c.l.b16 %v1609
    %v1654 = vunpack.c.h.b16 %v1609
    %v1655 = vunpack.c.l.b16 %v1610
    %v1656 = vunpack.c.h.b16 %v1610
    %v1657 = vunpack.c.l.b16 %v1611
    %v1658 = vunpack.c.h.b16 %v1611
    %v1659 = vunpack.c.l.b16 %v1612
    %v1660 = vunpack.c.h.b16 %v1612
    %v1661 = vpack.c.b16 %v1631, %v1629
    %v1662 = vpack.c.b16 %v1632, %v1630
    %v1663 = vpack.c.b16 %v1635, %v1633
    %v1664 = vpack.c.b16 %v1636, %v1634
    %v1665 = vpack.c.b16 %v1639, %v1637
    %v1666 = vpack.c.b16 %v1640, %v1638
    %v1667 = vpack.c.b16 %v1643, %v1641
    %v1668 = vpack.c.b16 %v1644, %v1642
    %v1669 = vpack.c.b16 %v1647, %v1645
    %v1670 = vpack.c.b16 %v1648, %v1646
    %v1671 = vpack.c.b16 %v1651, %v1649
    %v1672 = vpack.c.b16 %v1652, %v1650
    %v1673 = vpack.c.b16 %v1655, %v1653
    %v1674 = vpack.c.b16 %v1656, %v1654
    %v1675 = vpack.c.b16 %v1659, %v1657
    %v1676 = vpack.c.b16 %v1660, %v1658
    %1693 = vmatprep.subr.bf16.mxu0 %v1662
    %1694 = vmatpush1.bf16.msra.mxu0 %v1661
    %1695 = vmatprep.subr.bf16.mxu0 %v1664
    %1696 = vmatpush1.bf16.msra.mxu0 %v1663
    %1697 = vmatprep.subr.bf16.mxu0 %v1666
    %1698 = vmatpush1.bf16.msra.mxu0 %v1665
    %1699 = vmatprep.subr.bf16.mxu0 %v1668
    %1700 = vmatpush1.bf16.msra.mxu0 %v1667
    %1701 = vmatprep.subr.bf16.mxu0 %v1670
    %1702 = vmatpush1.bf16.msra.mxu0 %v1669
    %1703 = vmatprep.subr.bf16.mxu0 %v1672
    %1704 = vmatpush1.bf16.msra.mxu0 %v1671
    %1705 = vmatprep.subr.bf16.mxu0 %v1674
    %1706 = vmatpush1.bf16.msra.mxu0 %v1673
    %1707 = vmatprep.subr.bf16.mxu0 %v1676
    %1708 = vmatpush1.bf16.msra.mxu0 %v1675
    %1709 = vmatprep.subr.bf16.mxu0 0
    %1710 = vmatpush1.bf16.msra.mxu0 0
    %1711 = vmatprep.subr.bf16.mxu0 0
    %1712 = vmatpush1.bf16.msra.mxu0 0
    %1713 = vmatprep.subr.bf16.mxu0 0
    %1714 = vmatpush1.bf16.msra.mxu0 0
    %1715 = vmatprep.subr.bf16.mxu0 0
    %1716 = vmatpush1.bf16.msra.mxu0 0
    %1717 = vmatprep.subr.bf16.mxu0 0
    %1718 = vmatpush1.bf16.msra.mxu0 0
    %1719 = vmatprep.subr.bf16.mxu0 0
    %1720 = vmatpush1.bf16.msra.mxu0 0
    %1721 = vmatprep.subr.bf16.mxu0 0
    %1722 = vmatpush1.bf16.msra.mxu0 0
    %1723 = vmatprep.subr.bf16.mxu0 0
    %1724 = vmatpush1.bf16.msra.mxu0 0
    %1725 = vmatprep.mubr.bf16.mxu0 0
    %1726 = vmatmul.mubr.bf16.gmra.mrb[0].mxu0 %v1594
    %v1727 = vpop.f32.mrb[0].mxu0
    %v1728 = vadd.f32 0.0, %v1727
    %v1729 = vpop.f32.mrb[0].mxu0
    %v1730 = vadd.f32 0.0, %v1729
    %v1731 = vpop.f32.mrb[0].mxu0
    %v1732 = vpop.f32.mrb[0].mxu0
    %1733 = vdwg.mxu0
    %s1734 = scalar_lea.vmem [#allocation7], 640
    %v1735 = vld [vmem:[%s1734] sm:$0xff]
    %v1736 = vld [vmem:[%s1734 + $0x8] sm:$0xff]
    %v1737 = vld [vmem:[%s1734 + $0x10] sm:$0xff]
    %v1738 = vld [vmem:[%s1734 + $0x18] sm:$0xff]
    %v1739 = vld [vmem:[%s1734 + $0x20] sm:$0xff]
    %v1740 = vld [vmem:[%s1734 + $0x28] sm:$0xff]
    %v1741 = vld [vmem:[%s1734 + $0x30] sm:$0xff]
    %v1742 = vld [vmem:[%s1734 + $0x38] sm:$0xff]
    %v1743 = vld [vmem:[%s1734 + $0x40] sm:$0xff]
    %v1744 = vld [vmem:[%s1734 + $0x48] sm:$0xff]
    %v1745 = vld [vmem:[%s1734 + $0x50] sm:$0xff]
    %v1746 = vld [vmem:[%s1734 + $0x58] sm:$0xff]
    %v1747 = vld [vmem:[%s1734 + $0x60] sm:$0xff]
    %v1748 = vld [vmem:[%s1734 + $0x68] sm:$0xff]
    %v1749 = vld [vmem:[%s1734 + $0x70] sm:$0xff]
    %v1750 = vld [vmem:[%s1734 + $0x78] sm:$0xff]
    %v1767 = vunpack.c.l.b16 %v1735
    %v1768 = vunpack.c.h.b16 %v1735
    %v1769 = vunpack.c.l.b16 %v1736
    %v1770 = vunpack.c.h.b16 %v1736
    %v1771 = vunpack.c.l.b16 %v1737
    %v1772 = vunpack.c.h.b16 %v1737
    %v1773 = vunpack.c.l.b16 %v1738
    %v1774 = vunpack.c.h.b16 %v1738
    %v1775 = vunpack.c.l.b16 %v1739
    %v1776 = vunpack.c.h.b16 %v1739
    %v1777 = vunpack.c.l.b16 %v1740
    %v1778 = vunpack.c.h.b16 %v1740
    %v1779 = vunpack.c.l.b16 %v1741
    %v1780 = vunpack.c.h.b16 %v1741
    %v1781 = vunpack.c.l.b16 %v1742
    %v1782 = vunpack.c.h.b16 %v1742
    %v1783 = vunpack.c.l.b16 %v1743
    %v1784 = vunpack.c.h.b16 %v1743
    %v1785 = vunpack.c.l.b16 %v1744
    %v1786 = vunpack.c.h.b16 %v1744
    %v1787 = vunpack.c.l.b16 %v1745
    %v1788 = vunpack.c.h.b16 %v1745
    %v1789 = vunpack.c.l.b16 %v1746
    %v1790 = vunpack.c.h.b16 %v1746
    %v1791 = vunpack.c.l.b16 %v1747
    %v1792 = vunpack.c.h.b16 %v1747
    %v1793 = vunpack.c.l.b16 %v1748
    %v1794 = vunpack.c.h.b16 %v1748
    %v1795 = vunpack.c.l.b16 %v1749
    %v1796 = vunpack.c.h.b16 %v1749
    %v1797 = vunpack.c.l.b16 %v1750
    %v1798 = vunpack.c.h.b16 %v1750
    %v1799 = vpack.c.b16 %v1769, %v1767
    %v1800 = vpack.c.b16 %v1770, %v1768
    %v1801 = vpack.c.b16 %v1773, %v1771
    %v1802 = vpack.c.b16 %v1774, %v1772
    %v1803 = vpack.c.b16 %v1777, %v1775
    %v1804 = vpack.c.b16 %v1778, %v1776
    %v1805 = vpack.c.b16 %v1781, %v1779
    %v1806 = vpack.c.b16 %v1782, %v1780
    %v1807 = vpack.c.b16 %v1785, %v1783
    %v1808 = vpack.c.b16 %v1786, %v1784
    %v1809 = vpack.c.b16 %v1789, %v1787
    %v1810 = vpack.c.b16 %v1790, %v1788
    %v1811 = vpack.c.b16 %v1793, %v1791
    %v1812 = vpack.c.b16 %v1794, %v1792
    %v1813 = vpack.c.b16 %v1797, %v1795
    %v1814 = vpack.c.b16 %v1798, %v1796
    %1831 = vmatprep.subr.bf16.mxu0 %v1800
    %1832 = vmatpush1.bf16.msra.mxu0 %v1799
    %1833 = vmatprep.subr.bf16.mxu0 %v1802
    %1834 = vmatpush1.bf16.msra.mxu0 %v1801
    %1835 = vmatprep.subr.bf16.mxu0 %v1804
    %1836 = vmatpush1.bf16.msra.mxu0 %v1803
    %1837 = vmatprep.subr.bf16.mxu0 %v1806
    %1838 = vmatpush1.bf16.msra.mxu0 %v1805
    %1839 = vmatprep.subr.bf16.mxu0 %v1808
    %1840 = vmatpush1.bf16.msra.mxu0 %v1807
    %1841 = vmatprep.subr.bf16.mxu0 %v1810
    %1842 = vmatpush1.bf16.msra.mxu0 %v1809
    %1843 = vmatprep.subr.bf16.mxu0 %v1812
    %1844 = vmatpush1.bf16.msra.mxu0 %v1811
    %1845 = vmatprep.subr.bf16.mxu0 %v1814
    %1846 = vmatpush1.bf16.msra.mxu0 %v1813
    %1847 = vmatprep.subr.bf16.mxu0 0
    %1848 = vmatpush1.bf16.msra.mxu0 0
    %1849 = vmatprep.subr.bf16.mxu0 0
    %1850 = vmatpush1.bf16.msra.mxu0 0
    %1851 = vmatprep.subr.bf16.mxu0 0
    %1852 = vmatpush1.bf16.msra.mxu0 0
    %1853 = vmatprep.subr.bf16.mxu0 0
    %1854 = vmatpush1.bf16.msra.mxu0 0
    %1855 = vmatprep.subr.bf16.mxu0 0
    %1856 = vmatpush1.bf16.msra.mxu0 0
    %1857 = vmatprep.subr.bf16.mxu0 0
    %1858 = vmatpush1.bf16.msra.mxu0 0
    %1859 = vmatprep.subr.bf16.mxu0 0
    %1860 = vmatpush1.bf16.msra.mxu0 0
    %1861 = vmatprep.subr.bf16.mxu0 0
    %1862 = vmatpush1.bf16.msra.mxu0 0
    %1863 = vmatprep.mubr.bf16.mxu0 0
    %1864 = vmatmul.mubr.bf16.gmra.mrb[0].mxu0 %v1595
    %v1865 = vpop.f32.mrb[0].mxu0
    %v1866 = vadd.f32 0.0, %v1865
    %v1867 = vpop.f32.mrb[0].mxu0
    %v1868 = vadd.f32 0.0, %v1867
    %v1869 = vpop.f32.mrb[0].mxu0
    %v1870 = vpop.f32.mrb[0].mxu0
    %1871 = vdwg.mxu0
    %v1872 = vlaneseq
    %v1873 = vshrl.u32 %v1872, 7
    %v1874 = vsub.s32 0, %v1873
    %v1875 = vrot.slane %v83, %v1874
    %v1876 = vmul.f32 %v1487, %v1875
    %1877 = vadd.xlane.f32.xlu0 %v1876
    %v1878 = vpop.xlane.xlu0 %1877
    %v1879 = vlaneseq
    %v1880 = vshrl.u32 %v1879, 7
    %v1881 = vsub.s32 1, %v1880
    %v1882 = vrot.slane %v83, %v1881
    %v1883 = vmul.f32 %v1487, %v1882
    %1884 = vadd.xlane.f32.xlu0 %v1883
    %v1885 = vpop.xlane.xlu0 %1884
    %1886 = vxpose.xlu0.b32.start [1/16] %v1878, 128
    %1887 = vxpose.xlu0.b32.cont [2/16] 0.0, 128
    %1888 = vxpose.xlu0.b32.cont [3/16] 0.0, 128
    %1889 = vxpose.xlu0.b32.cont [4/16] 0.0, 128
    %1890 = vxpose.xlu0.b32.cont [5/16] 0.0, 128
    %1891 = vxpose.xlu0.b32.cont [6/16] 0.0, 128
    %1892 = vxpose.xlu0.b32.cont [7/16] 0.0, 128
    %1893 = vxpose.xlu0.b32.cont [8/16] 0.0, 128
    %1894 = vxpose.xlu0.b32.cont [9/16] 0.0, 128
    %1895 = vxpose.xlu0.b32.cont [10/16] 0.0, 128
    %1896 = vxpose.xlu0.b32.cont [11/16] 0.0, 128
    %1897 = vxpose.xlu0.b32.cont [12/16] 0.0, 128
    %1898 = vxpose.xlu0.b32.cont [13/16] 0.0, 128
    %1899 = vxpose.xlu0.b32.cont [14/16] 0.0, 128
    %1900 = vxpose.xlu0.b32.cont [15/16] 0.0, 128
    %1901 = vxpose.xlu0.b32.end [16/16] 0.0, 128
    %v1902 = vpop.trf.xlu0
    %v1903 = vpop.trf.xlu0
    %v1904 = vpop.trf.xlu0
    %v1905 = vpop.trf.xlu0
    %v1906 = vpop.trf.xlu0
    %v1907 = vpop.trf.xlu0
    %v1908 = vpop.trf.xlu0
    %v1909 = vpop.trf.xlu0
    %v1910 = vpop.trf.xlu0
    %v1911 = vpop.trf.xlu0
    %v1912 = vpop.trf.xlu0
    %v1913 = vpop.trf.xlu0
    %v1914 = vpop.trf.xlu0
    %v1915 = vpop.trf.xlu0
    %v1916 = vpop.trf.xlu0
    %v1917 = vpop.trf.xlu0
    %v1918 = vlaneseq
    %v1919 = vshrl.u32 %v1918, 7
    %v1920 = vsub.s32 0, %v1919
    %v1921 = vrot.slane %v1902, %v1920
    %v1922 = vadd.f32 %v1885, %v1921
    %v1923 = vmul.f32 %v1922, %v76
    %v1924 = vmax.f32 %v1923, 0.0
    %v1925 = vsel %vm415, %v1924, -inf
    %1926 = vmax.xlane.f32.xlu0 %v1925
    %v1927 = vpop.xlane.xlu0 %1926
    %v1928 = vsub.f32 %v1924, %v1927
    %v1929 = vmul.f32 %v1928, 1.442695
    %v1930 = vpow.pop %v1929
    %v1931 = vmul.f32 %v1930, %v76
    %v1932 = vsel %vm415, %v1931, 0.0
    %1933 = vadd.xlane.f32.xlu0 %v1932
    %v1934 = vpop.xlane.xlu0 %1933
    %v1935 = vmax.f32 %v1934, 1.0
    %v1936 = vrcp.pop %v1935
    %v1937 = vmul.f32 %v1931, %v1936
    %v1938 = vlaneseq
    %v1939 = vshrl.u32 %v1938, 7
    %v1940 = vsub.s32 3, %v1939
    %v1941 = vrot.slane %v83, %v1940
    %v1942 = vmul.f32 %v1487, %v1941
    %1943 = vadd.xlane.f32.xlu0 %v1942
    %v1944 = vpop.xlane.xlu0 %1943
    %v1945 = vlaneseq
    %v1946 = vshrl.u32 %v1945, 7
    %v1947 = vsub.s32 4, %v1946
    %v1948 = vrot.slane %v83, %v1947
    %v1949 = vmul.f32 %v1593, %v1948
    %1950 = vadd.xlane.f32.xlu0 %v1949
    %v1951 = vpop.xlane.xlu0 %1950
    %1952 = vxpose.xlu0.b32.start [1/16] %v1944, 128
    %1953 = vxpose.xlu0.b32.cont [2/16] 0.0, 128
    %1954 = vxpose.xlu0.b32.cont [3/16] 0.0, 128
    %1955 = vxpose.xlu0.b32.cont [4/16] 0.0, 128
    %1956 = vxpose.xlu0.b32.cont [5/16] 0.0, 128
    %1957 = vxpose.xlu0.b32.cont [6/16] 0.0, 128
    %1958 = vxpose.xlu0.b32.cont [7/16] 0.0, 128
    %1959 = vxpose.xlu0.b32.cont [8/16] 0.0, 128
    %1960 = vxpose.xlu0.b32.cont [9/16] 0.0, 128
    %1961 = vxpose.xlu0.b32.cont [10/16] 0.0, 128
    %1962 = vxpose.xlu0.b32.cont [11/16] 0.0, 128
    %1963 = vxpose.xlu0.b32.cont [12/16] 0.0, 128
    %1964 = vxpose.xlu0.b32.cont [13/16] 0.0, 128
    %1965 = vxpose.xlu0.b32.cont [14/16] 0.0, 128
    %1966 = vxpose.xlu0.b32.cont [15/16] 0.0, 128
    %1967 = vxpose.xlu0.b32.end [16/16] 0.0, 128
    %v1968 = vpop.trf.xlu0
    %v1969 = vpop.trf.xlu0
    %v1970 = vpop.trf.xlu0
    %v1971 = vpop.trf.xlu0
    %v1972 = vpop.trf.xlu0
    %v1973 = vpop.trf.xlu0
    %v1974 = vpop.trf.xlu0
    %v1975 = vpop.trf.xlu0
    %v1976 = vpop.trf.xlu0
    %v1977 = vpop.trf.xlu0
    %v1978 = vpop.trf.xlu0
    %v1979 = vpop.trf.xlu0
    %v1980 = vpop.trf.xlu0
    %v1981 = vpop.trf.xlu0
    %v1982 = vpop.trf.xlu0
    %v1983 = vpop.trf.xlu0
    %v1984 = vlaneseq
    %v1985 = vshrl.u32 %v1984, 7
    %v1986 = vsub.s32 0, %v1985
    %v1987 = vrot.slane %v1968, %v1986
    %v1988 = vadd.f32 %v1951, %v1987
    %v1989 = vmul.f32 %v1988, %v77
    %v1990 = vmax.f32 %v1989, 0.0
    %v1991 = vsel %vm415, %v1990, -inf
    %1992 = vmax.xlane.f32.xlu0 %v1991
    %v1993 = vpop.xlane.xlu0 %1992
    %v1994 = vsub.f32 %v1990, %v1993
    %v1995 = vmul.f32 %v1994, 1.442695
    %v1996 = vpow.pop %v1995
    %v1997 = vmul.f32 %v1996, %v77
    %v1998 = vsel %vm415, %v1997, 0.0
    %1999 = vadd.xlane.f32.xlu0 %v1998
    %v2000 = vpop.xlane.xlu0 %1999
    %v2001 = vmax.f32 %v2000, 1.0
    %v2002 = vrcp.pop %v2001
    %v2003 = vmul.f32 %v1997, %v2002
    %v2004 = vlaneseq
    %v2005 = vshrl.u32 %v2004, 7
    %v2006 = vsub.s32 6, %v2005
    %v2007 = vrot.slane %v83, %v2006
    %v2008 = vmul.f32 %v1593, %v2007
    %2009 = vadd.xlane.f32.xlu0 %v2008
    %v2010 = vpop.xlane.xlu0 %2009
    %v2011 = vlaneseq
    %v2012 = vshrl.u32 %v2011, 7
    %v2013 = vsub.s32 7, %v2012
    %v2014 = vrot.slane %v83, %v2013
    %v2015 = vmul.f32 %v1593, %v2014
    %2016 = vadd.xlane.f32.xlu0 %v2015
    %v2017 = vpop.xlane.xlu0 %2016
    %2018 = vxpose.xlu0.b32.start [1/16] %v2010, 128
    %2019 = vxpose.xlu0.b32.cont [2/16] 0.0, 128
    %2020 = vxpose.xlu0.b32.cont [3/16] 0.0, 128
    %2021 = vxpose.xlu0.b32.cont [4/16] 0.0, 128
    %2022 = vxpose.xlu0.b32.cont [5/16] 0.0, 128
    %2023 = vxpose.xlu0.b32.cont [6/16] 0.0, 128
    %2024 = vxpose.xlu0.b32.cont [7/16] 0.0, 128
    %2025 = vxpose.xlu0.b32.cont [8/16] 0.0, 128
    %2026 = vxpose.xlu0.b32.cont [9/16] 0.0, 128
    %2027 = vxpose.xlu0.b32.cont [10/16] 0.0, 128
    %2028 = vxpose.xlu0.b32.cont [11/16] 0.0, 128
    %2029 = vxpose.xlu0.b32.cont [12/16] 0.0, 128
    %2030 = vxpose.xlu0.b32.cont [13/16] 0.0, 128
    %2031 = vxpose.xlu0.b32.cont [14/16] 0.0, 128
    %2032 = vxpose.xlu0.b32.cont [15/16] 0.0, 128
    %2033 = vxpose.xlu0.b32.end [16/16] 0.0, 128
    %v2034 = vpop.trf.xlu0
    %v2035 = vpop.trf.xlu0
    %v2036 = vpop.trf.xlu0
    %v2037 = vpop.trf.xlu0
    %v2038 = vpop.trf.xlu0
    %v2039 = vpop.trf.xlu0
    %v2040 = vpop.trf.xlu0
    %v2041 = vpop.trf.xlu0
    %v2042 = vpop.trf.xlu0
    %v2043 = vpop.trf.xlu0
    %v2044 = vpop.trf.xlu0
    %v2045 = vpop.trf.xlu0
    %v2046 = vpop.trf.xlu0
    %v2047 = vpop.trf.xlu0
    %v2048 = vpop.trf.xlu0
    %v2049 = vpop.trf.xlu0
    %v2050 = vlaneseq
    %v2051 = vshrl.u32 %v2050, 7
    %v2052 = vsub.s32 0, %v2051
    %v2053 = vrot.slane %v2034, %v2052
    %v2054 = vadd.f32 %v2017, %v2053
    %v2055 = vmul.f32 %v2054, %v78
    %v2056 = vmax.f32 %v2055, 0.0
    %v2057 = vsel %vm415, %v2056, -inf
    %2058 = vmax.xlane.f32.xlu0 %v2057
    %v2059 = vpop.xlane.xlu0 %2058
    %v2060 = vsub.f32 %v2056, %v2059
    %v2061 = vmul.f32 %v2060, 1.442695
    %v2062 = vpow.pop %v2061
    %v2063 = vmul.f32 %v2062, %v78
    %v2064 = vsel %vm415, %v2063, 0.0
    %2065 = vadd.xlane.f32.xlu0 %v2064
    %v2066 = vpop.xlane.xlu0 %2065
    %v2067 = vmax.f32 %v2066, 1.0
    %v2068 = vrcp.pop %v2067
    %v2069 = vmul.f32 %v2063, %v2068
    %v2070 = vlaneseq
    %v2071 = vshrl.u32 %v2070, 7
    %v2072 = vsub.s32 1, %v2071
    %v2073 = vrot.slane %v84, %v2072
    %v2074 = vmul.f32 %v1593, %v2073
    %2075 = vadd.xlane.f32.xlu0 %v2074
    %v2076 = vpop.xlane.xlu0 %2075
    %v2077 = vlaneseq
    %v2078 = vshrl.u32 %v2077, 7
    %v2079 = vsub.s32 2, %v2078
    %v2080 = vrot.slane %v84, %v2079
    %v2081 = vmul.f32 %v1487, %v2080
    %2082 = vadd.xlane.f32.xlu0 %v2081
    %v2083 = vpop.xlane.xlu0 %2082
    %2084 = vxpose.xlu0.b32.start [1/16] %v2076, 128
    %2085 = vxpose.xlu0.b32.cont [2/16] 0.0, 128
    %2086 = vxpose.xlu0.b32.cont [3/16] 0.0, 128
    %2087 = vxpose.xlu0.b32.cont [4/16] 0.0, 128
    %2088 = vxpose.xlu0.b32.cont [5/16] 0.0, 128
    %2089 = vxpose.xlu0.b32.cont [6/16] 0.0, 128
    %2090 = vxpose.xlu0.b32.cont [7/16] 0.0, 128
    %2091 = vxpose.xlu0.b32.cont [8/16] 0.0, 128
    %2092 = vxpose.xlu0.b32.cont [9/16] 0.0, 128
    %2093 = vxpose.xlu0.b32.cont [10/16] 0.0, 128
    %2094 = vxpose.xlu0.b32.cont [11/16] 0.0, 128
    %2095 = vxpose.xlu0.b32.cont [12/16] 0.0, 128
    %2096 = vxpose.xlu0.b32.cont [13/16] 0.0, 128
    %2097 = vxpose.xlu0.b32.cont [14/16] 0.0, 128
    %2098 = vxpose.xlu0.b32.cont [15/16] 0.0, 128
    %2099 = vxpose.xlu0.b32.end [16/16] 0.0, 128
    %v2100 = vpop.trf.xlu0
    %v2101 = vpop.trf.xlu0
    %v2102 = vpop.trf.xlu0
    %v2103 = vpop.trf.xlu0
    %v2104 = vpop.trf.xlu0
    %v2105 = vpop.trf.xlu0
    %v2106 = vpop.trf.xlu0
    %v2107 = vpop.trf.xlu0
    %v2108 = vpop.trf.xlu0
    %v2109 = vpop.trf.xlu0
    %v2110 = vpop.trf.xlu0
    %v2111 = vpop.trf.xlu0
    %v2112 = vpop.trf.xlu0
    %v2113 = vpop.trf.xlu0
    %v2114 = vpop.trf.xlu0
    %v2115 = vpop.trf.xlu0
    %v2116 = vlaneseq
    %v2117 = vshrl.u32 %v2116, 7
    %v2118 = vsub.s32 0, %v2117
    %v2119 = vrot.slane %v2100, %v2118
    %v2120 = vadd.f32 %v2083, %v2119
    %v2121 = vmul.f32 %v2120, %v79
    %v2122 = vmax.f32 %v2121, 0.0
    %v2123 = vsel %vm415, %v2122, -inf
    %2124 = vmax.xlane.f32.xlu0 %v2123
    %v2125 = vpop.xlane.xlu0 %2124
    %v2126 = vsub.f32 %v2122, %v2125
    %v2127 = vmul.f32 %v2126, 1.442695
    %v2128 = vpow.pop %v2127
    %v2129 = vmul.f32 %v2128, %v79
    %v2130 = vsel %vm415, %v2129, 0.0
    %2131 = vadd.xlane.f32.xlu0 %v2130
    %v2132 = vpop.xlane.xlu0 %2131
    %v2133 = vmax.f32 %v2132, 1.0
    %v2134 = vrcp.pop %v2133
    %v2135 = vmul.f32 %v2129, %v2134
    %v2136 = vpack.c.bf16 %v1937, %v1937
    %v2137 = vpack.c.bf16 %v1728, %v1728
    %v2138 = vpack.c.bf16 %v2135, %v2135
    %v2139 = vpack.c.bf16 %v1868, %v1868
    %v2141 = vsel %vm415, %v2138, 0
    %v2144 = vsel %vm634, %v2139, 0
    %2146 = vmatprep.subr.bf16.mxu0 0
    %2147 = vmatpush1.bf16.msra.mxu0 %v2144
    %2148 = vmatprep.subr.bf16.mxu0 0
    %2149 = vmatpush1.bf16.msra.mxu0 0
    %2150 = vmatprep.subr.bf16.mxu0 0
    %2151 = vmatpush1.bf16.msra.mxu0 0
    %2152 = vmatprep.subr.bf16.mxu0 0
    %2153 = vmatpush1.bf16.msra.mxu0 0
    %2154 = vmatprep.subr.bf16.mxu0 0
    %2155 = vmatpush1.bf16.msra.mxu0 0
    %2156 = vmatprep.subr.bf16.mxu0 0
    %2157 = vmatpush1.bf16.msra.mxu0 0
    %2158 = vmatprep.subr.bf16.mxu0 0
    %2159 = vmatpush1.bf16.msra.mxu0 0
    %2160 = vmatprep.subr.bf16.mxu0 0
    %2161 = vmatpush1.bf16.msra.mxu0 0
    %2162 = vmatprep.subr.bf16.mxu0 0
    %2163 = vmatpush1.bf16.msra.mxu0 0
    %2164 = vmatprep.subr.bf16.mxu0 0
    %2165 = vmatpush1.bf16.msra.mxu0 0
    %2166 = vmatprep.subr.bf16.mxu0 0
    %2167 = vmatpush1.bf16.msra.mxu0 0
    %2168 = vmatprep.subr.bf16.mxu0 0
    %2169 = vmatpush1.bf16.msra.mxu0 0
    %2170 = vmatprep.subr.bf16.mxu0 0
    %2171 = vmatpush1.bf16.msra.mxu0 0
    %2172 = vmatprep.subr.bf16.mxu0 0
    %2173 = vmatpush1.bf16.msra.mxu0 0
    %2174 = vmatprep.subr.bf16.mxu0 0
    %2175 = vmatpush1.bf16.msra.mxu0 0
    %2176 = vmatprep.subr.bf16.mxu0 0
    %2177 = vmatpush1.bf16.msra.mxu0 0
    %2178 = vmatprep.mubr.bf16.mxu0 0
    %2179 = vmatmul.mubr.bf16.gmra.mrb[0].mxu0 %v2141
    %v2180 = vpop.f32.mrb[0].mxu0
    %v2181 = vadd.f32 0.0, %v2180
    %v2182 = vpop.f32.mrb[0].mxu0
    %v2183 = vpop.f32.mrb[0].mxu0
    %v2184 = vpop.f32.mrb[0].mxu0
    %2185 = vdwg.mxu0
    %v2187 = vsel %vm415, %v2136, 0
    %v2190 = vsel %vm634, %v2137, 0
    %2192 = vmatprep.subr.bf16.mxu0 0
    %2193 = vmatpush1.bf16.msra.mxu0 %v2190
    %2194 = vmatprep.subr.bf16.mxu0 0
    %2195 = vmatpush1.bf16.msra.mxu0 0
    %2196 = vmatprep.subr.bf16.mxu0 0
    %2197 = vmatpush1.bf16.msra.mxu0 0
    %2198 = vmatprep.subr.bf16.mxu0 0
    %2199 = vmatpush1.bf16.msra.mxu0 0
    %2200 = vmatprep.subr.bf16.mxu0 0
    %2201 = vmatpush1.bf16.msra.mxu0 0
    %2202 = vmatprep.subr.bf16.mxu0 0
    %2203 = vmatpush1.bf16.msra.mxu0 0
    %2204 = vmatprep.subr.bf16.mxu0 0
    %2205 = vmatpush1.bf16.msra.mxu0 0
    %2206 = vmatprep.subr.bf16.mxu0 0
    %2207 = vmatpush1.bf16.msra.mxu0 0
    %2208 = vmatprep.subr.bf16.mxu0 0
    %2209 = vmatpush1.bf16.msra.mxu0 0
    %2210 = vmatprep.subr.bf16.mxu0 0
    %2211 = vmatpush1.bf16.msra.mxu0 0
    %2212 = vmatprep.subr.bf16.mxu0 0
    %2213 = vmatpush1.bf16.msra.mxu0 0
    %2214 = vmatprep.subr.bf16.mxu0 0
    %2215 = vmatpush1.bf16.msra.mxu0 0
    %2216 = vmatprep.subr.bf16.mxu0 0
    %2217 = vmatpush1.bf16.msra.mxu0 0
    %2218 = vmatprep.subr.bf16.mxu0 0
    %2219 = vmatpush1.bf16.msra.mxu0 0
    %2220 = vmatprep.subr.bf16.mxu0 0
    %2221 = vmatpush1.bf16.msra.mxu0 0
    %2222 = vmatprep.subr.bf16.mxu0 0
    %2223 = vmatpush1.bf16.msra.mxu0 0
    %2224 = vmatprep.mubr.bf16.mxu0 0
    %2225 = vmatmul.mubr.bf16.gmra.mrb[0].mxu0 %v2187
    %v2226 = vpop.f32.mrb[0].mxu0
    %v2227 = vadd.f32 %v2181, %v2226
    %v2228 = vpop.f32.mrb[0].mxu0
    %v2229 = vpop.f32.mrb[0].mxu0
    %v2230 = vpop.f32.mrb[0].mxu0
    %2231 = vdwg.mxu0
    %v2232 = vlaneseq
    %v2233 = vshrl.u32 %v2232, 7
    %v2234 = vsub.s32 2, %v2233
    %v2235 = vrot.slane %v83, %v2234
    %v2236 = vadd.f32 %v2227, %v2235
    %v2237 = vlaneseq
    %v2238 = vshrl.u32 %v2237, 7
    %v2239 = vsub.s32 3, %v2238
    %v2240 = vrot.slane %v84, %v2239
    %v2241 = vadd.f32 %v2236, %v2240
    %v2242 = vpack.c.bf16 %v2069, %v2069
    %v2243 = vpack.c.bf16 %v1866, %v1866
    %v2244 = vpack.c.bf16 %v2003, %v2003
    %v2245 = vpack.c.bf16 %v1730, %v1730
    %v2247 = vsel %vm415, %v2244, 0
    %v2250 = vsel %vm634, %v2245, 0
    %2252 = vmatprep.subr.bf16.mxu0 0
    %2253 = vmatpush1.bf16.msra.mxu0 %v2250
    %2254 = vmatprep.subr.bf16.mxu0 0
    %2255 = vmatpush1.bf16.msra.mxu0 0
    %2256 = vmatprep.subr.bf16.mxu0 0
    %2257 = vmatpush1.bf16.msra.mxu0 0
    %2258 = vmatprep.subr.bf16.mxu0 0
    %2259 = vmatpush1.bf16.msra.mxu0 0
    %2260 = vmatprep.subr.bf16.mxu0 0
    %2261 = vmatpush1.bf16.msra.mxu0 0
    %2262 = vmatprep.subr.bf16.mxu0 0
    %2263 = vmatpush1.bf16.msra.mxu0 0
    %2264 = vmatprep.subr.bf16.mxu0 0
    %2265 = vmatpush1.bf16.msra.mxu0 0
    %2266 = vmatprep.subr.bf16.mxu0 0
    %2267 = vmatpush1.bf16.msra.mxu0 0
    %2268 = vmatprep.subr.bf16.mxu0 0
    %2269 = vmatpush1.bf16.msra.mxu0 0
    %2270 = vmatprep.subr.bf16.mxu0 0
    %2271 = vmatpush1.bf16.msra.mxu0 0
    %2272 = vmatprep.subr.bf16.mxu0 0
    %2273 = vmatpush1.bf16.msra.mxu0 0
    %2274 = vmatprep.subr.bf16.mxu0 0
    %2275 = vmatpush1.bf16.msra.mxu0 0
    %2276 = vmatprep.subr.bf16.mxu0 0
    %2277 = vmatpush1.bf16.msra.mxu0 0
    %2278 = vmatprep.subr.bf16.mxu0 0
    %2279 = vmatpush1.bf16.msra.mxu0 0
    %2280 = vmatprep.subr.bf16.mxu0 0
    %2281 = vmatpush1.bf16.msra.mxu0 0
    %2282 = vmatprep.subr.bf16.mxu0 0
    %2283 = vmatpush1.bf16.msra.mxu0 0
    %2284 = vmatprep.mubr.bf16.mxu0 0
    %2285 = vmatmul.mubr.bf16.gmra.mrb[0].mxu0 %v2247
    %v2286 = vpop.f32.mrb[0].mxu0
    %v2287 = vadd.f32 0.0, %v2286
    %v2288 = vpop.f32.mrb[0].mxu0
    %v2289 = vpop.f32.mrb[0].mxu0
    %v2290 = vpop.f32.mrb[0].mxu0
    %2291 = vdwg.mxu0
    %v2293 = vsel %vm415, %v2242, 0
    %v2296 = vsel %vm634, %v2243, 0
    %2298 = vmatprep.subr.bf16.mxu0 0
    %2299 = vmatpush1.bf16.msra.mxu0 %v2296
    %2300 = vmatprep.subr.bf16.mxu0 0
    %2301 = vmatpush1.bf16.msra.mxu0 0
    %2302 = vmatprep.subr.bf16.mxu0 0
    %2303 = vmatpush1.bf16.msra.mxu0 0
    %2304 = vmatprep.subr.bf16.mxu0 0
    %2305 = vmatpush1.bf16.msra.mxu0 0
    %2306 = vmatprep.subr.bf16.mxu0 0
    %2307 = vmatpush1.bf16.msra.mxu0 0
    %2308 = vmatprep.subr.bf16.mxu0 0
    %2309 = vmatpush1.bf16.msra.mxu0 0
    %2310 = vmatprep.subr.bf16.mxu0 0
    %2311 = vmatpush1.bf16.msra.mxu0 0
    %2312 = vmatprep.subr.bf16.mxu0 0
    %2313 = vmatpush1.bf16.msra.mxu0 0
    %2314 = vmatprep.subr.bf16.mxu0 0
    %2315 = vmatpush1.bf16.msra.mxu0 0
    %2316 = vmatprep.subr.bf16.mxu0 0
    %2317 = vmatpush1.bf16.msra.mxu0 0
    %2318 = vmatprep.subr.bf16.mxu0 0
    %2319 = vmatpush1.bf16.msra.mxu0 0
    %2320 = vmatprep.subr.bf16.mxu0 0
    %2321 = vmatpush1.bf16.msra.mxu0 0
    %2322 = vmatprep.subr.bf16.mxu0 0
    %2323 = vmatpush1.bf16.msra.mxu0 0
    %2324 = vmatprep.subr.bf16.mxu0 0
    %2325 = vmatpush1.bf16.msra.mxu0 0
    %2326 = vmatprep.subr.bf16.mxu0 0
    %2327 = vmatpush1.bf16.msra.mxu0 0
    %2328 = vmatprep.subr.bf16.mxu0 0
    %2329 = vmatpush1.bf16.msra.mxu0 0
    %2330 = vmatprep.mubr.bf16.mxu0 0
    %2331 = vmatmul.mubr.bf16.gmra.mrb[0].mxu0 %v2293
    %v2332 = vpop.f32.mrb[0].mxu0
    %v2333 = vadd.f32 %v2287, %v2332
    %v2334 = vpop.f32.mrb[0].mxu0
    %v2335 = vpop.f32.mrb[0].mxu0
    %v2336 = vpop.f32.mrb[0].mxu0
    %2337 = vdwg.mxu0
    %v2338 = vlaneseq
    %v2339 = vshrl.u32 %v2338, 7
    %v2340 = vsub.s32 5, %v2339
    %v2341 = vrot.slane %v83, %v2340
    %v2342 = vadd.f32 %v2333, %v2341
    %v2343 = vlaneseq
    %v2344 = vshrl.u32 %v2343, 7
    %v2345 = vsub.s32 0, %v2344
    %v2346 = vrot.slane %v84, %v2345
    %v2347 = vadd.f32 %v2342, %v2346
    %v2348 = vrot.slane %v2241, 4
    %v2349 = vadd.f32 %v2241, %v2348
    %v2350 = vrot.slane %v2349, 2
    %v2351 = vadd.f32 %v2349, %v2350
    %v2352 = vrot.slane %v2351, 1
    %v2353 = vadd.f32 %v2351, %v2352
    %v2354 = vrot.slane %v2347, 4
    %v2355 = vadd.f32 %v2347, %v2354
    %v2356 = vrot.slane %v2355, 2
    %v2357 = vadd.f32 %v2355, %v2356
    %v2358 = vrot.slane %v2357, 1
    %v2359 = vadd.f32 %v2357, %v2358
    %v2360 = vadd.f32 %v2353, %v2359
    %v2361 = vmul.f32 %v2360, 0.0625
    %s2362 = scalar_lea.vmem [#allocation7], 768
    %v2363 = vld [vmem:[%s2362] sm:$0xff]
    %v2364 = vld [vmem:[%s2362 + $0x8] sm:$0xff]
    %v2365 = vld [vmem:[%s2362 + $0x10] sm:$0xff]
    %v2366 = vld [vmem:[%s2362 + $0x18] sm:$0xff]
    %v2367 = vld [vmem:[%s2362 + $0x20] sm:$0xff]
    %v2368 = vld [vmem:[%s2362 + $0x28] sm:$0xff]
    %v2369 = vld [vmem:[%s2362 + $0x30] sm:$0xff]
    %v2370 = vld [vmem:[%s2362 + $0x38] sm:$0xff]
    %v2371 = vld [vmem:[%s2362 + $0x40] sm:$0xff]
    %v2372 = vld [vmem:[%s2362 + $0x48] sm:$0xff]
    %v2373 = vld [vmem:[%s2362 + $0x50] sm:$0xff]
    %v2374 = vld [vmem:[%s2362 + $0x58] sm:$0xff]
    %v2375 = vld [vmem:[%s2362 + $0x60] sm:$0xff]
    %v2376 = vld [vmem:[%s2362 + $0x68] sm:$0xff]
    %v2377 = vld [vmem:[%s2362 + $0x70] sm:$0xff]
    %v2378 = vld [vmem:[%s2362 + $0x78] sm:$0xff]
    %v2379 = vpack.c.bf16 %v2361, %v2361
    %v2396 = vunpack.c.l.b16 %v2363
    %v2397 = vunpack.c.l.b16 %v2364
    %v2398 = vunpack.c.l.b16 %v2365
    %v2399 = vunpack.c.l.b16 %v2366
    %v2400 = vunpack.c.l.b16 %v2367
    %v2401 = vunpack.c.l.b16 %v2368
    %v2402 = vunpack.c.l.b16 %v2369
    %v2403 = vunpack.c.l.b16 %v2370
    %v2404 = vunpack.c.l.b16 %v2371
    %v2405 = vunpack.c.l.b16 %v2372
    %v2406 = vunpack.c.l.b16 %v2373
    %v2407 = vunpack.c.l.b16 %v2374
    %v2408 = vunpack.c.l.b16 %v2375
    %v2409 = vunpack.c.l.b16 %v2376
    %v2410 = vunpack.c.l.b16 %v2377
    %v2411 = vunpack.c.l.b16 %v2378
    %v2412 = vpack.c.b16 %v2397, %v2396
    %v2413 = vpack.c.b16 %v2399, %v2398
    %v2414 = vpack.c.b16 %v2401, %v2400
    %v2415 = vpack.c.b16 %v2403, %v2402
    %v2416 = vpack.c.b16 %v2405, %v2404
    %v2417 = vpack.c.b16 %v2407, %v2406
    %v2418 = vpack.c.b16 %v2409, %v2408
    %v2419 = vpack.c.b16 %v2411, %v2410
    %v2429 = vrot.slane %v84, 4
    %2431 = vmatprep.subr.bf16.mxu0 0
    %2432 = vmatpush1.bf16.msra.mxu0 %v2412
    %2433 = vmatprep.subr.bf16.mxu0 0
    %2434 = vmatpush1.bf16.msra.mxu0 %v2413
    %2435 = vmatprep.subr.bf16.mxu0 0
    %2436 = vmatpush1.bf16.msra.mxu0 %v2414
    %2437 = vmatprep.subr.bf16.mxu0 0
    %2438 = vmatpush1.bf16.msra.mxu0 %v2415
    %2439 = vmatprep.subr.bf16.mxu0 0
    %2440 = vmatpush1.bf16.msra.mxu0 %v2416
    %2441 = vmatprep.subr.bf16.mxu0 0
    %2442 = vmatpush1.bf16.msra.mxu0 %v2417
    %2443 = vmatprep.subr.bf16.mxu0 0
    %2444 = vmatpush1.bf16.msra.mxu0 %v2418
    %2445 = vmatprep.subr.bf16.mxu0 0
    %2446 = vmatpush1.bf16.msra.mxu0 %v2419
    %2447 = vmatprep.subr.bf16.mxu0 0
    %2448 = vmatpush1.bf16.msra.mxu0 0
    %2449 = vmatprep.subr.bf16.mxu0 0
    %2450 = vmatpush1.bf16.msra.mxu0 0
    %2451 = vmatprep.subr.bf16.mxu0 0
    %2452 = vmatpush1.bf16.msra.mxu0 0
    %2453 = vmatprep.subr.bf16.mxu0 0
    %2454 = vmatpush1.bf16.msra.mxu0 0
    %2455 = vmatprep.subr.bf16.mxu0 0
    %2456 = vmatpush1.bf16.msra.mxu0 0
    %2457 = vmatprep.subr.bf16.mxu0 0
    %2458 = vmatpush1.bf16.msra.mxu0 0
    %2459 = vmatprep.subr.bf16.mxu0 0
    %2460 = vmatpush1.bf16.msra.mxu0 0
    %2461 = vmatprep.subr.bf16.mxu0 0
    %2462 = vmatpush1.bf16.msra.mxu0 0
    %2463 = vmatprep.mubr.bf16.mxu0 0
    %2464 = vmatmul.mubr.bf16.gmra.mrb[0].mxu0 %v2379
    %v2465 = vpop.f32.mrb[0].mxu0
    %v2466 = vadd.f32 %v2429, %v2465
    %v2467 = vpop.f32.mrb[0].mxu0
    %v2468 = vpop.f32.mrb[0].mxu0
    %v2469 = vpop.f32.mrb[0].mxu0
    %2470 = vdwg.mxu0
    %v2471 = vlaneseq
    %v2472 = vshrl.u32 %v2471, 7
    %v2473 = vsub.s32 0, %v2472
    %v2474 = vrot.slane %v2466, %v2473
    %2475 = vst [vmem:[#allocation10] sm:$0xff] %v2474
    // Predicated region
    $region34: #{tpu_custom_call.1} parent=1 // pred_check
      _
    $region35: #{tpu_custom_call.1} parent=1 // pred_check_branch
      %2477 = sbr.rel (0) target = $region37
    $region36: #{tpu_custom_call.1} parent=1 // pred_region
      %s2479 = ssub.s32 128, 128
      %2480 = vsyncadd [#allocation4], %s2479
      %s2482 = sshll.u32 [#allocation10], 4
      %s2483 = int_to_ptr.vmem [resolvable:$true] %s2482
      %2485 = dma.vmem_to_hbm [thread:$0]  %s2483, 128, %s4, [#allocation4]
    $region37: #{tpu_custom_call.1} parent=1 // pred_fallthru
      _
    // Predicated region
    $region38: #{tpu_custom_call.1} parent=1 // pred_check
      _
    $region39: #{tpu_custom_call.1} parent=1 // pred_check_branch
      %2487 = sbr.rel (0) target = $region41
    $region40: #{tpu_custom_call.1} parent=1 // pred_region
      %2488 = dma.done [#allocation4], 128
    $region41: #{tpu_custom_call.1} parent=1 // pred_fallthru
      _
    %2489 = vsyncpa [#allocation3], 1
    %2490 = vsyncpa [#allocation6], 1
    %2491 = vsyncpa [#allocation9], 1
    %2492 = vsyncpa [#allocation4], 1

</llo_original>
